<compile_context>
chip_gen: v7x
topology: tpu7x:2x2x1
jax: 0.10.0
libtpu: 0.0.40
codegen_flags: <defaults>
</compile_context>

<pallas_src>
import jax
import jax.numpy as jnp
from jax.experimental import pallas as pl
from jax.experimental.pallas import tpu as pltpu


# ------------------------------ fused kernel ----------------------------------
def fused_kernel(xp_ref, wconv_ref, wgru_ref, wcls_ref, bias_ref, o_ref):
    # xp_ref:    (T+2, B_TILE, Cin)  time-major input, time padded by 1 each side
    # wconv_ref: (3, Cin, Cout)      conv taps [t-1, t, t+1], BN scale folded
    # wgru_ref:  (Cout+H, 3H)        rows 0:Cout = W_ih^T, rows Cout: = W_hh^T
    # wcls_ref:  (H, CP)             fc2(fc1(.)) folded, lane-padded to CP
    # bias_ref:  (8, CP)  row0: conv shift (:Cout)   row1: b_ih(+b_hh r,z) (:3H)
    #                     row2: b_hh of n gate (:H)  row3: folded fc bias (:CP)
    # o_ref:     (B_TILE, CP)        classifier logits (lane-padded)
    Tp2, Bt, Cin = xp_ref.shape
    T = Tp2 - 2
    Cout = wconv_ref.shape[2]
    H3 = wgru_ref.shape[1]
    H = H3 // 3
    TB = T * Bt

    cshift = bias_ref[0:1, 0:Cout]        # (1, Cout)
    bih = bias_ref[1:2, 0:H3]             # (1, 3H)
    bhh_n = bias_ref[2:3, 0:H]            # (1, H)
    b_cls = bias_ref[3:4, :]              # (1, CP)

    # ---- Conv1d(k=3, pad=1) + folded BN + ReLU: 3 accumulated tap matmuls ----
    feat = jnp.dot(xp_ref[0:T].reshape(TB, Cin), wconv_ref[0],
                   preferred_element_type=jnp.float32)
    feat = feat + jnp.dot(xp_ref[1:T + 1].reshape(TB, Cin), wconv_ref[1],
                          preferred_element_type=jnp.float32)
    feat = feat + jnp.dot(xp_ref[2:T + 2].reshape(TB, Cin), wconv_ref[2],
                          preferred_element_type=jnp.float32)
    feat = jnp.maximum(feat + cshift, 0.0)                     # (TB, Cout)

    # ---- input-to-hidden projection for ALL timesteps (hoisted) ----
    wih = wgru_ref[0:Cout, :]                                  # (Cout, 3H)
    whh = wgru_ref[Cout:Cout + H, :]                           # (H, 3H)
    gi = jnp.dot(feat, wih, preferred_element_type=jnp.float32) + bih  # (TB, 3H)
    gi_r = gi[:, 0:H].reshape(T, Bt, H)      # lane splits happen once, off-chain
    gi_z = gi[:, H:2 * H].reshape(T, Bt, H)
    gi_n = gi[:, 2 * H:3 * H].reshape(T, Bt, H)

    def sig(x):  # exact sigmoid via a single EUP tanh
        return 0.5 * (jnp.tanh(0.5 * x) + 1.0)

    # ---- GRU recurrence: one fused (Bt,H)x(H,3H) matmul per step, unrolled ----
    # t = 0 special case (h0 == 0 -> skip the W_hh matmul entirely)
    r = sig(gi_r[0])
    z = sig(gi_z[0])
    n = jnp.tanh(gi_n[0] + r * bhh_n)
    h = (1.0 - z) * n
    for t in range(1, T):
        gh = jnp.dot(h, whh, preferred_element_type=jnp.float32)   # (Bt, 3H)
        r = sig(gi_r[t] + gh[:, 0:H])
        z = sig(gi_z[t] + gh[:, H:2 * H])
        n = jnp.tanh(gi_n[t] + r * (gh[:, 2 * H:3 * H] + bhh_n))
        h = (1.0 - z) * n + z * h

    # ---- classifier epilogue: fc1+fc2 folded into one matmul ----
    o_ref[...] = (jnp.dot(h, wcls_ref[...], preferred_element_type=jnp.float32)
                  + b_cls).astype(o_ref.dtype)


# ------------------------ one-time parameter preparation -----------------------
def prepare_params(params, eps=1e-5, class_pad=128):
    """Fold BN / fc1->fc2, fuse gate weights, pack slabs ONCE (not per call)."""
    conv_w = params['conv_w']                      # (Cout, Cin, 3)
    Cout, Cin, _ = conv_w.shape
    H = params['gru_w_hh'].shape[1]
    H3 = 3 * H

    # Conv + BN(eval) fold.
    scale = params['bn_gamma'] / jnp.sqrt(params['bn_var'] + eps)        # (Cout,)
    cshift = (params['conv_b'] - params['bn_mean']) * scale + params['bn_beta']
    w_conv = jnp.stack([conv_w[:, :, k].T * scale[None, :] for k in range(3)],
                       axis=0)                                           # (3,Cin,Cout)

    # GRU weights: W_ih^T stacked over packed per-gate W_hh^T (one slab).
    w_ih = params['gru_w_ih']                      # (3H, Cout) gates r,z,n
    w_hh = params['gru_w_hh']                      # (3H, H)
    b_ih = params['gru_b_ih']
    b_hh = params['gru_b_hh']
    w_gru = jnp.concatenate([w_ih.T, w_hh.T], axis=0)       # (Cout+H, 3H)
    bih_comb = jnp.concatenate([b_ih[0:H] + b_hh[0:H],      # b_hh folded for r,z
                                b_ih[H:2 * H] + b_hh[H:2 * H],
                                b_ih[2 * H:3 * H]])
    bhh_n = b_hh[2 * H:3 * H]                               # n gate: scaled by r

    # Classifier fold (legal: no ReLU between the two Linears in the module).
    C = params['fc2_w'].shape[0]
    CP = max(class_pad, ((C + 127) // 128) * 128)
    w12 = params['fc1_w'].T @ params['fc2_w'].T             # (H, C)
    b12 = params['fc1_b'] @ params['fc2_w'].T + params['fc2_b']
    w_cls = jnp.zeros((H, CP), jnp.float32).at[:, :C].set(w12)

    # One packed bias slab (8 sublanes x CP lanes).
    bias = jnp.zeros((8, CP), jnp.float32)
    bias = bias.at[0, :Cout].set(cshift)
    bias = bias.at[1, :H3].set(bih_comb)
    bias = bias.at[2, :H].set(bhh_n)
    bias = bias.at[3, :C].set(b12)

    return {'w_conv': w_conv, 'w_gru': w_gru, 'w_cls': w_cls, 'bias': bias,
            'n_classes': C, 'hidden': H, 'adjust_dim': Cout}


# --------------------------------- forward ------------------------------------
def cnn_gru_classifier_forward(prep, x, b_tile=8):
    # x: (B, T, in_dim) float32.  b_tile must be a multiple of 8 sublanes.
    B, T, Cin = x.shape
    Bp = ((B + b_tile - 1) // b_tile) * b_tile
    CP = prep['w_cls'].shape[1]

    xs = jnp.transpose(x, (1, 0, 2))                         # (T, B, Cin)
    # time pad (conv padding=1) and batch pad done in ONE existing pad op
    xp = jnp.pad(xs, ((1, 1), (0, Bp - B), (0, 0)))          # (T+2, Bp, Cin)

    out = pl.pallas_call(
        fused_kernel,
        out_shape=jax.ShapeDtypeStruct((Bp, CP), jnp.float32),
        grid=(Bp // b_tile,),
        in_specs=[
            pl.BlockSpec((T + 2, b_tile, Cin), lambda b: (0, b, 0)),
            pl.BlockSpec(prep['w_conv'].shape, lambda b: (0, 0, 0)),
            pl.BlockSpec(prep['w_gru'].shape, lambda b: (0, 0)),
            pl.BlockSpec(prep['w_cls'].shape, lambda b: (0, 0)),
            pl.BlockSpec(prep['bias'].shape, lambda b: (0, 0)),
        ],
        out_specs=pl.BlockSpec((b_tile, CP), lambda b: (b, 0)),
        compiler_params=pltpu.CompilerParams(
            dimension_semantics=("parallel",)),
    )(xp, prep['w_conv'], prep['w_gru'], prep['w_cls'], prep['bias'])
    return out[:B, :prep['n_classes']]


# --------------------------- pure-JAX reference --------------------------------
def reference_forward(params, x, eps=1e-5):
    B, T, Cin = x.shape
    Cout = params['conv_w'].shape[0]
    H = params['gru_w_hh'].shape[1]
    xp = jnp.pad(x, ((0, 0), (1, 1), (0, 0)))
    y = jnp.zeros((B, T, Cout), jnp.float32)
    for k in range(3):
        y = y + jnp.einsum('btc,oc->bto', xp[:, k:k + T, :], params['conv_w'][:, :, k])
    y = y + params['conv_b']
    y = (y - params['bn_mean']) / jnp.sqrt(params['bn_var'] + eps)
    y = y * params['bn_gamma'] + params['bn_beta']
    y = jnp.maximum(y, 0.0)

    h = jnp.zeros((B, H), jnp.float32)
    for t in range(T):
        gi = y[:, t, :] @ params['gru_w_ih'].T + params['gru_b_ih']
        gh = h @ params['gru_w_hh'].T + params['gru_b_hh']
        r = jax.nn.sigmoid(gi[:, :H] + gh[:, :H])
        z = jax.nn.sigmoid(gi[:, H:2 * H] + gh[:, H:2 * H])
        n = jnp.tanh(gi[:, 2 * H:] + r * gh[:, 2 * H:])
        h = (1.0 - z) * n + z * h

    h1 = h @ params['fc1_w'].T + params['fc1_b']
    return h1 @ params['fc2_w'].T + params['fc2_b']


# ------------------------------- param init ------------------------------------
def init_params(key, in_dim=5, adjust_dim=16, hidden=32, n_classes=4):
    ks = jax.random.split(key, 10)

    def u(k, shape, bound):
        return jax.random.uniform(k, shape, jnp.float32, -bound, bound)

    cb = 1.0 / jnp.sqrt(jnp.float32(in_dim * 3))
    gb = 1.0 / jnp.sqrt(jnp.float32(hidden))
    return {
        'conv_w': u(ks[0], (adjust_dim, in_dim, 3), cb),
        'conv_b': u(ks[1], (adjust_dim,), cb),
        'bn_gamma': jnp.ones((adjust_dim,), jnp.float32),
        'bn_beta': jnp.zeros((adjust_dim,), jnp.float32),
        'bn_mean': jnp.zeros((adjust_dim,), jnp.float32),
        'bn_var': jnp.ones((adjust_dim,), jnp.float32),
        'gru_w_ih': u(ks[2], (3 * hidden, adjust_dim), gb),
        'gru_w_hh': u(ks[3], (3 * hidden, hidden), gb),
        'gru_b_ih': u(ks[4], (3 * hidden,), gb),
        'gru_b_hh': u(ks[5], (3 * hidden,), gb),
        'fc1_w': u(ks[6], (hidden, hidden), gb),
        'fc1_b': u(ks[7], (hidden,), gb),
        'fc2_w': u(ks[8], (n_classes, hidden), gb),
        'fc2_b': u(ks[9], (n_classes,), gb),
    }


if __name__ == "__main__":
    key = jax.random.PRNGKey(0)
    k_param, k_x = jax.random.split(key)

    B, T, in_dim = 2, 16, 5
    adjust_dim, hidden, n_classes = 16, 32, 4

    params = init_params(k_param, in_dim, adjust_dim, hidden, n_classes)
    prep = prepare_params(params)                     # one-time weight prep
    x = jax.random.normal(k_x, (B, T, in_dim), jnp.float32)

    out = cnn_gru_classifier_forward(prep, x)
    out = jax.block_until_ready(out)
    assert out.shape == (B, n_classes), out.shape

    ref = reference_forward(params, x)
    assert jnp.allclose(out, ref, rtol=1e-3, atol=1e-3), (out, ref)

    print("KERNEL_OK")
</pallas_src>

<mosaic_0001>
module attributes {stable_mosaic.version = 11 : i64} {
  func.func @fused_kernel(%arg0: i32, %arg1: memref<18x8x5xf32, #tpu.memory_space<vmem>>, %arg2: memref<3x5x16xf32, #tpu.memory_space<vmem>>, %arg3: memref<48x96xf32, #tpu.memory_space<vmem>>, %arg4: memref<32x128xf32, #tpu.memory_space<vmem>>, %arg5: memref<8x128xf32, #tpu.memory_space<vmem>>, %arg6: memref<8x128xf32, #tpu.memory_space<vmem>>) attributes {dimension_semantics = [#tpu.dimension_semantics<parallel>], iteration_bounds = array<i64: 1>, scalar_prefetch = 0 : i64, scratch_operands = 0 : i64, tpu.core_type = #tpu.core_type<tc>, window_params = [{transform_indices = @transform_0, window_bounds = array<i64: 18, 8, 5>}, {pipeline_mode = #tpu.pipeline_mode<synchronous>, transform_indices = @transform_1, window_bounds = array<i64: 3, 5, 16>}, {pipeline_mode = #tpu.pipeline_mode<synchronous>, transform_indices = @transform_2, window_bounds = array<i64: 48, 96>}, {pipeline_mode = #tpu.pipeline_mode<synchronous>, transform_indices = @transform_3, window_bounds = array<i64: 32, 128>}, {pipeline_mode = #tpu.pipeline_mode<synchronous>, transform_indices = @transform_4, window_bounds = array<i64: 8, 128>}, {transform_indices = @transform_5, window_bounds = array<i64: 8, 128>}]} {
    %c0 = arith.constant 0 : index
    %c0_0 = arith.constant 0 : index
    %0 = vector.load %arg5[%c0, %c0_0] : memref<8x128xf32, #tpu.memory_space<vmem>>, vector<1x16xf32>
    %c1 = arith.constant 1 : index
    %c0_1 = arith.constant 0 : index
    %1 = vector.load %arg5[%c1, %c0_1] : memref<8x128xf32, #tpu.memory_space<vmem>>, vector<1x96xf32>
    %c2 = arith.constant 2 : index
    %c0_2 = arith.constant 0 : index
    %2 = vector.load %arg5[%c2, %c0_2] : memref<8x128xf32, #tpu.memory_space<vmem>>, vector<1x32xf32>
    %c3 = arith.constant 3 : index
    %c0_3 = arith.constant 0 : index
    %3 = vector.load %arg5[%c3, %c0_3] : memref<8x128xf32, #tpu.memory_space<vmem>>, vector<1x128xf32>
    %c0_4 = arith.constant 0 : index
    %c0_5 = arith.constant 0 : index
    %c0_6 = arith.constant 0 : index
    %4 = vector.load %arg1[%c0_4, %c0_5, %c0_6] : memref<18x8x5xf32, #tpu.memory_space<vmem>>, vector<16x8x5xf32>
    %5 = vector.shape_cast %4 : vector<16x8x5xf32> to vector<128x5xf32>
    %c0_7 = arith.constant 0 : index
    %c0_8 = arith.constant 0 : index
    %c0_9 = arith.constant 0 : index
    %6 = vector.load %arg2[%c0_7, %c0_8, %c0_9] : memref<3x5x16xf32, #tpu.memory_space<vmem>>, vector<1x5x16xf32>
    %7 = vector.shape_cast %6 : vector<1x5x16xf32> to vector<5x16xf32>
    %cst = arith.constant dense<0.000000e+00> : vector<128x16xf32>
    %8 = tpu.matmul %5, %7, %cst {dimension_numbers = #tpu.dot_dimension_numbers<[1], [0], [0], [1], [0, 0, 1, 1], [], []>} : vector<128x5xf32>, vector<5x16xf32>, vector<128x16xf32> -> vector<128x16xf32>
    %c1_10 = arith.constant 1 : index
    %c0_11 = arith.constant 0 : index
    %c0_12 = arith.constant 0 : index
    %9 = vector.load %arg1[%c1_10, %c0_11, %c0_12] : memref<18x8x5xf32, #tpu.memory_space<vmem>>, vector<16x8x5xf32>
    %10 = vector.shape_cast %9 : vector<16x8x5xf32> to vector<128x5xf32>
    %c1_13 = arith.constant 1 : index
    %c0_14 = arith.constant 0 : index
    %c0_15 = arith.constant 0 : index
    %11 = vector.load %arg2[%c1_13, %c0_14, %c0_15] : memref<3x5x16xf32, #tpu.memory_space<vmem>>, vector<1x5x16xf32>
    %12 = vector.shape_cast %11 : vector<1x5x16xf32> to vector<5x16xf32>
    %cst_16 = arith.constant dense<0.000000e+00> : vector<128x16xf32>
    %13 = tpu.matmul %10, %12, %cst_16 {dimension_numbers = #tpu.dot_dimension_numbers<[1], [0], [0], [1], [0, 0, 1, 1], [], []>} : vector<128x5xf32>, vector<5x16xf32>, vector<128x16xf32> -> vector<128x16xf32>
    %14 = arith.addf %8, %13 : vector<128x16xf32>
    %c2_17 = arith.constant 2 : index
    %c0_18 = arith.constant 0 : index
    %c0_19 = arith.constant 0 : index
    %15 = vector.load %arg1[%c2_17, %c0_18, %c0_19] : memref<18x8x5xf32, #tpu.memory_space<vmem>>, vector<16x8x5xf32>
    %16 = vector.shape_cast %15 : vector<16x8x5xf32> to vector<128x5xf32>
    %c2_20 = arith.constant 2 : index
    %c0_21 = arith.constant 0 : index
    %c0_22 = arith.constant 0 : index
    %17 = vector.load %arg2[%c2_20, %c0_21, %c0_22] : memref<3x5x16xf32, #tpu.memory_space<vmem>>, vector<1x5x16xf32>
    %18 = vector.shape_cast %17 : vector<1x5x16xf32> to vector<5x16xf32>
    %cst_23 = arith.constant dense<0.000000e+00> : vector<128x16xf32>
    %19 = tpu.matmul %16, %18, %cst_23 {dimension_numbers = #tpu.dot_dimension_numbers<[1], [0], [0], [1], [0, 0, 1, 1], [], []>} : vector<128x5xf32>, vector<5x16xf32>, vector<128x16xf32> -> vector<128x16xf32>
    %20 = arith.addf %14, %19 : vector<128x16xf32>
    %21 = vector.broadcast %0 : vector<1x16xf32> to vector<128x16xf32>
    %22 = arith.addf %20, %21 : vector<128x16xf32>
    %cst_24 = arith.constant 0.000000e+00 : f32
    %23 = vector.broadcast %cst_24 : f32 to vector<128x16xf32>
    %24 = arith.maximumf %22, %23 : vector<128x16xf32>
    %c0_25 = arith.constant 0 : index
    %c0_26 = arith.constant 0 : index
    %25 = vector.load %arg3[%c0_25, %c0_26] : memref<48x96xf32, #tpu.memory_space<vmem>>, vector<16x96xf32>
    %c16 = arith.constant 16 : index
    %c0_27 = arith.constant 0 : index
    %26 = vector.load %arg3[%c16, %c0_27] : memref<48x96xf32, #tpu.memory_space<vmem>>, vector<32x96xf32>
    %cst_28 = arith.constant dense<0.000000e+00> : vector<128x96xf32>
    %27 = tpu.matmul %24, %25, %cst_28 {dimension_numbers = #tpu.dot_dimension_numbers<[1], [0], [0], [1], [0, 0, 1, 1], [], []>} : vector<128x16xf32>, vector<16x96xf32>, vector<128x96xf32> -> vector<128x96xf32>
    %28 = vector.broadcast %1 : vector<1x96xf32> to vector<128x96xf32>
    %29 = arith.addf %27, %28 : vector<128x96xf32>
    %30 = vector.extract_strided_slice %29 {offsets = [0, 0], sizes = [128, 32], strides = [1, 1]} : vector<128x96xf32> to vector<128x32xf32>
    %31 = vector.shape_cast %30 : vector<128x32xf32> to vector<16x8x32xf32>
    %32 = vector.extract_strided_slice %29 {offsets = [0, 32], sizes = [128, 32], strides = [1, 1]} : vector<128x96xf32> to vector<128x32xf32>
    %33 = vector.shape_cast %32 : vector<128x32xf32> to vector<16x8x32xf32>
    %34 = vector.extract_strided_slice %29 {offsets = [0, 64], sizes = [128, 32], strides = [1, 1]} : vector<128x96xf32> to vector<128x32xf32>
    %35 = vector.shape_cast %34 : vector<128x32xf32> to vector<16x8x32xf32>
    %36 = vector.extract_strided_slice %31 {offsets = [0, 0, 0], sizes = [1, 8, 32], strides = [1, 1, 1]} : vector<16x8x32xf32> to vector<1x8x32xf32>
    %37 = vector.shape_cast %36 : vector<1x8x32xf32> to vector<8x32xf32>
    %cst_29 = arith.constant 5.000000e-01 : f32
    %38 = vector.broadcast %cst_29 : f32 to vector<8x32xf32>
    %39 = arith.mulf %38, %37 : vector<8x32xf32>
    %40 = math.tanh %39 : vector<8x32xf32>
    %cst_30 = arith.constant 1.000000e+00 : f32
    %41 = vector.broadcast %cst_30 : f32 to vector<8x32xf32>
    %42 = arith.addf %40, %41 : vector<8x32xf32>
    %cst_31 = arith.constant 5.000000e-01 : f32
    %43 = vector.broadcast %cst_31 : f32 to vector<8x32xf32>
    %44 = arith.mulf %43, %42 : vector<8x32xf32>
    %45 = vector.extract_strided_slice %33 {offsets = [0, 0, 0], sizes = [1, 8, 32], strides = [1, 1, 1]} : vector<16x8x32xf32> to vector<1x8x32xf32>
    %46 = vector.shape_cast %45 : vector<1x8x32xf32> to vector<8x32xf32>
    %cst_32 = arith.constant 5.000000e-01 : f32
    %47 = vector.broadcast %cst_32 : f32 to vector<8x32xf32>
    %48 = arith.mulf %47, %46 : vector<8x32xf32>
    %49 = math.tanh %48 : vector<8x32xf32>
    %cst_33 = arith.constant 1.000000e+00 : f32
    %50 = vector.broadcast %cst_33 : f32 to vector<8x32xf32>
    %51 = arith.addf %49, %50 : vector<8x32xf32>
    %cst_34 = arith.constant 5.000000e-01 : f32
    %52 = vector.broadcast %cst_34 : f32 to vector<8x32xf32>
    %53 = arith.mulf %52, %51 : vector<8x32xf32>
    %54 = vector.extract_strided_slice %35 {offsets = [0, 0, 0], sizes = [1, 8, 32], strides = [1, 1, 1]} : vector<16x8x32xf32> to vector<1x8x32xf32>
    %55 = vector.shape_cast %54 : vector<1x8x32xf32> to vector<8x32xf32>
    %56 = vector.broadcast %2 : vector<1x32xf32> to vector<8x32xf32>
    %57 = arith.mulf %44, %56 : vector<8x32xf32>
    %58 = arith.addf %55, %57 : vector<8x32xf32>
    %59 = math.tanh %58 : vector<8x32xf32>
    %cst_35 = arith.constant 1.000000e+00 : f32
    %60 = vector.broadcast %cst_35 : f32 to vector<8x32xf32>
    %61 = arith.subf %60, %53 : vector<8x32xf32>
    %62 = arith.mulf %61, %59 : vector<8x32xf32>
    %cst_36 = arith.constant dense<0.000000e+00> : vector<8x96xf32>
    %63 = tpu.matmul %62, %26, %cst_36 {dimension_numbers = #tpu.dot_dimension_numbers<[1], [0], [0], [1], [0, 0, 1, 1], [], []>} : vector<8x32xf32>, vector<32x96xf32>, vector<8x96xf32> -> vector<8x96xf32>
    %64 = vector.extract_strided_slice %31 {offsets = [1, 0, 0], sizes = [1, 8, 32], strides = [1, 1, 1]} : vector<16x8x32xf32> to vector<1x8x32xf32>
    %65 = vector.shape_cast %64 : vector<1x8x32xf32> to vector<8x32xf32>
    %66 = vector.extract_strided_slice %63 {offsets = [0, 0], sizes = [8, 32], strides = [1, 1]} : vector<8x96xf32> to vector<8x32xf32>
    %67 = arith.addf %65, %66 : vector<8x32xf32>
    %cst_37 = arith.constant 5.000000e-01 : f32
    %68 = vector.broadcast %cst_37 : f32 to vector<8x32xf32>
    %69 = arith.mulf %68, %67 : vector<8x32xf32>
    %70 = math.tanh %69 : vector<8x32xf32>
    %cst_38 = arith.constant 1.000000e+00 : f32
    %71 = vector.broadcast %cst_38 : f32 to vector<8x32xf32>
    %72 = arith.addf %70, %71 : vector<8x32xf32>
    %cst_39 = arith.constant 5.000000e-01 : f32
    %73 = vector.broadcast %cst_39 : f32 to vector<8x32xf32>
    %74 = arith.mulf %73, %72 : vector<8x32xf32>
    %75 = vector.extract_strided_slice %33 {offsets = [1, 0, 0], sizes = [1, 8, 32], strides = [1, 1, 1]} : vector<16x8x32xf32> to vector<1x8x32xf32>
    %76 = vector.shape_cast %75 : vector<1x8x32xf32> to vector<8x32xf32>
    %77 = vector.extract_strided_slice %63 {offsets = [0, 32], sizes = [8, 32], strides = [1, 1]} : vector<8x96xf32> to vector<8x32xf32>
    %78 = arith.addf %76, %77 : vector<8x32xf32>
    %cst_40 = arith.constant 5.000000e-01 : f32
    %79 = vector.broadcast %cst_40 : f32 to vector<8x32xf32>
    %80 = arith.mulf %79, %78 : vector<8x32xf32>
    %81 = math.tanh %80 : vector<8x32xf32>
    %cst_41 = arith.constant 1.000000e+00 : f32
    %82 = vector.broadcast %cst_41 : f32 to vector<8x32xf32>
    %83 = arith.addf %81, %82 : vector<8x32xf32>
    %cst_42 = arith.constant 5.000000e-01 : f32
    %84 = vector.broadcast %cst_42 : f32 to vector<8x32xf32>
    %85 = arith.mulf %84, %83 : vector<8x32xf32>
    %86 = vector.extract_strided_slice %35 {offsets = [1, 0, 0], sizes = [1, 8, 32], strides = [1, 1, 1]} : vector<16x8x32xf32> to vector<1x8x32xf32>
    %87 = vector.shape_cast %86 : vector<1x8x32xf32> to vector<8x32xf32>
    %88 = vector.extract_strided_slice %63 {offsets = [0, 64], sizes = [8, 32], strides = [1, 1]} : vector<8x96xf32> to vector<8x32xf32>
    %89 = vector.broadcast %2 : vector<1x32xf32> to vector<8x32xf32>
    %90 = arith.addf %88, %89 : vector<8x32xf32>
    %91 = arith.mulf %74, %90 : vector<8x32xf32>
    %92 = arith.addf %87, %91 : vector<8x32xf32>
    %93 = math.tanh %92 : vector<8x32xf32>
    %cst_43 = arith.constant 1.000000e+00 : f32
    %94 = vector.broadcast %cst_43 : f32 to vector<8x32xf32>
    %95 = arith.subf %94, %85 : vector<8x32xf32>
    %96 = arith.mulf %95, %93 : vector<8x32xf32>
    %97 = arith.mulf %85, %62 : vector<8x32xf32>
    %98 = arith.addf %96, %97 : vector<8x32xf32>
    %cst_44 = arith.constant dense<0.000000e+00> : vector<8x96xf32>
    %99 = tpu.matmul %98, %26, %cst_44 {dimension_numbers = #tpu.dot_dimension_numbers<[1], [0], [0], [1], [0, 0, 1, 1], [], []>} : vector<8x32xf32>, vector<32x96xf32>, vector<8x96xf32> -> vector<8x96xf32>
    %100 = vector.extract_strided_slice %31 {offsets = [2, 0, 0], sizes = [1, 8, 32], strides = [1, 1, 1]} : vector<16x8x32xf32> to vector<1x8x32xf32>
    %101 = vector.shape_cast %100 : vector<1x8x32xf32> to vector<8x32xf32>
    %102 = vector.extract_strided_slice %99 {offsets = [0, 0], sizes = [8, 32], strides = [1, 1]} : vector<8x96xf32> to vector<8x32xf32>
    %103 = arith.addf %101, %102 : vector<8x32xf32>
    %cst_45 = arith.constant 5.000000e-01 : f32
    %104 = vector.broadcast %cst_45 : f32 to vector<8x32xf32>
    %105 = arith.mulf %104, %103 : vector<8x32xf32>
    %106 = math.tanh %105 : vector<8x32xf32>
    %cst_46 = arith.constant 1.000000e+00 : f32
    %107 = vector.broadcast %cst_46 : f32 to vector<8x32xf32>
    %108 = arith.addf %106, %107 : vector<8x32xf32>
    %cst_47 = arith.constant 5.000000e-01 : f32
    %109 = vector.broadcast %cst_47 : f32 to vector<8x32xf32>
    %110 = arith.mulf %109, %108 : vector<8x32xf32>
    %111 = vector.extract_strided_slice %33 {offsets = [2, 0, 0], sizes = [1, 8, 32], strides = [1, 1, 1]} : vector<16x8x32xf32> to vector<1x8x32xf32>
    %112 = vector.shape_cast %111 : vector<1x8x32xf32> to vector<8x32xf32>
    %113 = vector.extract_strided_slice %99 {offsets = [0, 32], sizes = [8, 32], strides = [1, 1]} : vector<8x96xf32> to vector<8x32xf32>
    %114 = arith.addf %112, %113 : vector<8x32xf32>
    %cst_48 = arith.constant 5.000000e-01 : f32
    %115 = vector.broadcast %cst_48 : f32 to vector<8x32xf32>
    %116 = arith.mulf %115, %114 : vector<8x32xf32>
    %117 = math.tanh %116 : vector<8x32xf32>
    %cst_49 = arith.constant 1.000000e+00 : f32
    %118 = vector.broadcast %cst_49 : f32 to vector<8x32xf32>
    %119 = arith.addf %117, %118 : vector<8x32xf32>
    %cst_50 = arith.constant 5.000000e-01 : f32
    %120 = vector.broadcast %cst_50 : f32 to vector<8x32xf32>
    %121 = arith.mulf %120, %119 : vector<8x32xf32>
    %122 = vector.extract_strided_slice %35 {offsets = [2, 0, 0], sizes = [1, 8, 32], strides = [1, 1, 1]} : vector<16x8x32xf32> to vector<1x8x32xf32>
    %123 = vector.shape_cast %122 : vector<1x8x32xf32> to vector<8x32xf32>
    %124 = vector.extract_strided_slice %99 {offsets = [0, 64], sizes = [8, 32], strides = [1, 1]} : vector<8x96xf32> to vector<8x32xf32>
    %125 = vector.broadcast %2 : vector<1x32xf32> to vector<8x32xf32>
    %126 = arith.addf %124, %125 : vector<8x32xf32>
    %127 = arith.mulf %110, %126 : vector<8x32xf32>
    %128 = arith.addf %123, %127 : vector<8x32xf32>
    %129 = math.tanh %128 : vector<8x32xf32>
    %cst_51 = arith.constant 1.000000e+00 : f32
    %130 = vector.broadcast %cst_51 : f32 to vector<8x32xf32>
    %131 = arith.subf %130, %121 : vector<8x32xf32>
    %132 = arith.mulf %131, %129 : vector<8x32xf32>
    %133 = arith.mulf %121, %98 : vector<8x32xf32>
    %134 = arith.addf %132, %133 : vector<8x32xf32>
    %cst_52 = arith.constant dense<0.000000e+00> : vector<8x96xf32>
    %135 = tpu.matmul %134, %26, %cst_52 {dimension_numbers = #tpu.dot_dimension_numbers<[1], [0], [0], [1], [0, 0, 1, 1], [], []>} : vector<8x32xf32>, vector<32x96xf32>, vector<8x96xf32> -> vector<8x96xf32>
    %136 = vector.extract_strided_slice %31 {offsets = [3, 0, 0], sizes = [1, 8, 32], strides = [1, 1, 1]} : vector<16x8x32xf32> to vector<1x8x32xf32>
    %137 = vector.shape_cast %136 : vector<1x8x32xf32> to vector<8x32xf32>
    %138 = vector.extract_strided_slice %135 {offsets = [0, 0], sizes = [8, 32], strides = [1, 1]} : vector<8x96xf32> to vector<8x32xf32>
    %139 = arith.addf %137, %138 : vector<8x32xf32>
    %cst_53 = arith.constant 5.000000e-01 : f32
    %140 = vector.broadcast %cst_53 : f32 to vector<8x32xf32>
    %141 = arith.mulf %140, %139 : vector<8x32xf32>
    %142 = math.tanh %141 : vector<8x32xf32>
    %cst_54 = arith.constant 1.000000e+00 : f32
    %143 = vector.broadcast %cst_54 : f32 to vector<8x32xf32>
    %144 = arith.addf %142, %143 : vector<8x32xf32>
    %cst_55 = arith.constant 5.000000e-01 : f32
    %145 = vector.broadcast %cst_55 : f32 to vector<8x32xf32>
    %146 = arith.mulf %145, %144 : vector<8x32xf32>
    %147 = vector.extract_strided_slice %33 {offsets = [3, 0, 0], sizes = [1, 8, 32], strides = [1, 1, 1]} : vector<16x8x32xf32> to vector<1x8x32xf32>
    %148 = vector.shape_cast %147 : vector<1x8x32xf32> to vector<8x32xf32>
    %149 = vector.extract_strided_slice %135 {offsets = [0, 32], sizes = [8, 32], strides = [1, 1]} : vector<8x96xf32> to vector<8x32xf32>
    %150 = arith.addf %148, %149 : vector<8x32xf32>
    %cst_56 = arith.constant 5.000000e-01 : f32
    %151 = vector.broadcast %cst_56 : f32 to vector<8x32xf32>
    %152 = arith.mulf %151, %150 : vector<8x32xf32>
    %153 = math.tanh %152 : vector<8x32xf32>
    %cst_57 = arith.constant 1.000000e+00 : f32
    %154 = vector.broadcast %cst_57 : f32 to vector<8x32xf32>
    %155 = arith.addf %153, %154 : vector<8x32xf32>
    %cst_58 = arith.constant 5.000000e-01 : f32
    %156 = vector.broadcast %cst_58 : f32 to vector<8x32xf32>
    %157 = arith.mulf %156, %155 : vector<8x32xf32>
    %158 = vector.extract_strided_slice %35 {offsets = [3, 0, 0], sizes = [1, 8, 32], strides = [1, 1, 1]} : vector<16x8x32xf32> to vector<1x8x32xf32>
    %159 = vector.shape_cast %158 : vector<1x8x32xf32> to vector<8x32xf32>
    %160 = vector.extract_strided_slice %135 {offsets = [0, 64], sizes = [8, 32], strides = [1, 1]} : vector<8x96xf32> to vector<8x32xf32>
    %161 = vector.broadcast %2 : vector<1x32xf32> to vector<8x32xf32>
    %162 = arith.addf %160, %161 : vector<8x32xf32>
    %163 = arith.mulf %146, %162 : vector<8x32xf32>
    %164 = arith.addf %159, %163 : vector<8x32xf32>
    %165 = math.tanh %164 : vector<8x32xf32>
    %cst_59 = arith.constant 1.000000e+00 : f32
    %166 = vector.broadcast %cst_59 : f32 to vector<8x32xf32>
    %167 = arith.subf %166, %157 : vector<8x32xf32>
    %168 = arith.mulf %167, %165 : vector<8x32xf32>
    %169 = arith.mulf %157, %134 : vector<8x32xf32>
    %170 = arith.addf %168, %169 : vector<8x32xf32>
    %cst_60 = arith.constant dense<0.000000e+00> : vector<8x96xf32>
    %171 = tpu.matmul %170, %26, %cst_60 {dimension_numbers = #tpu.dot_dimension_numbers<[1], [0], [0], [1], [0, 0, 1, 1], [], []>} : vector<8x32xf32>, vector<32x96xf32>, vector<8x96xf32> -> vector<8x96xf32>
    %172 = vector.extract_strided_slice %31 {offsets = [4, 0, 0], sizes = [1, 8, 32], strides = [1, 1, 1]} : vector<16x8x32xf32> to vector<1x8x32xf32>
    %173 = vector.shape_cast %172 : vector<1x8x32xf32> to vector<8x32xf32>
    %174 = vector.extract_strided_slice %171 {offsets = [0, 0], sizes = [8, 32], strides = [1, 1]} : vector<8x96xf32> to vector<8x32xf32>
    %175 = arith.addf %173, %174 : vector<8x32xf32>
    %cst_61 = arith.constant 5.000000e-01 : f32
    %176 = vector.broadcast %cst_61 : f32 to vector<8x32xf32>
    %177 = arith.mulf %176, %175 : vector<8x32xf32>
    %178 = math.tanh %177 : vector<8x32xf32>
    %cst_62 = arith.constant 1.000000e+00 : f32
    %179 = vector.broadcast %cst_62 : f32 to vector<8x32xf32>
    %180 = arith.addf %178, %179 : vector<8x32xf32>
    %cst_63 = arith.constant 5.000000e-01 : f32
    %181 = vector.broadcast %cst_63 : f32 to vector<8x32xf32>
    %182 = arith.mulf %181, %180 : vector<8x32xf32>
    %183 = vector.extract_strided_slice %33 {offsets = [4, 0, 0], sizes = [1, 8, 32], strides = [1, 1, 1]} : vector<16x8x32xf32> to vector<1x8x32xf32>
    %184 = vector.shape_cast %183 : vector<1x8x32xf32> to vector<8x32xf32>
    %185 = vector.extract_strided_slice %171 {offsets = [0, 32], sizes = [8, 32], strides = [1, 1]} : vector<8x96xf32> to vector<8x32xf32>
    %186 = arith.addf %184, %185 : vector<8x32xf32>
    %cst_64 = arith.constant 5.000000e-01 : f32
    %187 = vector.broadcast %cst_64 : f32 to vector<8x32xf32>
    %188 = arith.mulf %187, %186 : vector<8x32xf32>
    %189 = math.tanh %188 : vector<8x32xf32>
    %cst_65 = arith.constant 1.000000e+00 : f32
    %190 = vector.broadcast %cst_65 : f32 to vector<8x32xf32>
    %191 = arith.addf %189, %190 : vector<8x32xf32>
    %cst_66 = arith.constant 5.000000e-01 : f32
    %192 = vector.broadcast %cst_66 : f32 to vector<8x32xf32>
    %193 = arith.mulf %192, %191 : vector<8x32xf32>
    %194 = vector.extract_strided_slice %35 {offsets = [4, 0, 0], sizes = [1, 8, 32], strides = [1, 1, 1]} : vector<16x8x32xf32> to vector<1x8x32xf32>
    %195 = vector.shape_cast %194 : vector<1x8x32xf32> to vector<8x32xf32>
    %196 = vector.extract_strided_slice %171 {offsets = [0, 64], sizes = [8, 32], strides = [1, 1]} : vector<8x96xf32> to vector<8x32xf32>
    %197 = vector.broadcast %2 : vector<1x32xf32> to vector<8x32xf32>
    %198 = arith.addf %196, %197 : vector<8x32xf32>
    %199 = arith.mulf %182, %198 : vector<8x32xf32>
    %200 = arith.addf %195, %199 : vector<8x32xf32>
    %201 = math.tanh %200 : vector<8x32xf32>
    %cst_67 = arith.constant 1.000000e+00 : f32
    %202 = vector.broadcast %cst_67 : f32 to vector<8x32xf32>
    %203 = arith.subf %202, %193 : vector<8x32xf32>
    %204 = arith.mulf %203, %201 : vector<8x32xf32>
    %205 = arith.mulf %193, %170 : vector<8x32xf32>
    %206 = arith.addf %204, %205 : vector<8x32xf32>
    %cst_68 = arith.constant dense<0.000000e+00> : vector<8x96xf32>
    %207 = tpu.matmul %206, %26, %cst_68 {dimension_numbers = #tpu.dot_dimension_numbers<[1], [0], [0], [1], [0, 0, 1, 1], [], []>} : vector<8x32xf32>, vector<32x96xf32>, vector<8x96xf32> -> vector<8x96xf32>
    %208 = vector.extract_strided_slice %31 {offsets = [5, 0, 0], sizes = [1, 8, 32], strides = [1, 1, 1]} : vector<16x8x32xf32> to vector<1x8x32xf32>
    %209 = vector.shape_cast %208 : vector<1x8x32xf32> to vector<8x32xf32>
    %210 = vector.extract_strided_slice %207 {offsets = [0, 0], sizes = [8, 32], strides = [1, 1]} : vector<8x96xf32> to vector<8x32xf32>
    %211 = arith.addf %209, %210 : vector<8x32xf32>
    %cst_69 = arith.constant 5.000000e-01 : f32
    %212 = vector.broadcast %cst_69 : f32 to vector<8x32xf32>
    %213 = arith.mulf %212, %211 : vector<8x32xf32>
    %214 = math.tanh %213 : vector<8x32xf32>
    %cst_70 = arith.constant 1.000000e+00 : f32
    %215 = vector.broadcast %cst_70 : f32 to vector<8x32xf32>
    %216 = arith.addf %214, %215 : vector<8x32xf32>
    %cst_71 = arith.constant 5.000000e-01 : f32
    %217 = vector.broadcast %cst_71 : f32 to vector<8x32xf32>
    %218 = arith.mulf %217, %216 : vector<8x32xf32>
    %219 = vector.extract_strided_slice %33 {offsets = [5, 0, 0], sizes = [1, 8, 32], strides = [1, 1, 1]} : vector<16x8x32xf32> to vector<1x8x32xf32>
    %220 = vector.shape_cast %219 : vector<1x8x32xf32> to vector<8x32xf32>
    %221 = vector.extract_strided_slice %207 {offsets = [0, 32], sizes = [8, 32], strides = [1, 1]} : vector<8x96xf32> to vector<8x32xf32>
    %222 = arith.addf %220, %221 : vector<8x32xf32>
    %cst_72 = arith.constant 5.000000e-01 : f32
    %223 = vector.broadcast %cst_72 : f32 to vector<8x32xf32>
    %224 = arith.mulf %223, %222 : vector<8x32xf32>
    %225 = math.tanh %224 : vector<8x32xf32>
    %cst_73 = arith.constant 1.000000e+00 : f32
    %226 = vector.broadcast %cst_73 : f32 to vector<8x32xf32>
    %227 = arith.addf %225, %226 : vector<8x32xf32>
    %cst_74 = arith.constant 5.000000e-01 : f32
    %228 = vector.broadcast %cst_74 : f32 to vector<8x32xf32>
    %229 = arith.mulf %228, %227 : vector<8x32xf32>
    %230 = vector.extract_strided_slice %35 {offsets = [5, 0, 0], sizes = [1, 8, 32], strides = [1, 1, 1]} : vector<16x8x32xf32> to vector<1x8x32xf32>
    %231 = vector.shape_cast %230 : vector<1x8x32xf32> to vector<8x32xf32>
    %232 = vector.extract_strided_slice %207 {offsets = [0, 64], sizes = [8, 32], strides = [1, 1]} : vector<8x96xf32> to vector<8x32xf32>
    %233 = vector.broadcast %2 : vector<1x32xf32> to vector<8x32xf32>
    %234 = arith.addf %232, %233 : vector<8x32xf32>
    %235 = arith.mulf %218, %234 : vector<8x32xf32>
    %236 = arith.addf %231, %235 : vector<8x32xf32>
    %237 = math.tanh %236 : vector<8x32xf32>
    %cst_75 = arith.constant 1.000000e+00 : f32
    %238 = vector.broadcast %cst_75 : f32 to vector<8x32xf32>
    %239 = arith.subf %238, %229 : vector<8x32xf32>
    %240 = arith.mulf %239, %237 : vector<8x32xf32>
    %241 = arith.mulf %229, %206 : vector<8x32xf32>
    %242 = arith.addf %240, %241 : vector<8x32xf32>
    %cst_76 = arith.constant dense<0.000000e+00> : vector<8x96xf32>
    %243 = tpu.matmul %242, %26, %cst_76 {dimension_numbers = #tpu.dot_dimension_numbers<[1], [0], [0], [1], [0, 0, 1, 1], [], []>} : vector<8x32xf32>, vector<32x96xf32>, vector<8x96xf32> -> vector<8x96xf32>
    %244 = vector.extract_strided_slice %31 {offsets = [6, 0, 0], sizes = [1, 8, 32], strides = [1, 1, 1]} : vector<16x8x32xf32> to vector<1x8x32xf32>
    %245 = vector.shape_cast %244 : vector<1x8x32xf32> to vector<8x32xf32>
    %246 = vector.extract_strided_slice %243 {offsets = [0, 0], sizes = [8, 32], strides = [1, 1]} : vector<8x96xf32> to vector<8x32xf32>
    %247 = arith.addf %245, %246 : vector<8x32xf32>
    %cst_77 = arith.constant 5.000000e-01 : f32
    %248 = vector.broadcast %cst_77 : f32 to vector<8x32xf32>
    %249 = arith.mulf %248, %247 : vector<8x32xf32>
    %250 = math.tanh %249 : vector<8x32xf32>
    %cst_78 = arith.constant 1.000000e+00 : f32
    %251 = vector.broadcast %cst_78 : f32 to vector<8x32xf32>
    %252 = arith.addf %250, %251 : vector<8x32xf32>
    %cst_79 = arith.constant 5.000000e-01 : f32
    %253 = vector.broadcast %cst_79 : f32 to vector<8x32xf32>
    %254 = arith.mulf %253, %252 : vector<8x32xf32>
    %255 = vector.extract_strided_slice %33 {offsets = [6, 0, 0], sizes = [1, 8, 32], strides = [1, 1, 1]} : vector<16x8x32xf32> to vector<1x8x32xf32>
    %256 = vector.shape_cast %255 : vector<1x8x32xf32> to vector<8x32xf32>
    %257 = vector.extract_strided_slice %243 {offsets = [0, 32], sizes = [8, 32], strides = [1, 1]} : vector<8x96xf32> to vector<8x32xf32>
    %258 = arith.addf %256, %257 : vector<8x32xf32>
    %cst_80 = arith.constant 5.000000e-01 : f32
    %259 = vector.broadcast %cst_80 : f32 to vector<8x32xf32>
    %260 = arith.mulf %259, %258 : vector<8x32xf32>
    %261 = math.tanh %260 : vector<8x32xf32>
    %cst_81 = arith.constant 1.000000e+00 : f32
    %262 = vector.broadcast %cst_81 : f32 to vector<8x32xf32>
    %263 = arith.addf %261, %262 : vector<8x32xf32>
    %cst_82 = arith.constant 5.000000e-01 : f32
    %264 = vector.broadcast %cst_82 : f32 to vector<8x32xf32>
    %265 = arith.mulf %264, %263 : vector<8x32xf32>
    %266 = vector.extract_strided_slice %35 {offsets = [6, 0, 0], sizes = [1, 8, 32], strides = [1, 1, 1]} : vector<16x8x32xf32> to vector<1x8x32xf32>
    %267 = vector.shape_cast %266 : vector<1x8x32xf32> to vector<8x32xf32>
    %268 = vector.extract_strided_slice %243 {offsets = [0, 64], sizes = [8, 32], strides = [1, 1]} : vector<8x96xf32> to vector<8x32xf32>
    %269 = vector.broadcast %2 : vector<1x32xf32> to vector<8x32xf32>
    %270 = arith.addf %268, %269 : vector<8x32xf32>
    %271 = arith.mulf %254, %270 : vector<8x32xf32>
    %272 = arith.addf %267, %271 : vector<8x32xf32>
    %273 = math.tanh %272 : vector<8x32xf32>
    %cst_83 = arith.constant 1.000000e+00 : f32
    %274 = vector.broadcast %cst_83 : f32 to vector<8x32xf32>
    %275 = arith.subf %274, %265 : vector<8x32xf32>
    %276 = arith.mulf %275, %273 : vector<8x32xf32>
    %277 = arith.mulf %265, %242 : vector<8x32xf32>
    %278 = arith.addf %276, %277 : vector<8x32xf32>
    %cst_84 = arith.constant dense<0.000000e+00> : vector<8x96xf32>
    %279 = tpu.matmul %278, %26, %cst_84 {dimension_numbers = #tpu.dot_dimension_numbers<[1], [0], [0], [1], [0, 0, 1, 1], [], []>} : vector<8x32xf32>, vector<32x96xf32>, vector<8x96xf32> -> vector<8x96xf32>
    %280 = vector.extract_strided_slice %31 {offsets = [7, 0, 0], sizes = [1, 8, 32], strides = [1, 1, 1]} : vector<16x8x32xf32> to vector<1x8x32xf32>
    %281 = vector.shape_cast %280 : vector<1x8x32xf32> to vector<8x32xf32>
    %282 = vector.extract_strided_slice %279 {offsets = [0, 0], sizes = [8, 32], strides = [1, 1]} : vector<8x96xf32> to vector<8x32xf32>
    %283 = arith.addf %281, %282 : vector<8x32xf32>
    %cst_85 = arith.constant 5.000000e-01 : f32
    %284 = vector.broadcast %cst_85 : f32 to vector<8x32xf32>
    %285 = arith.mulf %284, %283 : vector<8x32xf32>
    %286 = math.tanh %285 : vector<8x32xf32>
    %cst_86 = arith.constant 1.000000e+00 : f32
    %287 = vector.broadcast %cst_86 : f32 to vector<8x32xf32>
    %288 = arith.addf %286, %287 : vector<8x32xf32>
    %cst_87 = arith.constant 5.000000e-01 : f32
    %289 = vector.broadcast %cst_87 : f32 to vector<8x32xf32>
    %290 = arith.mulf %289, %288 : vector<8x32xf32>
    %291 = vector.extract_strided_slice %33 {offsets = [7, 0, 0], sizes = [1, 8, 32], strides = [1, 1, 1]} : vector<16x8x32xf32> to vector<1x8x32xf32>
    %292 = vector.shape_cast %291 : vector<1x8x32xf32> to vector<8x32xf32>
    %293 = vector.extract_strided_slice %279 {offsets = [0, 32], sizes = [8, 32], strides = [1, 1]} : vector<8x96xf32> to vector<8x32xf32>
    %294 = arith.addf %292, %293 : vector<8x32xf32>
    %cst_88 = arith.constant 5.000000e-01 : f32
    %295 = vector.broadcast %cst_88 : f32 to vector<8x32xf32>
    %296 = arith.mulf %295, %294 : vector<8x32xf32>
    %297 = math.tanh %296 : vector<8x32xf32>
    %cst_89 = arith.constant 1.000000e+00 : f32
    %298 = vector.broadcast %cst_89 : f32 to vector<8x32xf32>
    %299 = arith.addf %297, %298 : vector<8x32xf32>
    %cst_90 = arith.constant 5.000000e-01 : f32
    %300 = vector.broadcast %cst_90 : f32 to vector<8x32xf32>
    %301 = arith.mulf %300, %299 : vector<8x32xf32>
    %302 = vector.extract_strided_slice %35 {offsets = [7, 0, 0], sizes = [1, 8, 32], strides = [1, 1, 1]} : vector<16x8x32xf32> to vector<1x8x32xf32>
    %303 = vector.shape_cast %302 : vector<1x8x32xf32> to vector<8x32xf32>
    %304 = vector.extract_strided_slice %279 {offsets = [0, 64], sizes = [8, 32], strides = [1, 1]} : vector<8x96xf32> to vector<8x32xf32>
    %305 = vector.broadcast %2 : vector<1x32xf32> to vector<8x32xf32>
    %306 = arith.addf %304, %305 : vector<8x32xf32>
    %307 = arith.mulf %290, %306 : vector<8x32xf32>
    %308 = arith.addf %303, %307 : vector<8x32xf32>
    %309 = math.tanh %308 : vector<8x32xf32>
    %cst_91 = arith.constant 1.000000e+00 : f32
    %310 = vector.broadcast %cst_91 : f32 to vector<8x32xf32>
    %311 = arith.subf %310, %301 : vector<8x32xf32>
    %312 = arith.mulf %311, %309 : vector<8x32xf32>
    %313 = arith.mulf %301, %278 : vector<8x32xf32>
    %314 = arith.addf %312, %313 : vector<8x32xf32>
    %cst_92 = arith.constant dense<0.000000e+00> : vector<8x96xf32>
    %315 = tpu.matmul %314, %26, %cst_92 {dimension_numbers = #tpu.dot_dimension_numbers<[1], [0], [0], [1], [0, 0, 1, 1], [], []>} : vector<8x32xf32>, vector<32x96xf32>, vector<8x96xf32> -> vector<8x96xf32>
    %316 = vector.extract_strided_slice %31 {offsets = [8, 0, 0], sizes = [1, 8, 32], strides = [1, 1, 1]} : vector<16x8x32xf32> to vector<1x8x32xf32>
    %317 = vector.shape_cast %316 : vector<1x8x32xf32> to vector<8x32xf32>
    %318 = vector.extract_strided_slice %315 {offsets = [0, 0], sizes = [8, 32], strides = [1, 1]} : vector<8x96xf32> to vector<8x32xf32>
    %319 = arith.addf %317, %318 : vector<8x32xf32>
    %cst_93 = arith.constant 5.000000e-01 : f32
    %320 = vector.broadcast %cst_93 : f32 to vector<8x32xf32>
    %321 = arith.mulf %320, %319 : vector<8x32xf32>
    %322 = math.tanh %321 : vector<8x32xf32>
    %cst_94 = arith.constant 1.000000e+00 : f32
    %323 = vector.broadcast %cst_94 : f32 to vector<8x32xf32>
    %324 = arith.addf %322, %323 : vector<8x32xf32>
    %cst_95 = arith.constant 5.000000e-01 : f32
    %325 = vector.broadcast %cst_95 : f32 to vector<8x32xf32>
    %326 = arith.mulf %325, %324 : vector<8x32xf32>
    %327 = vector.extract_strided_slice %33 {offsets = [8, 0, 0], sizes = [1, 8, 32], strides = [1, 1, 1]} : vector<16x8x32xf32> to vector<1x8x32xf32>
    %328 = vector.shape_cast %327 : vector<1x8x32xf32> to vector<8x32xf32>
    %329 = vector.extract_strided_slice %315 {offsets = [0, 32], sizes = [8, 32], strides = [1, 1]} : vector<8x96xf32> to vector<8x32xf32>
    %330 = arith.addf %328, %329 : vector<8x32xf32>
    %cst_96 = arith.constant 5.000000e-01 : f32
    %331 = vector.broadcast %cst_96 : f32 to vector<8x32xf32>
    %332 = arith.mulf %331, %330 : vector<8x32xf32>
    %333 = math.tanh %332 : vector<8x32xf32>
    %cst_97 = arith.constant 1.000000e+00 : f32
    %334 = vector.broadcast %cst_97 : f32 to vector<8x32xf32>
    %335 = arith.addf %333, %334 : vector<8x32xf32>
    %cst_98 = arith.constant 5.000000e-01 : f32
    %336 = vector.broadcast %cst_98 : f32 to vector<8x32xf32>
    %337 = arith.mulf %336, %335 : vector<8x32xf32>
    %338 = vector.extract_strided_slice %35 {offsets = [8, 0, 0], sizes = [1, 8, 32], strides = [1, 1, 1]} : vector<16x8x32xf32> to vector<1x8x32xf32>
    %339 = vector.shape_cast %338 : vector<1x8x32xf32> to vector<8x32xf32>
    %340 = vector.extract_strided_slice %315 {offsets = [0, 64], sizes = [8, 32], strides = [1, 1]} : vector<8x96xf32> to vector<8x32xf32>
    %341 = vector.broadcast %2 : vector<1x32xf32> to vector<8x32xf32>
    %342 = arith.addf %340, %341 : vector<8x32xf32>
    %343 = arith.mulf %326, %342 : vector<8x32xf32>
    %344 = arith.addf %339, %343 : vector<8x32xf32>
    %345 = math.tanh %344 : vector<8x32xf32>
    %cst_99 = arith.constant 1.000000e+00 : f32
    %346 = vector.broadcast %cst_99 : f32 to vector<8x32xf32>
    %347 = arith.subf %346, %337 : vector<8x32xf32>
    %348 = arith.mulf %347, %345 : vector<8x32xf32>
    %349 = arith.mulf %337, %314 : vector<8x32xf32>
    %350 = arith.addf %348, %349 : vector<8x32xf32>
    %cst_100 = arith.constant dense<0.000000e+00> : vector<8x96xf32>
    %351 = tpu.matmul %350, %26, %cst_100 {dimension_numbers = #tpu.dot_dimension_numbers<[1], [0], [0], [1], [0, 0, 1, 1], [], []>} : vector<8x32xf32>, vector<32x96xf32>, vector<8x96xf32> -> vector<8x96xf32>
    %352 = vector.extract_strided_slice %31 {offsets = [9, 0, 0], sizes = [1, 8, 32], strides = [1, 1, 1]} : vector<16x8x32xf32> to vector<1x8x32xf32>
    %353 = vector.shape_cast %352 : vector<1x8x32xf32> to vector<8x32xf32>
    %354 = vector.extract_strided_slice %351 {offsets = [0, 0], sizes = [8, 32], strides = [1, 1]} : vector<8x96xf32> to vector<8x32xf32>
    %355 = arith.addf %353, %354 : vector<8x32xf32>
    %cst_101 = arith.constant 5.000000e-01 : f32
    %356 = vector.broadcast %cst_101 : f32 to vector<8x32xf32>
    %357 = arith.mulf %356, %355 : vector<8x32xf32>
    %358 = math.tanh %357 : vector<8x32xf32>
    %cst_102 = arith.constant 1.000000e+00 : f32
    %359 = vector.broadcast %cst_102 : f32 to vector<8x32xf32>
    %360 = arith.addf %358, %359 : vector<8x32xf32>
    %cst_103 = arith.constant 5.000000e-01 : f32
    %361 = vector.broadcast %cst_103 : f32 to vector<8x32xf32>
    %362 = arith.mulf %361, %360 : vector<8x32xf32>
    %363 = vector.extract_strided_slice %33 {offsets = [9, 0, 0], sizes = [1, 8, 32], strides = [1, 1, 1]} : vector<16x8x32xf32> to vector<1x8x32xf32>
    %364 = vector.shape_cast %363 : vector<1x8x32xf32> to vector<8x32xf32>
    %365 = vector.extract_strided_slice %351 {offsets = [0, 32], sizes = [8, 32], strides = [1, 1]} : vector<8x96xf32> to vector<8x32xf32>
    %366 = arith.addf %364, %365 : vector<8x32xf32>
    %cst_104 = arith.constant 5.000000e-01 : f32
    %367 = vector.broadcast %cst_104 : f32 to vector<8x32xf32>
    %368 = arith.mulf %367, %366 : vector<8x32xf32>
    %369 = math.tanh %368 : vector<8x32xf32>
    %cst_105 = arith.constant 1.000000e+00 : f32
    %370 = vector.broadcast %cst_105 : f32 to vector<8x32xf32>
    %371 = arith.addf %369, %370 : vector<8x32xf32>
    %cst_106 = arith.constant 5.000000e-01 : f32
    %372 = vector.broadcast %cst_106 : f32 to vector<8x32xf32>
    %373 = arith.mulf %372, %371 : vector<8x32xf32>
    %374 = vector.extract_strided_slice %35 {offsets = [9, 0, 0], sizes = [1, 8, 32], strides = [1, 1, 1]} : vector<16x8x32xf32> to vector<1x8x32xf32>
    %375 = vector.shape_cast %374 : vector<1x8x32xf32> to vector<8x32xf32>
    %376 = vector.extract_strided_slice %351 {offsets = [0, 64], sizes = [8, 32], strides = [1, 1]} : vector<8x96xf32> to vector<8x32xf32>
    %377 = vector.broadcast %2 : vector<1x32xf32> to vector<8x32xf32>
    %378 = arith.addf %376, %377 : vector<8x32xf32>
    %379 = arith.mulf %362, %378 : vector<8x32xf32>
    %380 = arith.addf %375, %379 : vector<8x32xf32>
    %381 = math.tanh %380 : vector<8x32xf32>
    %cst_107 = arith.constant 1.000000e+00 : f32
    %382 = vector.broadcast %cst_107 : f32 to vector<8x32xf32>
    %383 = arith.subf %382, %373 : vector<8x32xf32>
    %384 = arith.mulf %383, %381 : vector<8x32xf32>
    %385 = arith.mulf %373, %350 : vector<8x32xf32>
    %386 = arith.addf %384, %385 : vector<8x32xf32>
    %cst_108 = arith.constant dense<0.000000e+00> : vector<8x96xf32>
    %387 = tpu.matmul %386, %26, %cst_108 {dimension_numbers = #tpu.dot_dimension_numbers<[1], [0], [0], [1], [0, 0, 1, 1], [], []>} : vector<8x32xf32>, vector<32x96xf32>, vector<8x96xf32> -> vector<8x96xf32>
    %388 = vector.extract_strided_slice %31 {offsets = [10, 0, 0], sizes = [1, 8, 32], strides = [1, 1, 1]} : vector<16x8x32xf32> to vector<1x8x32xf32>
    %389 = vector.shape_cast %388 : vector<1x8x32xf32> to vector<8x32xf32>
    %390 = vector.extract_strided_slice %387 {offsets = [0, 0], sizes = [8, 32], strides = [1, 1]} : vector<8x96xf32> to vector<8x32xf32>
    %391 = arith.addf %389, %390 : vector<8x32xf32>
    %cst_109 = arith.constant 5.000000e-01 : f32
    %392 = vector.broadcast %cst_109 : f32 to vector<8x32xf32>
    %393 = arith.mulf %392, %391 : vector<8x32xf32>
    %394 = math.tanh %393 : vector<8x32xf32>
    %cst_110 = arith.constant 1.000000e+00 : f32
    %395 = vector.broadcast %cst_110 : f32 to vector<8x32xf32>
    %396 = arith.addf %394, %395 : vector<8x32xf32>
    %cst_111 = arith.constant 5.000000e-01 : f32
    %397 = vector.broadcast %cst_111 : f32 to vector<8x32xf32>
    %398 = arith.mulf %397, %396 : vector<8x32xf32>
    %399 = vector.extract_strided_slice %33 {offsets = [10, 0, 0], sizes = [1, 8, 32], strides = [1, 1, 1]} : vector<16x8x32xf32> to vector<1x8x32xf32>
    %400 = vector.shape_cast %399 : vector<1x8x32xf32> to vector<8x32xf32>
    %401 = vector.extract_strided_slice %387 {offsets = [0, 32], sizes = [8, 32], strides = [1, 1]} : vector<8x96xf32> to vector<8x32xf32>
    %402 = arith.addf %400, %401 : vector<8x32xf32>
    %cst_112 = arith.constant 5.000000e-01 : f32
    %403 = vector.broadcast %cst_112 : f32 to vector<8x32xf32>
    %404 = arith.mulf %403, %402 : vector<8x32xf32>
    %405 = math.tanh %404 : vector<8x32xf32>
    %cst_113 = arith.constant 1.000000e+00 : f32
    %406 = vector.broadcast %cst_113 : f32 to vector<8x32xf32>
    %407 = arith.addf %405, %406 : vector<8x32xf32>
    %cst_114 = arith.constant 5.000000e-01 : f32
    %408 = vector.broadcast %cst_114 : f32 to vector<8x32xf32>
    %409 = arith.mulf %408, %407 : vector<8x32xf32>
    %410 = vector.extract_strided_slice %35 {offsets = [10, 0, 0], sizes = [1, 8, 32], strides = [1, 1, 1]} : vector<16x8x32xf32> to vector<1x8x32xf32>
    %411 = vector.shape_cast %410 : vector<1x8x32xf32> to vector<8x32xf32>
    %412 = vector.extract_strided_slice %387 {offsets = [0, 64], sizes = [8, 32], strides = [1, 1]} : vector<8x96xf32> to vector<8x32xf32>
    %413 = vector.broadcast %2 : vector<1x32xf32> to vector<8x32xf32>
    %414 = arith.addf %412, %413 : vector<8x32xf32>
    %415 = arith.mulf %398, %414 : vector<8x32xf32>
    %416 = arith.addf %411, %415 : vector<8x32xf32>
    %417 = math.tanh %416 : vector<8x32xf32>
    %cst_115 = arith.constant 1.000000e+00 : f32
    %418 = vector.broadcast %cst_115 : f32 to vector<8x32xf32>
    %419 = arith.subf %418, %409 : vector<8x32xf32>
    %420 = arith.mulf %419, %417 : vector<8x32xf32>
    %421 = arith.mulf %409, %386 : vector<8x32xf32>
    %422 = arith.addf %420, %421 : vector<8x32xf32>
    %cst_116 = arith.constant dense<0.000000e+00> : vector<8x96xf32>
    %423 = tpu.matmul %422, %26, %cst_116 {dimension_numbers = #tpu.dot_dimension_numbers<[1], [0], [0], [1], [0, 0, 1, 1], [], []>} : vector<8x32xf32>, vector<32x96xf32>, vector<8x96xf32> -> vector<8x96xf32>
    %424 = vector.extract_strided_slice %31 {offsets = [11, 0, 0], sizes = [1, 8, 32], strides = [1, 1, 1]} : vector<16x8x32xf32> to vector<1x8x32xf32>
    %425 = vector.shape_cast %424 : vector<1x8x32xf32> to vector<8x32xf32>
    %426 = vector.extract_strided_slice %423 {offsets = [0, 0], sizes = [8, 32], strides = [1, 1]} : vector<8x96xf32> to vector<8x32xf32>
    %427 = arith.addf %425, %426 : vector<8x32xf32>
    %cst_117 = arith.constant 5.000000e-01 : f32
    %428 = vector.broadcast %cst_117 : f32 to vector<8x32xf32>
    %429 = arith.mulf %428, %427 : vector<8x32xf32>
    %430 = math.tanh %429 : vector<8x32xf32>
    %cst_118 = arith.constant 1.000000e+00 : f32
    %431 = vector.broadcast %cst_118 : f32 to vector<8x32xf32>
    %432 = arith.addf %430, %431 : vector<8x32xf32>
    %cst_119 = arith.constant 5.000000e-01 : f32
    %433 = vector.broadcast %cst_119 : f32 to vector<8x32xf32>
    %434 = arith.mulf %433, %432 : vector<8x32xf32>
    %435 = vector.extract_strided_slice %33 {offsets = [11, 0, 0], sizes = [1, 8, 32], strides = [1, 1, 1]} : vector<16x8x32xf32> to vector<1x8x32xf32>
    %436 = vector.shape_cast %435 : vector<1x8x32xf32> to vector<8x32xf32>
    %437 = vector.extract_strided_slice %423 {offsets = [0, 32], sizes = [8, 32], strides = [1, 1]} : vector<8x96xf32> to vector<8x32xf32>
    %438 = arith.addf %436, %437 : vector<8x32xf32>
    %cst_120 = arith.constant 5.000000e-01 : f32
    %439 = vector.broadcast %cst_120 : f32 to vector<8x32xf32>
    %440 = arith.mulf %439, %438 : vector<8x32xf32>
    %441 = math.tanh %440 : vector<8x32xf32>
    %cst_121 = arith.constant 1.000000e+00 : f32
    %442 = vector.broadcast %cst_121 : f32 to vector<8x32xf32>
    %443 = arith.addf %441, %442 : vector<8x32xf32>
    %cst_122 = arith.constant 5.000000e-01 : f32
    %444 = vector.broadcast %cst_122 : f32 to vector<8x32xf32>
    %445 = arith.mulf %444, %443 : vector<8x32xf32>
    %446 = vector.extract_strided_slice %35 {offsets = [11, 0, 0], sizes = [1, 8, 32], strides = [1, 1, 1]} : vector<16x8x32xf32> to vector<1x8x32xf32>
    %447 = vector.shape_cast %446 : vector<1x8x32xf32> to vector<8x32xf32>
    %448 = vector.extract_strided_slice %423 {offsets = [0, 64], sizes = [8, 32], strides = [1, 1]} : vector<8x96xf32> to vector<8x32xf32>
    %449 = vector.broadcast %2 : vector<1x32xf32> to vector<8x32xf32>
    %450 = arith.addf %448, %449 : vector<8x32xf32>
    %451 = arith.mulf %434, %450 : vector<8x32xf32>
    %452 = arith.addf %447, %451 : vector<8x32xf32>
    %453 = math.tanh %452 : vector<8x32xf32>
    %cst_123 = arith.constant 1.000000e+00 : f32
    %454 = vector.broadcast %cst_123 : f32 to vector<8x32xf32>
    %455 = arith.subf %454, %445 : vector<8x32xf32>
    %456 = arith.mulf %455, %453 : vector<8x32xf32>
    %457 = arith.mulf %445, %422 : vector<8x32xf32>
    %458 = arith.addf %456, %457 : vector<8x32xf32>
    %cst_124 = arith.constant dense<0.000000e+00> : vector<8x96xf32>
    %459 = tpu.matmul %458, %26, %cst_124 {dimension_numbers = #tpu.dot_dimension_numbers<[1], [0], [0], [1], [0, 0, 1, 1], [], []>} : vector<8x32xf32>, vector<32x96xf32>, vector<8x96xf32> -> vector<8x96xf32>
    %460 = vector.extract_strided_slice %31 {offsets = [12, 0, 0], sizes = [1, 8, 32], strides = [1, 1, 1]} : vector<16x8x32xf32> to vector<1x8x32xf32>
    %461 = vector.shape_cast %460 : vector<1x8x32xf32> to vector<8x32xf32>
    %462 = vector.extract_strided_slice %459 {offsets = [0, 0], sizes = [8, 32], strides = [1, 1]} : vector<8x96xf32> to vector<8x32xf32>
    %463 = arith.addf %461, %462 : vector<8x32xf32>
    %cst_125 = arith.constant 5.000000e-01 : f32
    %464 = vector.broadcast %cst_125 : f32 to vector<8x32xf32>
    %465 = arith.mulf %464, %463 : vector<8x32xf32>
    %466 = math.tanh %465 : vector<8x32xf32>
    %cst_126 = arith.constant 1.000000e+00 : f32
    %467 = vector.broadcast %cst_126 : f32 to vector<8x32xf32>
    %468 = arith.addf %466, %467 : vector<8x32xf32>
    %cst_127 = arith.constant 5.000000e-01 : f32
    %469 = vector.broadcast %cst_127 : f32 to vector<8x32xf32>
    %470 = arith.mulf %469, %468 : vector<8x32xf32>
    %471 = vector.extract_strided_slice %33 {offsets = [12, 0, 0], sizes = [1, 8, 32], strides = [1, 1, 1]} : vector<16x8x32xf32> to vector<1x8x32xf32>
    %472 = vector.shape_cast %471 : vector<1x8x32xf32> to vector<8x32xf32>
    %473 = vector.extract_strided_slice %459 {offsets = [0, 32], sizes = [8, 32], strides = [1, 1]} : vector<8x96xf32> to vector<8x32xf32>
    %474 = arith.addf %472, %473 : vector<8x32xf32>
    %cst_128 = arith.constant 5.000000e-01 : f32
    %475 = vector.broadcast %cst_128 : f32 to vector<8x32xf32>
    %476 = arith.mulf %475, %474 : vector<8x32xf32>
    %477 = math.tanh %476 : vector<8x32xf32>
    %cst_129 = arith.constant 1.000000e+00 : f32
    %478 = vector.broadcast %cst_129 : f32 to vector<8x32xf32>
    %479 = arith.addf %477, %478 : vector<8x32xf32>
    %cst_130 = arith.constant 5.000000e-01 : f32
    %480 = vector.broadcast %cst_130 : f32 to vector<8x32xf32>
    %481 = arith.mulf %480, %479 : vector<8x32xf32>
    %482 = vector.extract_strided_slice %35 {offsets = [12, 0, 0], sizes = [1, 8, 32], strides = [1, 1, 1]} : vector<16x8x32xf32> to vector<1x8x32xf32>
    %483 = vector.shape_cast %482 : vector<1x8x32xf32> to vector<8x32xf32>
    %484 = vector.extract_strided_slice %459 {offsets = [0, 64], sizes = [8, 32], strides = [1, 1]} : vector<8x96xf32> to vector<8x32xf32>
    %485 = vector.broadcast %2 : vector<1x32xf32> to vector<8x32xf32>
    %486 = arith.addf %484, %485 : vector<8x32xf32>
    %487 = arith.mulf %470, %486 : vector<8x32xf32>
    %488 = arith.addf %483, %487 : vector<8x32xf32>
    %489 = math.tanh %488 : vector<8x32xf32>
    %cst_131 = arith.constant 1.000000e+00 : f32
    %490 = vector.broadcast %cst_131 : f32 to vector<8x32xf32>
    %491 = arith.subf %490, %481 : vector<8x32xf32>
    %492 = arith.mulf %491, %489 : vector<8x32xf32>
    %493 = arith.mulf %481, %458 : vector<8x32xf32>
    %494 = arith.addf %492, %493 : vector<8x32xf32>
    %cst_132 = arith.constant dense<0.000000e+00> : vector<8x96xf32>
    %495 = tpu.matmul %494, %26, %cst_132 {dimension_numbers = #tpu.dot_dimension_numbers<[1], [0], [0], [1], [0, 0, 1, 1], [], []>} : vector<8x32xf32>, vector<32x96xf32>, vector<8x96xf32> -> vector<8x96xf32>
    %496 = vector.extract_strided_slice %31 {offsets = [13, 0, 0], sizes = [1, 8, 32], strides = [1, 1, 1]} : vector<16x8x32xf32> to vector<1x8x32xf32>
    %497 = vector.shape_cast %496 : vector<1x8x32xf32> to vector<8x32xf32>
    %498 = vector.extract_strided_slice %495 {offsets = [0, 0], sizes = [8, 32], strides = [1, 1]} : vector<8x96xf32> to vector<8x32xf32>
    %499 = arith.addf %497, %498 : vector<8x32xf32>
    %cst_133 = arith.constant 5.000000e-01 : f32
    %500 = vector.broadcast %cst_133 : f32 to vector<8x32xf32>
    %501 = arith.mulf %500, %499 : vector<8x32xf32>
    %502 = math.tanh %501 : vector<8x32xf32>
    %cst_134 = arith.constant 1.000000e+00 : f32
    %503 = vector.broadcast %cst_134 : f32 to vector<8x32xf32>
    %504 = arith.addf %502, %503 : vector<8x32xf32>
    %cst_135 = arith.constant 5.000000e-01 : f32
    %505 = vector.broadcast %cst_135 : f32 to vector<8x32xf32>
    %506 = arith.mulf %505, %504 : vector<8x32xf32>
    %507 = vector.extract_strided_slice %33 {offsets = [13, 0, 0], sizes = [1, 8, 32], strides = [1, 1, 1]} : vector<16x8x32xf32> to vector<1x8x32xf32>
    %508 = vector.shape_cast %507 : vector<1x8x32xf32> to vector<8x32xf32>
    %509 = vector.extract_strided_slice %495 {offsets = [0, 32], sizes = [8, 32], strides = [1, 1]} : vector<8x96xf32> to vector<8x32xf32>
    %510 = arith.addf %508, %509 : vector<8x32xf32>
    %cst_136 = arith.constant 5.000000e-01 : f32
    %511 = vector.broadcast %cst_136 : f32 to vector<8x32xf32>
    %512 = arith.mulf %511, %510 : vector<8x32xf32>
    %513 = math.tanh %512 : vector<8x32xf32>
    %cst_137 = arith.constant 1.000000e+00 : f32
    %514 = vector.broadcast %cst_137 : f32 to vector<8x32xf32>
    %515 = arith.addf %513, %514 : vector<8x32xf32>
    %cst_138 = arith.constant 5.000000e-01 : f32
    %516 = vector.broadcast %cst_138 : f32 to vector<8x32xf32>
    %517 = arith.mulf %516, %515 : vector<8x32xf32>
    %518 = vector.extract_strided_slice %35 {offsets = [13, 0, 0], sizes = [1, 8, 32], strides = [1, 1, 1]} : vector<16x8x32xf32> to vector<1x8x32xf32>
    %519 = vector.shape_cast %518 : vector<1x8x32xf32> to vector<8x32xf32>
    %520 = vector.extract_strided_slice %495 {offsets = [0, 64], sizes = [8, 32], strides = [1, 1]} : vector<8x96xf32> to vector<8x32xf32>
    %521 = vector.broadcast %2 : vector<1x32xf32> to vector<8x32xf32>
    %522 = arith.addf %520, %521 : vector<8x32xf32>
    %523 = arith.mulf %506, %522 : vector<8x32xf32>
    %524 = arith.addf %519, %523 : vector<8x32xf32>
    %525 = math.tanh %524 : vector<8x32xf32>
    %cst_139 = arith.constant 1.000000e+00 : f32
    %526 = vector.broadcast %cst_139 : f32 to vector<8x32xf32>
    %527 = arith.subf %526, %517 : vector<8x32xf32>
    %528 = arith.mulf %527, %525 : vector<8x32xf32>
    %529 = arith.mulf %517, %494 : vector<8x32xf32>
    %530 = arith.addf %528, %529 : vector<8x32xf32>
    %cst_140 = arith.constant dense<0.000000e+00> : vector<8x96xf32>
    %531 = tpu.matmul %530, %26, %cst_140 {dimension_numbers = #tpu.dot_dimension_numbers<[1], [0], [0], [1], [0, 0, 1, 1], [], []>} : vector<8x32xf32>, vector<32x96xf32>, vector<8x96xf32> -> vector<8x96xf32>
    %532 = vector.extract_strided_slice %31 {offsets = [14, 0, 0], sizes = [1, 8, 32], strides = [1, 1, 1]} : vector<16x8x32xf32> to vector<1x8x32xf32>
    %533 = vector.shape_cast %532 : vector<1x8x32xf32> to vector<8x32xf32>
    %534 = vector.extract_strided_slice %531 {offsets = [0, 0], sizes = [8, 32], strides = [1, 1]} : vector<8x96xf32> to vector<8x32xf32>
    %535 = arith.addf %533, %534 : vector<8x32xf32>
    %cst_141 = arith.constant 5.000000e-01 : f32
    %536 = vector.broadcast %cst_141 : f32 to vector<8x32xf32>
    %537 = arith.mulf %536, %535 : vector<8x32xf32>
    %538 = math.tanh %537 : vector<8x32xf32>
    %cst_142 = arith.constant 1.000000e+00 : f32
    %539 = vector.broadcast %cst_142 : f32 to vector<8x32xf32>
    %540 = arith.addf %538, %539 : vector<8x32xf32>
    %cst_143 = arith.constant 5.000000e-01 : f32
    %541 = vector.broadcast %cst_143 : f32 to vector<8x32xf32>
    %542 = arith.mulf %541, %540 : vector<8x32xf32>
    %543 = vector.extract_strided_slice %33 {offsets = [14, 0, 0], sizes = [1, 8, 32], strides = [1, 1, 1]} : vector<16x8x32xf32> to vector<1x8x32xf32>
    %544 = vector.shape_cast %543 : vector<1x8x32xf32> to vector<8x32xf32>
    %545 = vector.extract_strided_slice %531 {offsets = [0, 32], sizes = [8, 32], strides = [1, 1]} : vector<8x96xf32> to vector<8x32xf32>
    %546 = arith.addf %544, %545 : vector<8x32xf32>
    %cst_144 = arith.constant 5.000000e-01 : f32
    %547 = vector.broadcast %cst_144 : f32 to vector<8x32xf32>
    %548 = arith.mulf %547, %546 : vector<8x32xf32>
    %549 = math.tanh %548 : vector<8x32xf32>
    %cst_145 = arith.constant 1.000000e+00 : f32
    %550 = vector.broadcast %cst_145 : f32 to vector<8x32xf32>
    %551 = arith.addf %549, %550 : vector<8x32xf32>
    %cst_146 = arith.constant 5.000000e-01 : f32
    %552 = vector.broadcast %cst_146 : f32 to vector<8x32xf32>
    %553 = arith.mulf %552, %551 : vector<8x32xf32>
    %554 = vector.extract_strided_slice %35 {offsets = [14, 0, 0], sizes = [1, 8, 32], strides = [1, 1, 1]} : vector<16x8x32xf32> to vector<1x8x32xf32>
    %555 = vector.shape_cast %554 : vector<1x8x32xf32> to vector<8x32xf32>
    %556 = vector.extract_strided_slice %531 {offsets = [0, 64], sizes = [8, 32], strides = [1, 1]} : vector<8x96xf32> to vector<8x32xf32>
    %557 = vector.broadcast %2 : vector<1x32xf32> to vector<8x32xf32>
    %558 = arith.addf %556, %557 : vector<8x32xf32>
    %559 = arith.mulf %542, %558 : vector<8x32xf32>
    %560 = arith.addf %555, %559 : vector<8x32xf32>
    %561 = math.tanh %560 : vector<8x32xf32>
    %cst_147 = arith.constant 1.000000e+00 : f32
    %562 = vector.broadcast %cst_147 : f32 to vector<8x32xf32>
    %563 = arith.subf %562, %553 : vector<8x32xf32>
    %564 = arith.mulf %563, %561 : vector<8x32xf32>
    %565 = arith.mulf %553, %530 : vector<8x32xf32>
    %566 = arith.addf %564, %565 : vector<8x32xf32>
    %cst_148 = arith.constant dense<0.000000e+00> : vector<8x96xf32>
    %567 = tpu.matmul %566, %26, %cst_148 {dimension_numbers = #tpu.dot_dimension_numbers<[1], [0], [0], [1], [0, 0, 1, 1], [], []>} : vector<8x32xf32>, vector<32x96xf32>, vector<8x96xf32> -> vector<8x96xf32>
    %568 = vector.extract_strided_slice %31 {offsets = [15, 0, 0], sizes = [1, 8, 32], strides = [1, 1, 1]} : vector<16x8x32xf32> to vector<1x8x32xf32>
    %569 = vector.shape_cast %568 : vector<1x8x32xf32> to vector<8x32xf32>
    %570 = vector.extract_strided_slice %567 {offsets = [0, 0], sizes = [8, 32], strides = [1, 1]} : vector<8x96xf32> to vector<8x32xf32>
    %571 = arith.addf %569, %570 : vector<8x32xf32>
    %cst_149 = arith.constant 5.000000e-01 : f32
    %572 = vector.broadcast %cst_149 : f32 to vector<8x32xf32>
    %573 = arith.mulf %572, %571 : vector<8x32xf32>
    %574 = math.tanh %573 : vector<8x32xf32>
    %cst_150 = arith.constant 1.000000e+00 : f32
    %575 = vector.broadcast %cst_150 : f32 to vector<8x32xf32>
    %576 = arith.addf %574, %575 : vector<8x32xf32>
    %cst_151 = arith.constant 5.000000e-01 : f32
    %577 = vector.broadcast %cst_151 : f32 to vector<8x32xf32>
    %578 = arith.mulf %577, %576 : vector<8x32xf32>
    %579 = vector.extract_strided_slice %33 {offsets = [15, 0, 0], sizes = [1, 8, 32], strides = [1, 1, 1]} : vector<16x8x32xf32> to vector<1x8x32xf32>
    %580 = vector.shape_cast %579 : vector<1x8x32xf32> to vector<8x32xf32>
    %581 = vector.extract_strided_slice %567 {offsets = [0, 32], sizes = [8, 32], strides = [1, 1]} : vector<8x96xf32> to vector<8x32xf32>
    %582 = arith.addf %580, %581 : vector<8x32xf32>
    %cst_152 = arith.constant 5.000000e-01 : f32
    %583 = vector.broadcast %cst_152 : f32 to vector<8x32xf32>
    %584 = arith.mulf %583, %582 : vector<8x32xf32>
    %585 = math.tanh %584 : vector<8x32xf32>
    %cst_153 = arith.constant 1.000000e+00 : f32
    %586 = vector.broadcast %cst_153 : f32 to vector<8x32xf32>
    %587 = arith.addf %585, %586 : vector<8x32xf32>
    %cst_154 = arith.constant 5.000000e-01 : f32
    %588 = vector.broadcast %cst_154 : f32 to vector<8x32xf32>
    %589 = arith.mulf %588, %587 : vector<8x32xf32>
    %590 = vector.extract_strided_slice %35 {offsets = [15, 0, 0], sizes = [1, 8, 32], strides = [1, 1, 1]} : vector<16x8x32xf32> to vector<1x8x32xf32>
    %591 = vector.shape_cast %590 : vector<1x8x32xf32> to vector<8x32xf32>
    %592 = vector.extract_strided_slice %567 {offsets = [0, 64], sizes = [8, 32], strides = [1, 1]} : vector<8x96xf32> to vector<8x32xf32>
    %593 = vector.broadcast %2 : vector<1x32xf32> to vector<8x32xf32>
    %594 = arith.addf %592, %593 : vector<8x32xf32>
    %595 = arith.mulf %578, %594 : vector<8x32xf32>
    %596 = arith.addf %591, %595 : vector<8x32xf32>
    %597 = math.tanh %596 : vector<8x32xf32>
    %cst_155 = arith.constant 1.000000e+00 : f32
    %598 = vector.broadcast %cst_155 : f32 to vector<8x32xf32>
    %599 = arith.subf %598, %589 : vector<8x32xf32>
    %600 = arith.mulf %599, %597 : vector<8x32xf32>
    %601 = arith.mulf %589, %566 : vector<8x32xf32>
    %602 = arith.addf %600, %601 : vector<8x32xf32>
    %c0_156 = arith.constant 0 : index
    %c0_157 = arith.constant 0 : index
    %603 = vector.load %arg4[%c0_156, %c0_157] : memref<32x128xf32, #tpu.memory_space<vmem>>, vector<32x128xf32>
    %cst_158 = arith.constant dense<0.000000e+00> : vector<8x128xf32>
    %604 = tpu.matmul %602, %603, %cst_158 {dimension_numbers = #tpu.dot_dimension_numbers<[1], [0], [0], [1], [0, 0, 1, 1], [], []>} : vector<8x32xf32>, vector<32x128xf32>, vector<8x128xf32> -> vector<8x128xf32>
    %605 = vector.broadcast %3 : vector<1x128xf32> to vector<8x128xf32>
    %606 = arith.addf %604, %605 : vector<8x128xf32>
    %c0_159 = arith.constant 0 : index
    %c0_160 = arith.constant 0 : index
    %607 = vector.load %arg6[%c0_159, %c0_160] : memref<8x128xf32, #tpu.memory_space<vmem>>, vector<8x128xf32>
    tpu.vector_store %arg6[%c0_159, %c0_160], %606 {strides = array<i32>} : memref<8x128xf32, #tpu.memory_space<vmem>>, vector<8x128xf32>,
    return
  }
  func.func @transform_0(%arg0: i32) -> (i32, i32, i32) {
    %c0_i32 = arith.constant 0 : i32
    %c0_i32_0 = arith.constant 0 : i32
    %c0_i32_1 = arith.constant 0 : i32
    return %c0_i32, %arg0, %c0_i32_0 : i32, i32, i32
  }
  func.func @transform_1(%arg0: i32) -> (i32, i32, i32) {
    %c0_i32 = arith.constant 0 : i32
    %c0_i32_0 = arith.constant 0 : i32
    %c0_i32_1 = arith.constant 0 : i32
    %c0_i32_2 = arith.constant 0 : i32
    return %c0_i32, %c0_i32_0, %c0_i32_1 : i32, i32, i32
  }
  func.func @transform_2(%arg0: i32) -> (i32, i32) {
    %c0_i32 = arith.constant 0 : i32
    %c0_i32_0 = arith.constant 0 : i32
    %c0_i32_1 = arith.constant 0 : i32
    return %c0_i32, %c0_i32_0 : i32, i32
  }
  func.func @transform_3(%arg0: i32) -> (i32, i32) {
    %c0_i32 = arith.constant 0 : i32
    %c0_i32_0 = arith.constant 0 : i32
    %c0_i32_1 = arith.constant 0 : i32
    return %c0_i32, %c0_i32_0 : i32, i32
  }
  func.func @transform_4(%arg0: i32) -> (i32, i32) {
    %c0_i32 = arith.constant 0 : i32
    %c0_i32_0 = arith.constant 0 : i32
    %c0_i32_1 = arith.constant 0 : i32
    return %c0_i32, %c0_i32_0 : i32, i32
  }
  func.func @transform_5(%arg0: i32) -> (i32, i32) {
    %c0_i32 = arith.constant 0 : i32
    %c0_i32_0 = arith.constant 0 : i32
    return %arg0, %c0_i32 : i32, i32
  }
}

</mosaic_0001>

<llo_original>
// kernel: tpu_custom_call.1
$region0: #{tpu_custom_call.1}
  #allocation0 [shape = 'u32[]', space=smem, size = 0x4, offset = 0x4, fixed_abs, tag = 'smem constant byte address 0x4 - core index']
  #allocation1 [shape = 'u32[144,128]{1,0:T(1,128)}', space=vmem, size = 0x12000, scoped, tag = 'internal scratch']
  %s0 = inlined_call_operand.vmem [shape: f32[18,8,5], index: 0, kind: input, shape index: {}]
  %s1 = inlined_call_operand.vmem [shape: f32[3,5,16], index: 1, kind: input, shape index: {}]
  %s2 = inlined_call_operand.vmem [shape: f32[48,96], index: 2, kind: input, shape index: {}]
  %s3 = inlined_call_operand.vmem [shape: f32[32,128], index: 3, kind: input, shape index: {}]
  %s4 = inlined_call_operand.vmem [shape: f32[8,128], index: 4, kind: input, shape index: {}]
  %s5 = inlined_call_operand.hbm [shape: f32[8,128], index: 5, kind: output, shape index: {}]
  %s6 = sld [smem:[#allocation0]]
  $region30: #{tpu_custom_call.1} parent=0
    _
  %s8 = ssub.s32 1, %s6
  %s9 = scalar_select 0, %s8, %s6
  $region1: #{tpu_custom_call.1} parent=0
    #allocation2 [shape = 'u8[4096]{0}', space=vmem, size = 0x1000, scoped, tag = 'output window, operand 0, single buffered']
    #allocation3 [shape = 's32[1]{0}', space=sflag, size = 0x4, scoped, tag = 'scoped memory for tpu_custom_call.1']
    %10 = vsyncpa [#allocation3], 0
    // Predicated region
    $region2: #{tpu_custom_call.1} parent=1 // pred_check
      _
    $region3: #{tpu_custom_call.1} parent=1 // pred_check_branch
      %12 = sbr.rel (0) target = $region5
    $region4: #{tpu_custom_call.1} parent=1 // pred_region
      _
    $region5: #{tpu_custom_call.1} parent=1 // pred_fallthru
      _
    // Predicated region
    $region6: #{tpu_custom_call.1} parent=1 // pred_check
      _
    $region7: #{tpu_custom_call.1} parent=1 // pred_check_branch
      %14 = sbr.rel (0) target = $region9
    $region8: #{tpu_custom_call.1} parent=1 // pred_region
      _
    $region9: #{tpu_custom_call.1} parent=1 // pred_fallthru
      _
    // Predicated region
    $region10: #{tpu_custom_call.1} parent=1 // pred_check
      _
    $region11: #{tpu_custom_call.1} parent=1 // pred_check_branch
      %16 = sbr.rel (0) target = $region13
    $region12: #{tpu_custom_call.1} parent=1 // pred_region
      _
    $region13: #{tpu_custom_call.1} parent=1 // pred_fallthru
      _
    // Predicated region
    $region14: #{tpu_custom_call.1} parent=1 // pred_check
      _
    $region15: #{tpu_custom_call.1} parent=1 // pred_check_branch
      %18 = sbr.rel (0) target = $region17
    $region16: #{tpu_custom_call.1} parent=1 // pred_region
      _
    $region17: #{tpu_custom_call.1} parent=1 // pred_fallthru
      _
    // Predicated region
    $region18: #{tpu_custom_call.1} parent=1 // pred_check
      _
    $region19: #{tpu_custom_call.1} parent=1 // pred_check_branch
      %20 = sbr.rel (0) target = $region21
    $region20: #{tpu_custom_call.1} parent=1 // pred_region
      _
    $region21: #{tpu_custom_call.1} parent=1 // pred_fallthru
      _
    %v21 = vld [vmem:[%s4] sm:$0x1]
    %v22 = vld [vmem:[%s4 + $0x1] sm:$0x1]
    %v23 = vld [vmem:[%s4 + $0x2] sm:$0x1]
    %v24 = vld [vmem:[%s4 + $0x3] sm:$0x1]
    %v25 = vld [vmem:[%s0] sm:$0xff]
    %v26 = vld [vmem:[%s0 + $0x8] sm:$0xff]
    %v27 = vld [vmem:[%s0 + $0x10] sm:$0xff]
    %v28 = vld [vmem:[%s0 + $0x18] sm:$0xff]
    %v29 = vld [vmem:[%s0 + $0x20] sm:$0xff]
    %v30 = vld [vmem:[%s0 + $0x28] sm:$0xff]
    %v31 = vld [vmem:[%s0 + $0x30] sm:$0xff]
    %v32 = vld [vmem:[%s0 + $0x38] sm:$0xff]
    %v33 = vld [vmem:[%s0 + $0x40] sm:$0xff]
    %v34 = vld [vmem:[%s0 + $0x48] sm:$0xff]
    %v35 = vld [vmem:[%s0 + $0x50] sm:$0xff]
    %v36 = vld [vmem:[%s0 + $0x58] sm:$0xff]
    %v37 = vld [vmem:[%s0 + $0x60] sm:$0xff]
    %v38 = vld [vmem:[%s0 + $0x68] sm:$0xff]
    %v39 = vld [vmem:[%s0 + $0x70] sm:$0xff]
    %v40 = vld [vmem:[%s0 + $0x78] sm:$0xff]
    %v41 = vld [vmem:[%s1] sm:$0x1f]
    %s42 = scalar_lea.vmem %s0, 8
    %v43 = vld [vmem:[%s42] sm:$0xff]
    %v44 = vld [vmem:[%s42 + $0x8] sm:$0xff]
    %v45 = vld [vmem:[%s42 + $0x10] sm:$0xff]
    %v46 = vld [vmem:[%s42 + $0x18] sm:$0xff]
    %v47 = vld [vmem:[%s42 + $0x20] sm:$0xff]
    %v48 = vld [vmem:[%s42 + $0x28] sm:$0xff]
    %v49 = vld [vmem:[%s42 + $0x30] sm:$0xff]
    %v50 = vld [vmem:[%s42 + $0x38] sm:$0xff]
    %v51 = vld [vmem:[%s42 + $0x40] sm:$0xff]
    %v52 = vld [vmem:[%s42 + $0x48] sm:$0xff]
    %v53 = vld [vmem:[%s42 + $0x50] sm:$0xff]
    %v54 = vld [vmem:[%s42 + $0x58] sm:$0xff]
    %v55 = vld [vmem:[%s42 + $0x60] sm:$0xff]
    %v56 = vld [vmem:[%s42 + $0x68] sm:$0xff]
    %v57 = vld [vmem:[%s42 + $0x70] sm:$0xff]
    %v58 = vld [vmem:[%s42 + $0x78] sm:$0xff]
    %s59 = scalar_lea.vmem %s1, 8
    %v60 = vld [vmem:[%s59] sm:$0x1f]
    %vm61 = vcmask 39936
    %v63 = vsel %vm61, %v43, 0
    %v66 = vsel %vm61, %v44, 0
    %v69 = vsel %vm61, %v45, 0
    %v72 = vsel %vm61, %v46, 0
    %v75 = vsel %vm61, %v47, 0
    %v78 = vsel %vm61, %v48, 0
    %v81 = vsel %vm61, %v49, 0
    %v84 = vsel %vm61, %v50, 0
    %v87 = vsel %vm61, %v51, 0
    %v90 = vsel %vm61, %v52, 0
    %v93 = vsel %vm61, %v53, 0
    %v96 = vsel %vm61, %v54, 0
    %v99 = vsel %vm61, %v55, 0
    %v102 = vsel %vm61, %v56, 0
    %v105 = vsel %vm61, %v57, 0
    %v108 = vsel %vm61, %v58, 0
    %vm110 = vcmask 1044480
    %v112 = vsel %vm110, %v60, 0
    %114 = vmatprep.subr.mxu0 0.0
    %115 = vmatpush1.msra.mxu0 %v112
    %116 = vmatprep.subr.mxu0 0.0
    %117 = vmatpush1.msra.mxu0 0.0
    %118 = vmatprep.subr.mxu0 0.0
    %119 = vmatpush1.msra.mxu0 0.0
    %120 = vmatprep.subr.mxu0 0.0
    %121 = vmatpush1.msra.mxu0 0.0
    %122 = vmatprep.subr.mxu0 0.0
    %123 = vmatpush1.msra.mxu0 0.0
    %124 = vmatprep.subr.mxu0 0.0
    %125 = vmatpush1.msra.mxu0 0.0
    %126 = vmatprep.subr.mxu0 0.0
    %127 = vmatpush1.msra.mxu0 0.0
    %128 = vmatprep.subr.mxu0 0.0
    %129 = vmatpush1.msra.mxu0 0.0
    %130 = vmatprep.subr.mxu0 0.0
    %131 = vmatpush1.msra.mxu0 0.0
    %132 = vmatprep.subr.mxu0 0.0
    %133 = vmatpush1.msra.mxu0 0.0
    %134 = vmatprep.subr.mxu0 0.0
    %135 = vmatpush1.msra.mxu0 0.0
    %136 = vmatprep.subr.mxu0 0.0
    %137 = vmatpush1.msra.mxu0 0.0
    %138 = vmatprep.subr.mxu0 0.0
    %139 = vmatpush1.msra.mxu0 0.0
    %140 = vmatprep.subr.mxu0 0.0
    %141 = vmatpush1.msra.mxu0 0.0
    %142 = vmatprep.subr.mxu0 0.0
    %143 = vmatpush1.msra.mxu0 0.0
    %144 = vmatprep.subr.mxu0 0.0
    %145 = vmatpush1.msra.mxu0 0.0
    %146 = vmatprep.subr.mxu0 0.0
    %147 = vmatpush1.msra.mxu0 0.0
    %148 = vmatprep.subr.mxu0 0.0
    %149 = vmatpush1.msra.mxu0 0.0
    %150 = vmatprep.subr.mxu0 0.0
    %151 = vmatpush1.msra.mxu0 0.0
    %152 = vmatprep.subr.mxu0 0.0
    %153 = vmatpush1.msra.mxu0 0.0
    %154 = vmatprep.subr.mxu0 0.0
    %155 = vmatpush1.msra.mxu0 0.0
    %156 = vmatprep.subr.mxu0 0.0
    %157 = vmatpush1.msra.mxu0 0.0
    %158 = vmatprep.subr.mxu0 0.0
    %159 = vmatpush1.msra.mxu0 0.0
    %160 = vmatprep.subr.mxu0 0.0
    %161 = vmatpush1.msra.mxu0 0.0
    %162 = vmatprep.subr.mxu0 0.0
    %163 = vmatpush1.msra.mxu0 0.0
    %164 = vmatprep.subr.mxu0 0.0
    %165 = vmatpush1.msra.mxu0 0.0
    %166 = vmatprep.subr.mxu0 0.0
    %167 = vmatpush1.msra.mxu0 0.0
    %168 = vmatprep.subr.mxu0 0.0
    %169 = vmatpush1.msra.mxu0 0.0
    %170 = vmatprep.subr.mxu0 0.0
    %171 = vmatpush1.msra.mxu0 0.0
    %172 = vmatprep.subr.mxu0 0.0
    %173 = vmatpush1.msra.mxu0 0.0
    %174 = vmatprep.subr.mxu0 0.0
    %175 = vmatpush1.msra.mxu0 0.0
    %176 = vmatprep.subr.mxu0 0.0
    %177 = vmatpush1.msra.mxu0 0.0
    %178 = vmatprep.mubr.f32.mxu0 0.0
    %179 = vmatmul.mubr.f32.gmra.mrb[0].mxu0 %v63
    %v180 = vpop.f32.mrb[0].mxu0
    %v181 = vadd.f32 0.0, %v180
    %v182 = vpop.f32.mrb[0].mxu0
    %183 = vmatprep.mubr.f32.mxu0 0.0
    %184 = vmatmul.mubr.f32.gmra.mrb[0].mxu0 %v66
    %v185 = vpop.f32.mrb[0].mxu0
    %v186 = vadd.f32 0.0, %v185
    %v187 = vpop.f32.mrb[0].mxu0
    %188 = vmatprep.mubr.f32.mxu0 0.0
    %189 = vmatmul.mubr.f32.gmra.mrb[0].mxu0 %v69
    %v190 = vpop.f32.mrb[0].mxu0
    %v191 = vadd.f32 0.0, %v190
    %v192 = vpop.f32.mrb[0].mxu0
    %193 = vmatprep.mubr.f32.mxu0 0.0
    %194 = vmatmul.mubr.f32.gmra.mrb[0].mxu0 %v72
    %v195 = vpop.f32.mrb[0].mxu0
    %v196 = vadd.f32 0.0, %v195
    %v197 = vpop.f32.mrb[0].mxu0
    %198 = vmatprep.mubr.f32.mxu0 0.0
    %199 = vmatmul.mubr.f32.gmra.mrb[0].mxu0 %v75
    %v200 = vpop.f32.mrb[0].mxu0
    %v201 = vadd.f32 0.0, %v200
    %v202 = vpop.f32.mrb[0].mxu0
    %203 = vmatprep.mubr.f32.mxu0 0.0
    %204 = vmatmul.mubr.f32.gmra.mrb[0].mxu0 %v78
    %v205 = vpop.f32.mrb[0].mxu0
    %v206 = vadd.f32 0.0, %v205
    %v207 = vpop.f32.mrb[0].mxu0
    %208 = vmatprep.mubr.f32.mxu0 0.0
    %209 = vmatmul.mubr.f32.gmra.mrb[0].mxu0 %v81
    %v210 = vpop.f32.mrb[0].mxu0
    %v211 = vadd.f32 0.0, %v210
    %v212 = vpop.f32.mrb[0].mxu0
    %213 = vmatprep.mubr.f32.mxu0 0.0
    %214 = vmatmul.mubr.f32.gmra.mrb[0].mxu0 %v84
    %v215 = vpop.f32.mrb[0].mxu0
    %v216 = vadd.f32 0.0, %v215
    %v217 = vpop.f32.mrb[0].mxu0
    %218 = vmatprep.mubr.f32.mxu0 0.0
    %219 = vmatmul.mubr.f32.gmra.mrb[0].mxu0 %v87
    %v220 = vpop.f32.mrb[0].mxu0
    %v221 = vadd.f32 0.0, %v220
    %v222 = vpop.f32.mrb[0].mxu0
    %223 = vmatprep.mubr.f32.mxu0 0.0
    %224 = vmatmul.mubr.f32.gmra.mrb[0].mxu0 %v90
    %v225 = vpop.f32.mrb[0].mxu0
    %v226 = vadd.f32 0.0, %v225
    %v227 = vpop.f32.mrb[0].mxu0
    %228 = vmatprep.mubr.f32.mxu0 0.0
    %229 = vmatmul.mubr.f32.gmra.mrb[0].mxu0 %v93
    %v230 = vpop.f32.mrb[0].mxu0
    %v231 = vadd.f32 0.0, %v230
    %v232 = vpop.f32.mrb[0].mxu0
    %233 = vmatprep.mubr.f32.mxu0 0.0
    %234 = vmatmul.mubr.f32.gmra.mrb[0].mxu0 %v96
    %v235 = vpop.f32.mrb[0].mxu0
    %v236 = vadd.f32 0.0, %v235
    %v237 = vpop.f32.mrb[0].mxu0
    %238 = vmatprep.mubr.f32.mxu0 0.0
    %239 = vmatmul.mubr.f32.gmra.mrb[0].mxu0 %v99
    %v240 = vpop.f32.mrb[0].mxu0
    %v241 = vadd.f32 0.0, %v240
    %v242 = vpop.f32.mrb[0].mxu0
    %243 = vmatprep.mubr.f32.mxu0 0.0
    %244 = vmatmul.mubr.f32.gmra.mrb[0].mxu0 %v102
    %v245 = vpop.f32.mrb[0].mxu0
    %v246 = vadd.f32 0.0, %v245
    %v247 = vpop.f32.mrb[0].mxu0
    %248 = vmatprep.mubr.f32.mxu0 0.0
    %249 = vmatmul.mubr.f32.gmra.mrb[0].mxu0 %v105
    %v250 = vpop.f32.mrb[0].mxu0
    %v251 = vadd.f32 0.0, %v250
    %v252 = vpop.f32.mrb[0].mxu0
    %253 = vmatprep.mubr.f32.mxu0 0.0
    %254 = vmatmul.mubr.f32.gmra.mrb[0].mxu0 %v108
    %v255 = vpop.f32.mrb[0].mxu0
    %v256 = vadd.f32 0.0, %v255
    %v257 = vpop.f32.mrb[0].mxu0
    %258 = vdwg.mxu0
    %v260 = vsel %vm61, %v25, 0
    %v263 = vsel %vm61, %v26, 0
    %v266 = vsel %vm61, %v27, 0
    %v269 = vsel %vm61, %v28, 0
    %v272 = vsel %vm61, %v29, 0
    %v275 = vsel %vm61, %v30, 0
    %v278 = vsel %vm61, %v31, 0
    %v281 = vsel %vm61, %v32, 0
    %v284 = vsel %vm61, %v33, 0
    %v287 = vsel %vm61, %v34, 0
    %v290 = vsel %vm61, %v35, 0
    %v293 = vsel %vm61, %v36, 0
    %v296 = vsel %vm61, %v37, 0
    %v299 = vsel %vm61, %v38, 0
    %v302 = vsel %vm61, %v39, 0
    %v305 = vsel %vm61, %v40, 0
    %v308 = vsel %vm110, %v41, 0
    %310 = vmatprep.subr.mxu0 0.0
    %311 = vmatpush1.msra.mxu0 %v308
    %312 = vmatprep.subr.mxu0 0.0
    %313 = vmatpush1.msra.mxu0 0.0
    %314 = vmatprep.subr.mxu0 0.0
    %315 = vmatpush1.msra.mxu0 0.0
    %316 = vmatprep.subr.mxu0 0.0
    %317 = vmatpush1.msra.mxu0 0.0
    %318 = vmatprep.subr.mxu0 0.0
    %319 = vmatpush1.msra.mxu0 0.0
    %320 = vmatprep.subr.mxu0 0.0
    %321 = vmatpush1.msra.mxu0 0.0
    %322 = vmatprep.subr.mxu0 0.0
    %323 = vmatpush1.msra.mxu0 0.0
    %324 = vmatprep.subr.mxu0 0.0
    %325 = vmatpush1.msra.mxu0 0.0
    %326 = vmatprep.subr.mxu0 0.0
    %327 = vmatpush1.msra.mxu0 0.0
    %328 = vmatprep.subr.mxu0 0.0
    %329 = vmatpush1.msra.mxu0 0.0
    %330 = vmatprep.subr.mxu0 0.0
    %331 = vmatpush1.msra.mxu0 0.0
    %332 = vmatprep.subr.mxu0 0.0
    %333 = vmatpush1.msra.mxu0 0.0
    %334 = vmatprep.subr.mxu0 0.0
    %335 = vmatpush1.msra.mxu0 0.0
    %336 = vmatprep.subr.mxu0 0.0
    %337 = vmatpush1.msra.mxu0 0.0
    %338 = vmatprep.subr.mxu0 0.0
    %339 = vmatpush1.msra.mxu0 0.0
    %340 = vmatprep.subr.mxu0 0.0
    %341 = vmatpush1.msra.mxu0 0.0
    %342 = vmatprep.subr.mxu0 0.0
    %343 = vmatpush1.msra.mxu0 0.0
    %344 = vmatprep.subr.mxu0 0.0
    %345 = vmatpush1.msra.mxu0 0.0
    %346 = vmatprep.subr.mxu0 0.0
    %347 = vmatpush1.msra.mxu0 0.0
    %348 = vmatprep.subr.mxu0 0.0
    %349 = vmatpush1.msra.mxu0 0.0
    %350 = vmatprep.subr.mxu0 0.0
    %351 = vmatpush1.msra.mxu0 0.0
    %352 = vmatprep.subr.mxu0 0.0
    %353 = vmatpush1.msra.mxu0 0.0
    %354 = vmatprep.subr.mxu0 0.0
    %355 = vmatpush1.msra.mxu0 0.0
    %356 = vmatprep.subr.mxu0 0.0
    %357 = vmatpush1.msra.mxu0 0.0
    %358 = vmatprep.subr.mxu0 0.0
    %359 = vmatpush1.msra.mxu0 0.0
    %360 = vmatprep.subr.mxu0 0.0
    %361 = vmatpush1.msra.mxu0 0.0
    %362 = vmatprep.subr.mxu0 0.0
    %363 = vmatpush1.msra.mxu0 0.0
    %364 = vmatprep.subr.mxu0 0.0
    %365 = vmatpush1.msra.mxu0 0.0
    %366 = vmatprep.subr.mxu0 0.0
    %367 = vmatpush1.msra.mxu0 0.0
    %368 = vmatprep.subr.mxu0 0.0
    %369 = vmatpush1.msra.mxu0 0.0
    %370 = vmatprep.subr.mxu0 0.0
    %371 = vmatpush1.msra.mxu0 0.0
    %372 = vmatprep.subr.mxu0 0.0
    %373 = vmatpush1.msra.mxu0 0.0
    %374 = vmatprep.mubr.f32.mxu0 0.0
    %375 = vmatmul.mubr.f32.gmra.mrb[0].mxu0 %v260
    %v376 = vpop.f32.mrb[0].mxu0
    %v377 = vadd.f32 %v181, %v376
    %v378 = vpop.f32.mrb[0].mxu0
    %379 = vmatprep.mubr.f32.mxu0 0.0
    %380 = vmatmul.mubr.f32.gmra.mrb[0].mxu0 %v263
    %v381 = vpop.f32.mrb[0].mxu0
    %v382 = vadd.f32 %v186, %v381
    %v383 = vpop.f32.mrb[0].mxu0
    %384 = vmatprep.mubr.f32.mxu0 0.0
    %385 = vmatmul.mubr.f32.gmra.mrb[0].mxu0 %v266
    %v386 = vpop.f32.mrb[0].mxu0
    %v387 = vadd.f32 %v191, %v386
    %v388 = vpop.f32.mrb[0].mxu0
    %389 = vmatprep.mubr.f32.mxu0 0.0
    %390 = vmatmul.mubr.f32.gmra.mrb[0].mxu0 %v269
    %v391 = vpop.f32.mrb[0].mxu0
    %v392 = vadd.f32 %v196, %v391
    %v393 = vpop.f32.mrb[0].mxu0
    %394 = vmatprep.mubr.f32.mxu0 0.0
    %395 = vmatmul.mubr.f32.gmra.mrb[0].mxu0 %v272
    %v396 = vpop.f32.mrb[0].mxu0
    %v397 = vadd.f32 %v201, %v396
    %v398 = vpop.f32.mrb[0].mxu0
    %399 = vmatprep.mubr.f32.mxu0 0.0
    %400 = vmatmul.mubr.f32.gmra.mrb[0].mxu0 %v275
    %v401 = vpop.f32.mrb[0].mxu0
    %v402 = vadd.f32 %v206, %v401
    %v403 = vpop.f32.mrb[0].mxu0
    %404 = vmatprep.mubr.f32.mxu0 0.0
    %405 = vmatmul.mubr.f32.gmra.mrb[0].mxu0 %v278
    %v406 = vpop.f32.mrb[0].mxu0
    %v407 = vadd.f32 %v211, %v406
    %v408 = vpop.f32.mrb[0].mxu0
    %409 = vmatprep.mubr.f32.mxu0 0.0
    %410 = vmatmul.mubr.f32.gmra.mrb[0].mxu0 %v281
    %v411 = vpop.f32.mrb[0].mxu0
    %v412 = vadd.f32 %v216, %v411
    %v413 = vpop.f32.mrb[0].mxu0
    %414 = vmatprep.mubr.f32.mxu0 0.0
    %415 = vmatmul.mubr.f32.gmra.mrb[0].mxu0 %v284
    %v416 = vpop.f32.mrb[0].mxu0
    %v417 = vadd.f32 %v221, %v416
    %v418 = vpop.f32.mrb[0].mxu0
    %419 = vmatprep.mubr.f32.mxu0 0.0
    %420 = vmatmul.mubr.f32.gmra.mrb[0].mxu0 %v287
    %v421 = vpop.f32.mrb[0].mxu0
    %v422 = vadd.f32 %v226, %v421
    %v423 = vpop.f32.mrb[0].mxu0
    %424 = vmatprep.mubr.f32.mxu0 0.0
    %425 = vmatmul.mubr.f32.gmra.mrb[0].mxu0 %v290
    %v426 = vpop.f32.mrb[0].mxu0
    %v427 = vadd.f32 %v231, %v426
    %v428 = vpop.f32.mrb[0].mxu0
    %429 = vmatprep.mubr.f32.mxu0 0.0
    %430 = vmatmul.mubr.f32.gmra.mrb[0].mxu0 %v293
    %v431 = vpop.f32.mrb[0].mxu0
    %v432 = vadd.f32 %v236, %v431
    %v433 = vpop.f32.mrb[0].mxu0
    %434 = vmatprep.mubr.f32.mxu0 0.0
    %435 = vmatmul.mubr.f32.gmra.mrb[0].mxu0 %v296
    %v436 = vpop.f32.mrb[0].mxu0
    %v437 = vadd.f32 %v241, %v436
    %v438 = vpop.f32.mrb[0].mxu0
    %439 = vmatprep.mubr.f32.mxu0 0.0
    %440 = vmatmul.mubr.f32.gmra.mrb[0].mxu0 %v299
    %v441 = vpop.f32.mrb[0].mxu0
    %v442 = vadd.f32 %v246, %v441
    %v443 = vpop.f32.mrb[0].mxu0
    %444 = vmatprep.mubr.f32.mxu0 0.0
    %445 = vmatmul.mubr.f32.gmra.mrb[0].mxu0 %v302
    %v446 = vpop.f32.mrb[0].mxu0
    %v447 = vadd.f32 %v251, %v446
    %v448 = vpop.f32.mrb[0].mxu0
    %449 = vmatprep.mubr.f32.mxu0 0.0
    %450 = vmatmul.mubr.f32.gmra.mrb[0].mxu0 %v305
    %v451 = vpop.f32.mrb[0].mxu0
    %v452 = vadd.f32 %v256, %v451
    %v453 = vpop.f32.mrb[0].mxu0
    %454 = vdwg.mxu0
    %s455 = scalar_lea.vmem %s0, 16
    %v456 = vld [vmem:[%s455] sm:$0xff]
    %v457 = vld [vmem:[%s455 + $0x8] sm:$0xff]
    %v458 = vld [vmem:[%s455 + $0x10] sm:$0xff]
    %v459 = vld [vmem:[%s455 + $0x18] sm:$0xff]
    %v460 = vld [vmem:[%s455 + $0x20] sm:$0xff]
    %v461 = vld [vmem:[%s455 + $0x28] sm:$0xff]
    %v462 = vld [vmem:[%s455 + $0x30] sm:$0xff]
    %v463 = vld [vmem:[%s455 + $0x38] sm:$0xff]
    %v464 = vld [vmem:[%s455 + $0x40] sm:$0xff]
    %v465 = vld [vmem:[%s455 + $0x48] sm:$0xff]
    %v466 = vld [vmem:[%s455 + $0x50] sm:$0xff]
    %v467 = vld [vmem:[%s455 + $0x58] sm:$0xff]
    %v468 = vld [vmem:[%s455 + $0x60] sm:$0xff]
    %v469 = vld [vmem:[%s455 + $0x68] sm:$0xff]
    %v470 = vld [vmem:[%s455 + $0x70] sm:$0xff]
    %v471 = vld [vmem:[%s455 + $0x78] sm:$0xff]
    %s472 = scalar_lea.vmem %s1, 16
    %v473 = vld [vmem:[%s472] sm:$0x1f]
    %v475 = vsel %vm61, %v456, 0
    %v478 = vsel %vm61, %v457, 0
    %v481 = vsel %vm61, %v458, 0
    %v484 = vsel %vm61, %v459, 0
    %v487 = vsel %vm61, %v460, 0
    %v490 = vsel %vm61, %v461, 0
    %v493 = vsel %vm61, %v462, 0
    %v496 = vsel %vm61, %v463, 0
    %v499 = vsel %vm61, %v464, 0
    %v502 = vsel %vm61, %v465, 0
    %v505 = vsel %vm61, %v466, 0
    %v508 = vsel %vm61, %v467, 0
    %v511 = vsel %vm61, %v468, 0
    %v514 = vsel %vm61, %v469, 0
    %v517 = vsel %vm61, %v470, 0
    %v520 = vsel %vm61, %v471, 0
    %v523 = vsel %vm110, %v473, 0
    %525 = vmatprep.subr.mxu0 0.0
    %526 = vmatpush1.msra.mxu0 %v523
    %527 = vmatprep.subr.mxu0 0.0
    %528 = vmatpush1.msra.mxu0 0.0
    %529 = vmatprep.subr.mxu0 0.0
    %530 = vmatpush1.msra.mxu0 0.0
    %531 = vmatprep.subr.mxu0 0.0
    %532 = vmatpush1.msra.mxu0 0.0
    %533 = vmatprep.subr.mxu0 0.0
    %534 = vmatpush1.msra.mxu0 0.0
    %535 = vmatprep.subr.mxu0 0.0
    %536 = vmatpush1.msra.mxu0 0.0
    %537 = vmatprep.subr.mxu0 0.0
    %538 = vmatpush1.msra.mxu0 0.0
    %539 = vmatprep.subr.mxu0 0.0
    %540 = vmatpush1.msra.mxu0 0.0
    %541 = vmatprep.subr.mxu0 0.0
    %542 = vmatpush1.msra.mxu0 0.0
    %543 = vmatprep.subr.mxu0 0.0
    %544 = vmatpush1.msra.mxu0 0.0
    %545 = vmatprep.subr.mxu0 0.0
    %546 = vmatpush1.msra.mxu0 0.0
    %547 = vmatprep.subr.mxu0 0.0
    %548 = vmatpush1.msra.mxu0 0.0
    %549 = vmatprep.subr.mxu0 0.0
    %550 = vmatpush1.msra.mxu0 0.0
    %551 = vmatprep.subr.mxu0 0.0
    %552 = vmatpush1.msra.mxu0 0.0
    %553 = vmatprep.subr.mxu0 0.0
    %554 = vmatpush1.msra.mxu0 0.0
    %555 = vmatprep.subr.mxu0 0.0
    %556 = vmatpush1.msra.mxu0 0.0
    %557 = vmatprep.subr.mxu0 0.0
    %558 = vmatpush1.msra.mxu0 0.0
    %559 = vmatprep.subr.mxu0 0.0
    %560 = vmatpush1.msra.mxu0 0.0
    %561 = vmatprep.subr.mxu0 0.0
    %562 = vmatpush1.msra.mxu0 0.0
    %563 = vmatprep.subr.mxu0 0.0
    %564 = vmatpush1.msra.mxu0 0.0
    %565 = vmatprep.subr.mxu0 0.0
    %566 = vmatpush1.msra.mxu0 0.0
    %567 = vmatprep.subr.mxu0 0.0
    %568 = vmatpush1.msra.mxu0 0.0
    %569 = vmatprep.subr.mxu0 0.0
    %570 = vmatpush1.msra.mxu0 0.0
    %571 = vmatprep.subr.mxu0 0.0
    %572 = vmatpush1.msra.mxu0 0.0
    %573 = vmatprep.subr.mxu0 0.0
    %574 = vmatpush1.msra.mxu0 0.0
    %575 = vmatprep.subr.mxu0 0.0
    %576 = vmatpush1.msra.mxu0 0.0
    %577 = vmatprep.subr.mxu0 0.0
    %578 = vmatpush1.msra.mxu0 0.0
    %579 = vmatprep.subr.mxu0 0.0
    %580 = vmatpush1.msra.mxu0 0.0
    %581 = vmatprep.subr.mxu0 0.0
    %582 = vmatpush1.msra.mxu0 0.0
    %583 = vmatprep.subr.mxu0 0.0
    %584 = vmatpush1.msra.mxu0 0.0
    %585 = vmatprep.subr.mxu0 0.0
    %586 = vmatpush1.msra.mxu0 0.0
    %587 = vmatprep.subr.mxu0 0.0
    %588 = vmatpush1.msra.mxu0 0.0
    %589 = vmatprep.mubr.f32.mxu0 0.0
    %590 = vmatmul.mubr.f32.gmra.mrb[0].mxu0 %v475
    %v591 = vpop.f32.mrb[0].mxu0
    %v592 = vadd.f32 0.0, %v591
    %v593 = vpop.f32.mrb[0].mxu0
    %594 = vmatprep.mubr.f32.mxu0 0.0
    %595 = vmatmul.mubr.f32.gmra.mrb[0].mxu0 %v478
    %v596 = vpop.f32.mrb[0].mxu0
    %v597 = vadd.f32 0.0, %v596
    %v598 = vpop.f32.mrb[0].mxu0
    %599 = vmatprep.mubr.f32.mxu0 0.0
    %600 = vmatmul.mubr.f32.gmra.mrb[0].mxu0 %v481
    %v601 = vpop.f32.mrb[0].mxu0
    %v602 = vadd.f32 0.0, %v601
    %v603 = vpop.f32.mrb[0].mxu0
    %604 = vmatprep.mubr.f32.mxu0 0.0
    %605 = vmatmul.mubr.f32.gmra.mrb[0].mxu0 %v484
    %v606 = vpop.f32.mrb[0].mxu0
    %v607 = vadd.f32 0.0, %v606
    %v608 = vpop.f32.mrb[0].mxu0
    %609 = vmatprep.mubr.f32.mxu0 0.0
    %610 = vmatmul.mubr.f32.gmra.mrb[0].mxu0 %v487
    %v611 = vpop.f32.mrb[0].mxu0
    %v612 = vadd.f32 0.0, %v611
    %v613 = vpop.f32.mrb[0].mxu0
    %614 = vmatprep.mubr.f32.mxu0 0.0
    %615 = vmatmul.mubr.f32.gmra.mrb[0].mxu0 %v490
    %v616 = vpop.f32.mrb[0].mxu0
    %v617 = vadd.f32 0.0, %v616
    %v618 = vpop.f32.mrb[0].mxu0
    %619 = vmatprep.mubr.f32.mxu0 0.0
    %620 = vmatmul.mubr.f32.gmra.mrb[0].mxu0 %v493
    %v621 = vpop.f32.mrb[0].mxu0
    %v622 = vadd.f32 0.0, %v621
    %v623 = vpop.f32.mrb[0].mxu0
    %624 = vmatprep.mubr.f32.mxu0 0.0
    %625 = vmatmul.mubr.f32.gmra.mrb[0].mxu0 %v496
    %v626 = vpop.f32.mrb[0].mxu0
    %v627 = vadd.f32 0.0, %v626
    %v628 = vpop.f32.mrb[0].mxu0
    %629 = vmatprep.mubr.f32.mxu0 0.0
    %630 = vmatmul.mubr.f32.gmra.mrb[0].mxu0 %v499
    %v631 = vpop.f32.mrb[0].mxu0
    %v632 = vadd.f32 0.0, %v631
    %v633 = vpop.f32.mrb[0].mxu0
    %634 = vmatprep.mubr.f32.mxu0 0.0
    %635 = vmatmul.mubr.f32.gmra.mrb[0].mxu0 %v502
    %v636 = vpop.f32.mrb[0].mxu0
    %v637 = vadd.f32 0.0, %v636
    %v638 = vpop.f32.mrb[0].mxu0
    %639 = vmatprep.mubr.f32.mxu0 0.0
    %640 = vmatmul.mubr.f32.gmra.mrb[0].mxu0 %v505
    %v641 = vpop.f32.mrb[0].mxu0
    %v642 = vadd.f32 0.0, %v641
    %v643 = vpop.f32.mrb[0].mxu0
    %644 = vmatprep.mubr.f32.mxu0 0.0
    %645 = vmatmul.mubr.f32.gmra.mrb[0].mxu0 %v508
    %v646 = vpop.f32.mrb[0].mxu0
    %v647 = vadd.f32 0.0, %v646
    %v648 = vpop.f32.mrb[0].mxu0
    %649 = vmatprep.mubr.f32.mxu0 0.0
    %650 = vmatmul.mubr.f32.gmra.mrb[0].mxu0 %v511
    %v651 = vpop.f32.mrb[0].mxu0
    %v652 = vadd.f32 0.0, %v651
    %v653 = vpop.f32.mrb[0].mxu0
    %654 = vmatprep.mubr.f32.mxu0 0.0
    %655 = vmatmul.mubr.f32.gmra.mrb[0].mxu0 %v514
    %v656 = vpop.f32.mrb[0].mxu0
    %v657 = vadd.f32 0.0, %v656
    %v658 = vpop.f32.mrb[0].mxu0
    %659 = vmatprep.mubr.f32.mxu0 0.0
    %660 = vmatmul.mubr.f32.gmra.mrb[0].mxu0 %v517
    %v661 = vpop.f32.mrb[0].mxu0
    %v662 = vadd.f32 0.0, %v661
    %v663 = vpop.f32.mrb[0].mxu0
    %664 = vmatprep.mubr.f32.mxu0 0.0
    %665 = vmatmul.mubr.f32.gmra.mrb[0].mxu0 %v520
    %v666 = vpop.f32.mrb[0].mxu0
    %v667 = vadd.f32 0.0, %v666
    %v668 = vpop.f32.mrb[0].mxu0
    %669 = vdwg.mxu0
    %v670 = vadd.f32 %v377, %v592
    %v671 = vadd.f32 %v382, %v597
    %v672 = vadd.f32 %v387, %v602
    %v673 = vadd.f32 %v392, %v607
    %v674 = vadd.f32 %v397, %v612
    %v675 = vadd.f32 %v402, %v617
    %v676 = vadd.f32 %v407, %v622
    %v677 = vadd.f32 %v412, %v627
    %v678 = vadd.f32 %v417, %v632
    %v679 = vadd.f32 %v422, %v637
    %v680 = vadd.f32 %v427, %v642
    %v681 = vadd.f32 %v432, %v647
    %v682 = vadd.f32 %v437, %v652
    %v683 = vadd.f32 %v442, %v657
    %v684 = vadd.f32 %v447, %v662
    %v685 = vadd.f32 %v452, %v667
    %v686 = vlaneseq
    %v687 = vshrl.u32 %v686, 7
    %v688 = vsub.s32 0, %v687
    %v689 = vrot.slane %v21, %v688
    %v690 = vadd.f32 %v670, %v689
    %v691 = vadd.f32 %v671, %v689
    %v692 = vadd.f32 %v672, %v689
    %v693 = vadd.f32 %v673, %v689
    %v694 = vadd.f32 %v674, %v689
    %v695 = vadd.f32 %v675, %v689
    %v696 = vadd.f32 %v676, %v689
    %v697 = vadd.f32 %v677, %v689
    %v698 = vadd.f32 %v678, %v689
    %v699 = vadd.f32 %v679, %v689
    %v700 = vadd.f32 %v680, %v689
    %v701 = vadd.f32 %v681, %v689
    %v702 = vadd.f32 %v682, %v689
    %v703 = vadd.f32 %v683, %v689
    %v704 = vadd.f32 %v684, %v689
    %v705 = vadd.f32 %v685, %v689
    %v706 = vmax.f32 %v690, 0.0
    %v707 = vmax.f32 %v691, 0.0
    %v708 = vmax.f32 %v692, 0.0
    %v709 = vmax.f32 %v693, 0.0
    %v710 = vmax.f32 %v694, 0.0
    %v711 = vmax.f32 %v695, 0.0
    %v712 = vmax.f32 %v696, 0.0
    %v713 = vmax.f32 %v697, 0.0
    %v714 = vmax.f32 %v698, 0.0
    %v715 = vmax.f32 %v699, 0.0
    %v716 = vmax.f32 %v700, 0.0
    %v717 = vmax.f32 %v701, 0.0
    %v718 = vmax.f32 %v702, 0.0
    %v719 = vmax.f32 %v703, 0.0
    %v720 = vmax.f32 %v704, 0.0
    %v721 = vmax.f32 %v705, 0.0
    %v722 = vld [vmem:[%s2] sm:$0xff]
    %v723 = vld [vmem:[%s2 + $0x8] sm:$0xff]
    %v724 = vld [vmem:[%s2 + $0x10] sm:$0xff]
    %v725 = vld [vmem:[%s2 + $0x18] sm:$0xff]
    %v726 = vld [vmem:[%s2 + $0x20] sm:$0xff]
    %v727 = vld [vmem:[%s2 + $0x28] sm:$0xff]
    %v728 = vlaneseq
    %v729 = vshrl.u32 %v728, 7
    %v730 = vsub.s32 0, %v729
    %v731 = vrot.slane %v22, %v730
    %vm732 = vcmask 130048
    %v734 = vsel %vm732, %v706, 0
    %v737 = vsel %vm732, %v707, 0
    %v740 = vsel %vm732, %v708, 0
    %v743 = vsel %vm732, %v709, 0
    %v746 = vsel %vm732, %v710, 0
    %v749 = vsel %vm732, %v711, 0
    %v752 = vsel %vm732, %v712, 0
    %v755 = vsel %vm732, %v713, 0
    %v758 = vsel %vm732, %v714, 0
    %v761 = vsel %vm732, %v715, 0
    %v764 = vsel %vm732, %v716, 0
    %v767 = vsel %vm732, %v717, 0
    %v770 = vsel %vm732, %v718, 0
    %v773 = vsel %vm732, %v719, 0
    %v776 = vsel %vm732, %v720, 0
    %v779 = vsel %vm732, %v721, 0
    %781 = vmatprep.subr.mxu0 0.0
    %782 = vmatpush1.msra.mxu0 %v722
    %783 = vmatprep.subr.mxu0 0.0
    %784 = vmatpush1.msra.mxu0 %v723
    %785 = vmatprep.subr.mxu0 0.0
    %786 = vmatpush1.msra.mxu0 0.0
    %787 = vmatprep.subr.mxu0 0.0
    %788 = vmatpush1.msra.mxu0 0.0
    %789 = vmatprep.subr.mxu0 0.0
    %790 = vmatpush1.msra.mxu0 0.0
    %791 = vmatprep.subr.mxu0 0.0
    %792 = vmatpush1.msra.mxu0 0.0
    %793 = vmatprep.subr.mxu0 0.0
    %794 = vmatpush1.msra.mxu0 0.0
    %795 = vmatprep.subr.mxu0 0.0
    %796 = vmatpush1.msra.mxu0 0.0
    %797 = vmatprep.subr.mxu0 0.0
    %798 = vmatpush1.msra.mxu0 0.0
    %799 = vmatprep.subr.mxu0 0.0
    %800 = vmatpush1.msra.mxu0 0.0
    %801 = vmatprep.subr.mxu0 0.0
    %802 = vmatpush1.msra.mxu0 0.0
    %803 = vmatprep.subr.mxu0 0.0
    %804 = vmatpush1.msra.mxu0 0.0
    %805 = vmatprep.subr.mxu0 0.0
    %806 = vmatpush1.msra.mxu0 0.0
    %807 = vmatprep.subr.mxu0 0.0
    %808 = vmatpush1.msra.mxu0 0.0
    %809 = vmatprep.subr.mxu0 0.0
    %810 = vmatpush1.msra.mxu0 0.0
    %811 = vmatprep.subr.mxu0 0.0
    %812 = vmatpush1.msra.mxu0 0.0
    %813 = vmatprep.subr.mxu0 0.0
    %814 = vmatpush1.msra.mxu0 0.0
    %815 = vmatprep.subr.mxu0 0.0
    %816 = vmatpush1.msra.mxu0 0.0
    %817 = vmatprep.subr.mxu0 0.0
    %818 = vmatpush1.msra.mxu0 0.0
    %819 = vmatprep.subr.mxu0 0.0
    %820 = vmatpush1.msra.mxu0 0.0
    %821 = vmatprep.subr.mxu0 0.0
    %822 = vmatpush1.msra.mxu0 0.0
    %823 = vmatprep.subr.mxu0 0.0
    %824 = vmatpush1.msra.mxu0 0.0
    %825 = vmatprep.subr.mxu0 0.0
    %826 = vmatpush1.msra.mxu0 0.0
    %827 = vmatprep.subr.mxu0 0.0
    %828 = vmatpush1.msra.mxu0 0.0
    %829 = vmatprep.subr.mxu0 0.0
    %830 = vmatpush1.msra.mxu0 0.0
    %831 = vmatprep.subr.mxu0 0.0
    %832 = vmatpush1.msra.mxu0 0.0
    %833 = vmatprep.subr.mxu0 0.0
    %834 = vmatpush1.msra.mxu0 0.0
    %835 = vmatprep.subr.mxu0 0.0
    %836 = vmatpush1.msra.mxu0 0.0
    %837 = vmatprep.subr.mxu0 0.0
    %838 = vmatpush1.msra.mxu0 0.0
    %839 = vmatprep.subr.mxu0 0.0
    %840 = vmatpush1.msra.mxu0 0.0
    %841 = vmatprep.subr.mxu0 0.0
    %842 = vmatpush1.msra.mxu0 0.0
    %843 = vmatprep.subr.mxu0 0.0
    %844 = vmatpush1.msra.mxu0 0.0
    %845 = vmatprep.mubr.f32.mxu0 0.0
    %846 = vmatmul.mubr.f32.gmra.mrb[0].mxu0 %v734
    %v847 = vpop.f32.mrb[0].mxu0
    %v848 = vadd.f32 %v731, %v847
    %v849 = vpop.f32.mrb[0].mxu0
    %850 = vmatprep.mubr.f32.mxu0 0.0
    %851 = vmatmul.mubr.f32.gmra.mrb[0].mxu0 %v737
    %v852 = vpop.f32.mrb[0].mxu0
    %v853 = vadd.f32 %v731, %v852
    %v854 = vpop.f32.mrb[0].mxu0
    %855 = vmatprep.mubr.f32.mxu0 0.0
    %856 = vmatmul.mubr.f32.gmra.mrb[0].mxu0 %v740
    %v857 = vpop.f32.mrb[0].mxu0
    %v858 = vadd.f32 %v731, %v857
    %v859 = vpop.f32.mrb[0].mxu0
    %860 = vmatprep.mubr.f32.mxu0 0.0
    %861 = vmatmul.mubr.f32.gmra.mrb[0].mxu0 %v743
    %v862 = vpop.f32.mrb[0].mxu0
    %v863 = vadd.f32 %v731, %v862
    %v864 = vpop.f32.mrb[0].mxu0
    %865 = vmatprep.mubr.f32.mxu0 0.0
    %866 = vmatmul.mubr.f32.gmra.mrb[0].mxu0 %v746
    %v867 = vpop.f32.mrb[0].mxu0
    %v868 = vadd.f32 %v731, %v867
    %v869 = vpop.f32.mrb[0].mxu0
    %870 = vmatprep.mubr.f32.mxu0 0.0
    %871 = vmatmul.mubr.f32.gmra.mrb[0].mxu0 %v749
    %v872 = vpop.f32.mrb[0].mxu0
    %v873 = vadd.f32 %v731, %v872
    %v874 = vpop.f32.mrb[0].mxu0
    %875 = vmatprep.mubr.f32.mxu0 0.0
    %876 = vmatmul.mubr.f32.gmra.mrb[0].mxu0 %v752
    %v877 = vpop.f32.mrb[0].mxu0
    %v878 = vadd.f32 %v731, %v877
    %v879 = vpop.f32.mrb[0].mxu0
    %880 = vmatprep.mubr.f32.mxu0 0.0
    %881 = vmatmul.mubr.f32.gmra.mrb[0].mxu0 %v755
    %v882 = vpop.f32.mrb[0].mxu0
    %v883 = vadd.f32 %v731, %v882
    %v884 = vpop.f32.mrb[0].mxu0
    %885 = vmatprep.mubr.f32.mxu0 0.0
    %886 = vmatmul.mubr.f32.gmra.mrb[0].mxu0 %v758
    %v887 = vpop.f32.mrb[0].mxu0
    %v888 = vadd.f32 %v731, %v887
    %v889 = vpop.f32.mrb[0].mxu0
    %890 = vmatprep.mubr.f32.mxu0 0.0
    %891 = vmatmul.mubr.f32.gmra.mrb[0].mxu0 %v761
    %v892 = vpop.f32.mrb[0].mxu0
    %v893 = vadd.f32 %v731, %v892
    %v894 = vpop.f32.mrb[0].mxu0
    %895 = vmatprep.mubr.f32.mxu0 0.0
    %896 = vmatmul.mubr.f32.gmra.mrb[0].mxu0 %v764
    %v897 = vpop.f32.mrb[0].mxu0
    %v898 = vadd.f32 %v731, %v897
    %v899 = vpop.f32.mrb[0].mxu0
    %900 = vmatprep.mubr.f32.mxu0 0.0
    %901 = vmatmul.mubr.f32.gmra.mrb[0].mxu0 %v767
    %v902 = vpop.f32.mrb[0].mxu0
    %v903 = vadd.f32 %v731, %v902
    %v904 = vpop.f32.mrb[0].mxu0
    %905 = vmatprep.mubr.f32.mxu0 0.0
    %906 = vmatmul.mubr.f32.gmra.mrb[0].mxu0 %v770
    %v907 = vpop.f32.mrb[0].mxu0
    %v908 = vadd.f32 %v731, %v907
    %v909 = vpop.f32.mrb[0].mxu0
    %910 = vmatprep.mubr.f32.mxu0 0.0
    %911 = vmatmul.mubr.f32.gmra.mrb[0].mxu0 %v773
    %v912 = vpop.f32.mrb[0].mxu0
    %v913 = vadd.f32 %v731, %v912
    %v914 = vpop.f32.mrb[0].mxu0
    %915 = vmatprep.mubr.f32.mxu0 0.0
    %916 = vmatmul.mubr.f32.gmra.mrb[0].mxu0 %v776
    %v917 = vpop.f32.mrb[0].mxu0
    %v918 = vadd.f32 %v731, %v917
    %v919 = vpop.f32.mrb[0].mxu0
    %920 = vmatprep.mubr.f32.mxu0 0.0
    %921 = vmatmul.mubr.f32.gmra.mrb[0].mxu0 %v779
    %v922 = vpop.f32.mrb[0].mxu0
    %v923 = vadd.f32 %v731, %v922
    %v924 = vpop.f32.mrb[0].mxu0
    %925 = vdwg.mxu0
    %v926 = vmul.f32 %v848, 0.5
    %v927 = vtanh.pop %v926
    %v928 = vadd.f32 %v927, 1.0
    %v929 = vmul.f32 %v928, 0.5
    %v930 = vlaneseq
    %v931 = vshrl.u32 %v930, 7
    %v932 = vsub.s32 0, %v931
    %v933 = vrot.slane %v23, %v932
    %v934 = vmul.f32 %v929, %v933
    %936 = vrot.lane.b32.xlu0 %v934, 64
    %v937 = vpop.permute.xlu0 %936
    %v939 = vadd.f32 %v848, %v937
    %v940 = vtanh.pop %v939
    %v941 = vsub.f32 1.0, %v929
    %943 = vrot.lane.b32.xlu0 %v940, 96
    %v944 = vpop.permute.xlu0 %943
    %v946 = vmul.f32 %v941, %v944
    %948 = vrot.lane.b32.xlu0 %v946, 96
    %v949 = vpop.permute.xlu0 %948
    %vm950 = vcmask 261120
    %v951 = vsel %vm950, %v949, 0
    %953 = vmatprep.subr.mxu0 0.0
    %954 = vmatpush1.msra.mxu0 %v724
    %955 = vmatprep.subr.mxu0 0.0
    %956 = vmatpush1.msra.mxu0 %v725
    %957 = vmatprep.subr.mxu0 0.0
    %958 = vmatpush1.msra.mxu0 %v726
    %959 = vmatprep.subr.mxu0 0.0
    %960 = vmatpush1.msra.mxu0 %v727
    %961 = vmatprep.subr.mxu0 0.0
    %962 = vmatpush1.msra.mxu0 0.0
    %963 = vmatprep.subr.mxu0 0.0
    %964 = vmatpush1.msra.mxu0 0.0
    %965 = vmatprep.subr.mxu0 0.0
    %966 = vmatpush1.msra.mxu0 0.0
    %967 = vmatprep.subr.mxu0 0.0
    %968 = vmatpush1.msra.mxu0 0.0
    %969 = vmatprep.subr.mxu0 0.0
    %970 = vmatpush1.msra.mxu0 0.0
    %971 = vmatprep.subr.mxu0 0.0
    %972 = vmatpush1.msra.mxu0 0.0
    %973 = vmatprep.subr.mxu0 0.0
    %974 = vmatpush1.msra.mxu0 0.0
    %975 = vmatprep.subr.mxu0 0.0
    %976 = vmatpush1.msra.mxu0 0.0
    %977 = vmatprep.subr.mxu0 0.0
    %978 = vmatpush1.msra.mxu0 0.0
    %979 = vmatprep.subr.mxu0 0.0
    %980 = vmatpush1.msra.mxu0 0.0
    %981 = vmatprep.subr.mxu0 0.0
    %982 = vmatpush1.msra.mxu0 0.0
    %983 = vmatprep.subr.mxu0 0.0
    %984 = vmatpush1.msra.mxu0 0.0
    %985 = vmatprep.subr.mxu0 0.0
    %986 = vmatpush1.msra.mxu0 0.0
    %987 = vmatprep.subr.mxu0 0.0
    %988 = vmatpush1.msra.mxu0 0.0
    %989 = vmatprep.subr.mxu0 0.0
    %990 = vmatpush1.msra.mxu0 0.0
    %991 = vmatprep.subr.mxu0 0.0
    %992 = vmatpush1.msra.mxu0 0.0
    %993 = vmatprep.subr.mxu0 0.0
    %994 = vmatpush1.msra.mxu0 0.0
    %995 = vmatprep.subr.mxu0 0.0
    %996 = vmatpush1.msra.mxu0 0.0
    %997 = vmatprep.subr.mxu0 0.0
    %998 = vmatpush1.msra.mxu0 0.0
    %999 = vmatprep.subr.mxu0 0.0
    %1000 = vmatpush1.msra.mxu0 0.0
    %1001 = vmatprep.subr.mxu0 0.0
    %1002 = vmatpush1.msra.mxu0 0.0
    %1003 = vmatprep.subr.mxu0 0.0
    %1004 = vmatpush1.msra.mxu0 0.0
    %1005 = vmatprep.subr.mxu0 0.0
    %1006 = vmatpush1.msra.mxu0 0.0
    %1007 = vmatprep.subr.mxu0 0.0
    %1008 = vmatpush1.msra.mxu0 0.0
    %1009 = vmatprep.subr.mxu0 0.0
    %1010 = vmatpush1.msra.mxu0 0.0
    %1011 = vmatprep.subr.mxu0 0.0
    %1012 = vmatpush1.msra.mxu0 0.0
    %1013 = vmatprep.subr.mxu0 0.0
    %1014 = vmatpush1.msra.mxu0 0.0
    %1015 = vmatprep.subr.mxu0 0.0
    %1016 = vmatpush1.msra.mxu0 0.0
    %1017 = vmatprep.mubr.f32.mxu0 0.0
    %1018 = vmatmul.mubr.f32.gmra.mrb[0].mxu0 %v951
    %v1019 = vpop.f32.mrb[0].mxu0
    %v1020 = vadd.f32 0.0, %v1019
    %v1021 = vpop.f32.mrb[0].mxu0
    %1022 = vdwg.mxu0
    %v1023 = vadd.f32 %v853, %v1020
    %v1024 = vmul.f32 %v1023, 0.5
    %v1025 = vtanh.pop %v1024
    %v1026 = vadd.f32 %v1025, 1.0
    %v1027 = vmul.f32 %v1026, 0.5
    %1029 = vrot.lane.b32.xlu0 %v933, 64
    %v1030 = vpop.permute.xlu0 %1029
    %v1032 = vadd.f32 %v1020, %v1030
    %1034 = vrot.lane.b32.xlu0 %v1032, 64
    %v1035 = vpop.permute.xlu0 %1034
    %v1037 = vmul.f32 %v1027, %v1035
    %1039 = vrot.lane.b32.xlu0 %v1037, 64
    %v1040 = vpop.permute.xlu0 %1039
    %v1042 = vadd.f32 %v853, %v1040
    %v1043 = vtanh.pop %v1042
    %v1044 = vsub.f32 1.0, %v1027
    %1046 = vrot.lane.b32.xlu0 %v1043, 96
    %v1047 = vpop.permute.xlu0 %1046
    %v1049 = vmul.f32 %v1044, %v1047
    %v1050 = vmul.f32 %v1027, %v946
    %v1051 = vadd.f32 %v1049, %v1050
    %1053 = vrot.lane.b32.xlu0 %v1051, 96
    %v1054 = vpop.permute.xlu0 %1053
    %v1055 = vsel %vm950, %v1054, 0
    %1057 = vmatprep.subr.mxu0 0.0
    %1058 = vmatpush1.msra.mxu0 %v724
    %1059 = vmatprep.subr.mxu0 0.0
    %1060 = vmatpush1.msra.mxu0 %v725
    %1061 = vmatprep.subr.mxu0 0.0
    %1062 = vmatpush1.msra.mxu0 %v726
    %1063 = vmatprep.subr.mxu0 0.0
    %1064 = vmatpush1.msra.mxu0 %v727
    %1065 = vmatprep.subr.mxu0 0.0
    %1066 = vmatpush1.msra.mxu0 0.0
    %1067 = vmatprep.subr.mxu0 0.0
    %1068 = vmatpush1.msra.mxu0 0.0
    %1069 = vmatprep.subr.mxu0 0.0
    %1070 = vmatpush1.msra.mxu0 0.0
    %1071 = vmatprep.subr.mxu0 0.0
    %1072 = vmatpush1.msra.mxu0 0.0
    %1073 = vmatprep.subr.mxu0 0.0
    %1074 = vmatpush1.msra.mxu0 0.0
    %1075 = vmatprep.subr.mxu0 0.0
    %1076 = vmatpush1.msra.mxu0 0.0
    %1077 = vmatprep.subr.mxu0 0.0
    %1078 = vmatpush1.msra.mxu0 0.0
    %1079 = vmatprep.subr.mxu0 0.0
    %1080 = vmatpush1.msra.mxu0 0.0
    %1081 = vmatprep.subr.mxu0 0.0
    %1082 = vmatpush1.msra.mxu0 0.0
    %1083 = vmatprep.subr.mxu0 0.0
    %1084 = vmatpush1.msra.mxu0 0.0
    %1085 = vmatprep.subr.mxu0 0.0
    %1086 = vmatpush1.msra.mxu0 0.0
    %1087 = vmatprep.subr.mxu0 0.0
    %1088 = vmatpush1.msra.mxu0 0.0
    %1089 = vmatprep.subr.mxu0 0.0
    %1090 = vmatpush1.msra.mxu0 0.0
    %1091 = vmatprep.subr.mxu0 0.0
    %1092 = vmatpush1.msra.mxu0 0.0
    %1093 = vmatprep.subr.mxu0 0.0
    %1094 = vmatpush1.msra.mxu0 0.0
    %1095 = vmatprep.subr.mxu0 0.0
    %1096 = vmatpush1.msra.mxu0 0.0
    %1097 = vmatprep.subr.mxu0 0.0
    %1098 = vmatpush1.msra.mxu0 0.0
    %1099 = vmatprep.subr.mxu0 0.0
    %1100 = vmatpush1.msra.mxu0 0.0
    %1101 = vmatprep.subr.mxu0 0.0
    %1102 = vmatpush1.msra.mxu0 0.0
    %1103 = vmatprep.subr.mxu0 0.0
    %1104 = vmatpush1.msra.mxu0 0.0
    %1105 = vmatprep.subr.mxu0 0.0
    %1106 = vmatpush1.msra.mxu0 0.0
    %1107 = vmatprep.subr.mxu0 0.0
    %1108 = vmatpush1.msra.mxu0 0.0
    %1109 = vmatprep.subr.mxu0 0.0
    %1110 = vmatpush1.msra.mxu0 0.0
    %1111 = vmatprep.subr.mxu0 0.0
    %1112 = vmatpush1.msra.mxu0 0.0
    %1113 = vmatprep.subr.mxu0 0.0
    %1114 = vmatpush1.msra.mxu0 0.0
    %1115 = vmatprep.subr.mxu0 0.0
    %1116 = vmatpush1.msra.mxu0 0.0
    %1117 = vmatprep.subr.mxu0 0.0
    %1118 = vmatpush1.msra.mxu0 0.0
    %1119 = vmatprep.subr.mxu0 0.0
    %1120 = vmatpush1.msra.mxu0 0.0
    %1121 = vmatprep.mubr.f32.mxu0 0.0
    %1122 = vmatmul.mubr.f32.gmra.mrb[0].mxu0 %v1055
    %v1123 = vpop.f32.mrb[0].mxu0
    %v1124 = vadd.f32 0.0, %v1123
    %v1125 = vpop.f32.mrb[0].mxu0
    %1126 = vdwg.mxu0
    %v1127 = vadd.f32 %v858, %v1124
    %v1128 = vmul.f32 %v1127, 0.5
    %v1129 = vtanh.pop %v1128
    %v1130 = vadd.f32 %v1129, 1.0
    %v1131 = vmul.f32 %v1130, 0.5
    %v1132 = vadd.f32 %v1124, %v1030
    %1134 = vrot.lane.b32.xlu0 %v1132, 64
    %v1135 = vpop.permute.xlu0 %1134
    %v1137 = vmul.f32 %v1131, %v1135
    %1139 = vrot.lane.b32.xlu0 %v1137, 64
    %v1140 = vpop.permute.xlu0 %1139
    %v1142 = vadd.f32 %v858, %v1140
    %v1143 = vtanh.pop %v1142
    %v1144 = vsub.f32 1.0, %v1131
    %1146 = vrot.lane.b32.xlu0 %v1143, 96
    %v1147 = vpop.permute.xlu0 %1146
    %v1149 = vmul.f32 %v1144, %v1147
    %v1150 = vmul.f32 %v1131, %v1051
    %v1151 = vadd.f32 %v1149, %v1150
    %1153 = vrot.lane.b32.xlu0 %v1151, 96
    %v1154 = vpop.permute.xlu0 %1153
    %v1155 = vsel %vm950, %v1154, 0
    %1157 = vmatprep.subr.mxu0 0.0
    %1158 = vmatpush1.msra.mxu0 %v724
    %1159 = vmatprep.subr.mxu0 0.0
    %1160 = vmatpush1.msra.mxu0 %v725
    %1161 = vmatprep.subr.mxu0 0.0
    %1162 = vmatpush1.msra.mxu0 %v726
    %1163 = vmatprep.subr.mxu0 0.0
    %1164 = vmatpush1.msra.mxu0 %v727
    %1165 = vmatprep.subr.mxu0 0.0
    %1166 = vmatpush1.msra.mxu0 0.0
    %1167 = vmatprep.subr.mxu0 0.0
    %1168 = vmatpush1.msra.mxu0 0.0
    %1169 = vmatprep.subr.mxu0 0.0
    %1170 = vmatpush1.msra.mxu0 0.0
    %1171 = vmatprep.subr.mxu0 0.0
    %1172 = vmatpush1.msra.mxu0 0.0
    %1173 = vmatprep.subr.mxu0 0.0
    %1174 = vmatpush1.msra.mxu0 0.0
    %1175 = vmatprep.subr.mxu0 0.0
    %1176 = vmatpush1.msra.mxu0 0.0
    %1177 = vmatprep.subr.mxu0 0.0
    %1178 = vmatpush1.msra.mxu0 0.0
    %1179 = vmatprep.subr.mxu0 0.0
    %1180 = vmatpush1.msra.mxu0 0.0
    %1181 = vmatprep.subr.mxu0 0.0
    %1182 = vmatpush1.msra.mxu0 0.0
    %1183 = vmatprep.subr.mxu0 0.0
    %1184 = vmatpush1.msra.mxu0 0.0
    %1185 = vmatprep.subr.mxu0 0.0
    %1186 = vmatpush1.msra.mxu0 0.0
    %1187 = vmatprep.subr.mxu0 0.0
    %1188 = vmatpush1.msra.mxu0 0.0
    %1189 = vmatprep.subr.mxu0 0.0
    %1190 = vmatpush1.msra.mxu0 0.0
    %1191 = vmatprep.subr.mxu0 0.0
    %1192 = vmatpush1.msra.mxu0 0.0
    %1193 = vmatprep.subr.mxu0 0.0
    %1194 = vmatpush1.msra.mxu0 0.0
    %1195 = vmatprep.subr.mxu0 0.0
    %1196 = vmatpush1.msra.mxu0 0.0
    %1197 = vmatprep.subr.mxu0 0.0
    %1198 = vmatpush1.msra.mxu0 0.0
    %1199 = vmatprep.subr.mxu0 0.0
    %1200 = vmatpush1.msra.mxu0 0.0
    %1201 = vmatprep.subr.mxu0 0.0
    %1202 = vmatpush1.msra.mxu0 0.0
    %1203 = vmatprep.subr.mxu0 0.0
    %1204 = vmatpush1.msra.mxu0 0.0
    %1205 = vmatprep.subr.mxu0 0.0
    %1206 = vmatpush1.msra.mxu0 0.0
    %1207 = vmatprep.subr.mxu0 0.0
    %1208 = vmatpush1.msra.mxu0 0.0
    %1209 = vmatprep.subr.mxu0 0.0
    %1210 = vmatpush1.msra.mxu0 0.0
    %1211 = vmatprep.subr.mxu0 0.0
    %1212 = vmatpush1.msra.mxu0 0.0
    %1213 = vmatprep.subr.mxu0 0.0
    %1214 = vmatpush1.msra.mxu0 0.0
    %1215 = vmatprep.subr.mxu0 0.0
    %1216 = vmatpush1.msra.mxu0 0.0
    %1217 = vmatprep.subr.mxu0 0.0
    %1218 = vmatpush1.msra.mxu0 0.0
    %1219 = vmatprep.subr.mxu0 0.0
    %1220 = vmatpush1.msra.mxu0 0.0
    %1221 = vmatprep.mubr.f32.mxu0 0.0
    %1222 = vmatmul.mubr.f32.gmra.mrb[0].mxu0 %v1155
    %v1223 = vpop.f32.mrb[0].mxu0
    %v1224 = vadd.f32 0.0, %v1223
    %v1225 = vpop.f32.mrb[0].mxu0
    %1226 = vdwg.mxu0
    %v1227 = vadd.f32 %v863, %v1224
    %v1228 = vmul.f32 %v1227, 0.5
    %v1229 = vtanh.pop %v1228
    %v1230 = vadd.f32 %v1229, 1.0
    %v1231 = vmul.f32 %v1230, 0.5
    %v1232 = vadd.f32 %v1224, %v1030
    %1234 = vrot.lane.b32.xlu0 %v1232, 64
    %v1235 = vpop.permute.xlu0 %1234
    %v1237 = vmul.f32 %v1231, %v1235
    %1239 = vrot.lane.b32.xlu0 %v1237, 64
    %v1240 = vpop.permute.xlu0 %1239
    %v1242 = vadd.f32 %v863, %v1240
    %v1243 = vtanh.pop %v1242
    %v1244 = vsub.f32 1.0, %v1231
    %1246 = vrot.lane.b32.xlu0 %v1243, 96
    %v1247 = vpop.permute.xlu0 %1246
    %v1249 = vmul.f32 %v1244, %v1247
    %v1250 = vmul.f32 %v1231, %v1151
    %v1251 = vadd.f32 %v1249, %v1250
    %1253 = vrot.lane.b32.xlu0 %v1251, 96
    %v1254 = vpop.permute.xlu0 %1253
    %v1255 = vsel %vm950, %v1254, 0
    %1257 = vmatprep.subr.mxu0 0.0
    %1258 = vmatpush1.msra.mxu0 %v724
    %1259 = vmatprep.subr.mxu0 0.0
    %1260 = vmatpush1.msra.mxu0 %v725
    %1261 = vmatprep.subr.mxu0 0.0
    %1262 = vmatpush1.msra.mxu0 %v726
    %1263 = vmatprep.subr.mxu0 0.0
    %1264 = vmatpush1.msra.mxu0 %v727
    %1265 = vmatprep.subr.mxu0 0.0
    %1266 = vmatpush1.msra.mxu0 0.0
    %1267 = vmatprep.subr.mxu0 0.0
    %1268 = vmatpush1.msra.mxu0 0.0
    %1269 = vmatprep.subr.mxu0 0.0
    %1270 = vmatpush1.msra.mxu0 0.0
    %1271 = vmatprep.subr.mxu0 0.0
    %1272 = vmatpush1.msra.mxu0 0.0
    %1273 = vmatprep.subr.mxu0 0.0
    %1274 = vmatpush1.msra.mxu0 0.0
    %1275 = vmatprep.subr.mxu0 0.0
    %1276 = vmatpush1.msra.mxu0 0.0
    %1277 = vmatprep.subr.mxu0 0.0
    %1278 = vmatpush1.msra.mxu0 0.0
    %1279 = vmatprep.subr.mxu0 0.0
    %1280 = vmatpush1.msra.mxu0 0.0
    %1281 = vmatprep.subr.mxu0 0.0
    %1282 = vmatpush1.msra.mxu0 0.0
    %1283 = vmatprep.subr.mxu0 0.0
    %1284 = vmatpush1.msra.mxu0 0.0
    %1285 = vmatprep.subr.mxu0 0.0
    %1286 = vmatpush1.msra.mxu0 0.0
    %1287 = vmatprep.subr.mxu0 0.0
    %1288 = vmatpush1.msra.mxu0 0.0
    %1289 = vmatprep.subr.mxu0 0.0
    %1290 = vmatpush1.msra.mxu0 0.0
    %1291 = vmatprep.subr.mxu0 0.0
    %1292 = vmatpush1.msra.mxu0 0.0
    %1293 = vmatprep.subr.mxu0 0.0
    %1294 = vmatpush1.msra.mxu0 0.0
    %1295 = vmatprep.subr.mxu0 0.0
    %1296 = vmatpush1.msra.mxu0 0.0
    %1297 = vmatprep.subr.mxu0 0.0
    %1298 = vmatpush1.msra.mxu0 0.0
    %1299 = vmatprep.subr.mxu0 0.0
    %1300 = vmatpush1.msra.mxu0 0.0
    %1301 = vmatprep.subr.mxu0 0.0
    %1302 = vmatpush1.msra.mxu0 0.0
    %1303 = vmatprep.subr.mxu0 0.0
    %1304 = vmatpush1.msra.mxu0 0.0
    %1305 = vmatprep.subr.mxu0 0.0
    %1306 = vmatpush1.msra.mxu0 0.0
    %1307 = vmatprep.subr.mxu0 0.0
    %1308 = vmatpush1.msra.mxu0 0.0
    %1309 = vmatprep.subr.mxu0 0.0
    %1310 = vmatpush1.msra.mxu0 0.0
    %1311 = vmatprep.subr.mxu0 0.0
    %1312 = vmatpush1.msra.mxu0 0.0
    %1313 = vmatprep.subr.mxu0 0.0
    %1314 = vmatpush1.msra.mxu0 0.0
    %1315 = vmatprep.subr.mxu0 0.0
    %1316 = vmatpush1.msra.mxu0 0.0
    %1317 = vmatprep.subr.mxu0 0.0
    %1318 = vmatpush1.msra.mxu0 0.0
    %1319 = vmatprep.subr.mxu0 0.0
    %1320 = vmatpush1.msra.mxu0 0.0
    %1321 = vmatprep.mubr.f32.mxu0 0.0
    %1322 = vmatmul.mubr.f32.gmra.mrb[0].mxu0 %v1255
    %v1323 = vpop.f32.mrb[0].mxu0
    %v1324 = vadd.f32 0.0, %v1323
    %v1325 = vpop.f32.mrb[0].mxu0
    %1326 = vdwg.mxu0
    %v1327 = vadd.f32 %v868, %v1324
    %v1328 = vmul.f32 %v1327, 0.5
    %v1329 = vtanh.pop %v1328
    %v1330 = vadd.f32 %v1329, 1.0
    %v1331 = vmul.f32 %v1330, 0.5
    %v1332 = vadd.f32 %v1324, %v1030
    %1334 = vrot.lane.b32.xlu0 %v1332, 64
    %v1335 = vpop.permute.xlu0 %1334
    %v1337 = vmul.f32 %v1331, %v1335
    %1339 = vrot.lane.b32.xlu0 %v1337, 64
    %v1340 = vpop.permute.xlu0 %1339
    %v1342 = vadd.f32 %v868, %v1340
    %v1343 = vtanh.pop %v1342
    %v1344 = vsub.f32 1.0, %v1331
    %1346 = vrot.lane.b32.xlu0 %v1343, 96
    %v1347 = vpop.permute.xlu0 %1346
    %v1349 = vmul.f32 %v1344, %v1347
    %v1350 = vmul.f32 %v1331, %v1251
    %v1351 = vadd.f32 %v1349, %v1350
    %1353 = vrot.lane.b32.xlu0 %v1351, 96
    %v1354 = vpop.permute.xlu0 %1353
    %v1355 = vsel %vm950, %v1354, 0
    %1357 = vmatprep.subr.mxu0 0.0
    %1358 = vmatpush1.msra.mxu0 %v724
    %1359 = vmatprep.subr.mxu0 0.0
    %1360 = vmatpush1.msra.mxu0 %v725
    %1361 = vmatprep.subr.mxu0 0.0
    %1362 = vmatpush1.msra.mxu0 %v726
    %1363 = vmatprep.subr.mxu0 0.0
    %1364 = vmatpush1.msra.mxu0 %v727
    %1365 = vmatprep.subr.mxu0 0.0
    %1366 = vmatpush1.msra.mxu0 0.0
    %1367 = vmatprep.subr.mxu0 0.0
    %1368 = vmatpush1.msra.mxu0 0.0
    %1369 = vmatprep.subr.mxu0 0.0
    %1370 = vmatpush1.msra.mxu0 0.0
    %1371 = vmatprep.subr.mxu0 0.0
    %1372 = vmatpush1.msra.mxu0 0.0
    %1373 = vmatprep.subr.mxu0 0.0
    %1374 = vmatpush1.msra.mxu0 0.0
    %1375 = vmatprep.subr.mxu0 0.0
    %1376 = vmatpush1.msra.mxu0 0.0
    %1377 = vmatprep.subr.mxu0 0.0
    %1378 = vmatpush1.msra.mxu0 0.0
    %1379 = vmatprep.subr.mxu0 0.0
    %1380 = vmatpush1.msra.mxu0 0.0
    %1381 = vmatprep.subr.mxu0 0.0
    %1382 = vmatpush1.msra.mxu0 0.0
    %1383 = vmatprep.subr.mxu0 0.0
    %1384 = vmatpush1.msra.mxu0 0.0
    %1385 = vmatprep.subr.mxu0 0.0
    %1386 = vmatpush1.msra.mxu0 0.0
    %1387 = vmatprep.subr.mxu0 0.0
    %1388 = vmatpush1.msra.mxu0 0.0
    %1389 = vmatprep.subr.mxu0 0.0
    %1390 = vmatpush1.msra.mxu0 0.0
    %1391 = vmatprep.subr.mxu0 0.0
    %1392 = vmatpush1.msra.mxu0 0.0
    %1393 = vmatprep.subr.mxu0 0.0
    %1394 = vmatpush1.msra.mxu0 0.0
    %1395 = vmatprep.subr.mxu0 0.0
    %1396 = vmatpush1.msra.mxu0 0.0
    %1397 = vmatprep.subr.mxu0 0.0
    %1398 = vmatpush1.msra.mxu0 0.0
    %1399 = vmatprep.subr.mxu0 0.0
    %1400 = vmatpush1.msra.mxu0 0.0
    %1401 = vmatprep.subr.mxu0 0.0
    %1402 = vmatpush1.msra.mxu0 0.0
    %1403 = vmatprep.subr.mxu0 0.0
    %1404 = vmatpush1.msra.mxu0 0.0
    %1405 = vmatprep.subr.mxu0 0.0
    %1406 = vmatpush1.msra.mxu0 0.0
    %1407 = vmatprep.subr.mxu0 0.0
    %1408 = vmatpush1.msra.mxu0 0.0
    %1409 = vmatprep.subr.mxu0 0.0
    %1410 = vmatpush1.msra.mxu0 0.0
    %1411 = vmatprep.subr.mxu0 0.0
    %1412 = vmatpush1.msra.mxu0 0.0
    %1413 = vmatprep.subr.mxu0 0.0
    %1414 = vmatpush1.msra.mxu0 0.0
    %1415 = vmatprep.subr.mxu0 0.0
    %1416 = vmatpush1.msra.mxu0 0.0
    %1417 = vmatprep.subr.mxu0 0.0
    %1418 = vmatpush1.msra.mxu0 0.0
    %1419 = vmatprep.subr.mxu0 0.0
    %1420 = vmatpush1.msra.mxu0 0.0
    %1421 = vmatprep.mubr.f32.mxu0 0.0
    %1422 = vmatmul.mubr.f32.gmra.mrb[0].mxu0 %v1355
    %v1423 = vpop.f32.mrb[0].mxu0
    %v1424 = vadd.f32 0.0, %v1423
    %v1425 = vpop.f32.mrb[0].mxu0
    %1426 = vdwg.mxu0
    %v1427 = vadd.f32 %v873, %v1424
    %v1428 = vmul.f32 %v1427, 0.5
    %v1429 = vtanh.pop %v1428
    %v1430 = vadd.f32 %v1429, 1.0
    %v1431 = vmul.f32 %v1430, 0.5
    %v1432 = vadd.f32 %v1424, %v1030
    %1434 = vrot.lane.b32.xlu0 %v1432, 64
    %v1435 = vpop.permute.xlu0 %1434
    %v1437 = vmul.f32 %v1431, %v1435
    %1439 = vrot.lane.b32.xlu0 %v1437, 64
    %v1440 = vpop.permute.xlu0 %1439
    %v1442 = vadd.f32 %v873, %v1440
    %v1443 = vtanh.pop %v1442
    %v1444 = vsub.f32 1.0, %v1431
    %1446 = vrot.lane.b32.xlu0 %v1443, 96
    %v1447 = vpop.permute.xlu0 %1446
    %v1449 = vmul.f32 %v1444, %v1447
    %v1450 = vmul.f32 %v1431, %v1351
    %v1451 = vadd.f32 %v1449, %v1450
    %1453 = vrot.lane.b32.xlu0 %v1451, 96
    %v1454 = vpop.permute.xlu0 %1453
    %v1455 = vsel %vm950, %v1454, 0
    %1457 = vmatprep.subr.mxu0 0.0
    %1458 = vmatpush1.msra.mxu0 %v724
    %1459 = vmatprep.subr.mxu0 0.0
    %1460 = vmatpush1.msra.mxu0 %v725
    %1461 = vmatprep.subr.mxu0 0.0
    %1462 = vmatpush1.msra.mxu0 %v726
    %1463 = vmatprep.subr.mxu0 0.0
    %1464 = vmatpush1.msra.mxu0 %v727
    %1465 = vmatprep.subr.mxu0 0.0
    %1466 = vmatpush1.msra.mxu0 0.0
    %1467 = vmatprep.subr.mxu0 0.0
    %1468 = vmatpush1.msra.mxu0 0.0
    %1469 = vmatprep.subr.mxu0 0.0
    %1470 = vmatpush1.msra.mxu0 0.0
    %1471 = vmatprep.subr.mxu0 0.0
    %1472 = vmatpush1.msra.mxu0 0.0
    %1473 = vmatprep.subr.mxu0 0.0
    %1474 = vmatpush1.msra.mxu0 0.0
    %1475 = vmatprep.subr.mxu0 0.0
    %1476 = vmatpush1.msra.mxu0 0.0
    %1477 = vmatprep.subr.mxu0 0.0
    %1478 = vmatpush1.msra.mxu0 0.0
    %1479 = vmatprep.subr.mxu0 0.0
    %1480 = vmatpush1.msra.mxu0 0.0
    %1481 = vmatprep.subr.mxu0 0.0
    %1482 = vmatpush1.msra.mxu0 0.0
    %1483 = vmatprep.subr.mxu0 0.0
    %1484 = vmatpush1.msra.mxu0 0.0
    %1485 = vmatprep.subr.mxu0 0.0
    %1486 = vmatpush1.msra.mxu0 0.0
    %1487 = vmatprep.subr.mxu0 0.0
    %1488 = vmatpush1.msra.mxu0 0.0
    %1489 = vmatprep.subr.mxu0 0.0
    %1490 = vmatpush1.msra.mxu0 0.0
    %1491 = vmatprep.subr.mxu0 0.0
    %1492 = vmatpush1.msra.mxu0 0.0
    %1493 = vmatprep.subr.mxu0 0.0
    %1494 = vmatpush1.msra.mxu0 0.0
    %1495 = vmatprep.subr.mxu0 0.0
    %1496 = vmatpush1.msra.mxu0 0.0
    %1497 = vmatprep.subr.mxu0 0.0
    %1498 = vmatpush1.msra.mxu0 0.0
    %1499 = vmatprep.subr.mxu0 0.0
    %1500 = vmatpush1.msra.mxu0 0.0
    %1501 = vmatprep.subr.mxu0 0.0
    %1502 = vmatpush1.msra.mxu0 0.0
    %1503 = vmatprep.subr.mxu0 0.0
    %1504 = vmatpush1.msra.mxu0 0.0
    %1505 = vmatprep.subr.mxu0 0.0
    %1506 = vmatpush1.msra.mxu0 0.0
    %1507 = vmatprep.subr.mxu0 0.0
    %1508 = vmatpush1.msra.mxu0 0.0
    %1509 = vmatprep.subr.mxu0 0.0
    %1510 = vmatpush1.msra.mxu0 0.0
    %1511 = vmatprep.subr.mxu0 0.0
    %1512 = vmatpush1.msra.mxu0 0.0
    %1513 = vmatprep.subr.mxu0 0.0
    %1514 = vmatpush1.msra.mxu0 0.0
    %1515 = vmatprep.subr.mxu0 0.0
    %1516 = vmatpush1.msra.mxu0 0.0
    %1517 = vmatprep.subr.mxu0 0.0
    %1518 = vmatpush1.msra.mxu0 0.0
    %1519 = vmatprep.subr.mxu0 0.0
    %1520 = vmatpush1.msra.mxu0 0.0
    %1521 = vmatprep.mubr.f32.mxu0 0.0
    %1522 = vmatmul.mubr.f32.gmra.mrb[0].mxu0 %v1455
    %v1523 = vpop.f32.mrb[0].mxu0
    %v1524 = vadd.f32 0.0, %v1523
    %v1525 = vpop.f32.mrb[0].mxu0
    %1526 = vdwg.mxu0
    %v1527 = vadd.f32 %v878, %v1524
    %v1528 = vmul.f32 %v1527, 0.5
    %v1529 = vtanh.pop %v1528
    %v1530 = vadd.f32 %v1529, 1.0
    %v1531 = vmul.f32 %v1530, 0.5
    %v1532 = vadd.f32 %v1524, %v1030
    %1534 = vrot.lane.b32.xlu0 %v1532, 64
    %v1535 = vpop.permute.xlu0 %1534
    %v1537 = vmul.f32 %v1531, %v1535
    %1539 = vrot.lane.b32.xlu0 %v1537, 64
    %v1540 = vpop.permute.xlu0 %1539
    %v1542 = vadd.f32 %v878, %v1540
    %v1543 = vtanh.pop %v1542
    %v1544 = vsub.f32 1.0, %v1531
    %1546 = vrot.lane.b32.xlu0 %v1543, 96
    %v1547 = vpop.permute.xlu0 %1546
    %v1549 = vmul.f32 %v1544, %v1547
    %v1550 = vmul.f32 %v1531, %v1451
    %v1551 = vadd.f32 %v1549, %v1550
    %1553 = vrot.lane.b32.xlu0 %v1551, 96
    %v1554 = vpop.permute.xlu0 %1553
    %v1555 = vsel %vm950, %v1554, 0
    %1557 = vmatprep.subr.mxu0 0.0
    %1558 = vmatpush1.msra.mxu0 %v724
    %1559 = vmatprep.subr.mxu0 0.0
    %1560 = vmatpush1.msra.mxu0 %v725
    %1561 = vmatprep.subr.mxu0 0.0
    %1562 = vmatpush1.msra.mxu0 %v726
    %1563 = vmatprep.subr.mxu0 0.0
    %1564 = vmatpush1.msra.mxu0 %v727
    %1565 = vmatprep.subr.mxu0 0.0
    %1566 = vmatpush1.msra.mxu0 0.0
    %1567 = vmatprep.subr.mxu0 0.0
    %1568 = vmatpush1.msra.mxu0 0.0
    %1569 = vmatprep.subr.mxu0 0.0
    %1570 = vmatpush1.msra.mxu0 0.0
    %1571 = vmatprep.subr.mxu0 0.0
    %1572 = vmatpush1.msra.mxu0 0.0
    %1573 = vmatprep.subr.mxu0 0.0
    %1574 = vmatpush1.msra.mxu0 0.0
    %1575 = vmatprep.subr.mxu0 0.0
    %1576 = vmatpush1.msra.mxu0 0.0
    %1577 = vmatprep.subr.mxu0 0.0
    %1578 = vmatpush1.msra.mxu0 0.0
    %1579 = vmatprep.subr.mxu0 0.0
    %1580 = vmatpush1.msra.mxu0 0.0
    %1581 = vmatprep.subr.mxu0 0.0
    %1582 = vmatpush1.msra.mxu0 0.0
    %1583 = vmatprep.subr.mxu0 0.0
    %1584 = vmatpush1.msra.mxu0 0.0
    %1585 = vmatprep.subr.mxu0 0.0
    %1586 = vmatpush1.msra.mxu0 0.0
    %1587 = vmatprep.subr.mxu0 0.0
    %1588 = vmatpush1.msra.mxu0 0.0
    %1589 = vmatprep.subr.mxu0 0.0
    %1590 = vmatpush1.msra.mxu0 0.0
    %1591 = vmatprep.subr.mxu0 0.0
    %1592 = vmatpush1.msra.mxu0 0.0
    %1593 = vmatprep.subr.mxu0 0.0
    %1594 = vmatpush1.msra.mxu0 0.0
    %1595 = vmatprep.subr.mxu0 0.0
    %1596 = vmatpush1.msra.mxu0 0.0
    %1597 = vmatprep.subr.mxu0 0.0
    %1598 = vmatpush1.msra.mxu0 0.0
    %1599 = vmatprep.subr.mxu0 0.0
    %1600 = vmatpush1.msra.mxu0 0.0
    %1601 = vmatprep.subr.mxu0 0.0
    %1602 = vmatpush1.msra.mxu0 0.0
    %1603 = vmatprep.subr.mxu0 0.0
    %1604 = vmatpush1.msra.mxu0 0.0
    %1605 = vmatprep.subr.mxu0 0.0
    %1606 = vmatpush1.msra.mxu0 0.0
    %1607 = vmatprep.subr.mxu0 0.0
    %1608 = vmatpush1.msra.mxu0 0.0
    %1609 = vmatprep.subr.mxu0 0.0
    %1610 = vmatpush1.msra.mxu0 0.0
    %1611 = vmatprep.subr.mxu0 0.0
    %1612 = vmatpush1.msra.mxu0 0.0
    %1613 = vmatprep.subr.mxu0 0.0
    %1614 = vmatpush1.msra.mxu0 0.0
    %1615 = vmatprep.subr.mxu0 0.0
    %1616 = vmatpush1.msra.mxu0 0.0
    %1617 = vmatprep.subr.mxu0 0.0
    %1618 = vmatpush1.msra.mxu0 0.0
    %1619 = vmatprep.subr.mxu0 0.0
    %1620 = vmatpush1.msra.mxu0 0.0
    %1621 = vmatprep.mubr.f32.mxu0 0.0
    %1622 = vmatmul.mubr.f32.gmra.mrb[0].mxu0 %v1555
    %v1623 = vpop.f32.mrb[0].mxu0
    %v1624 = vadd.f32 0.0, %v1623
    %v1625 = vpop.f32.mrb[0].mxu0
    %1626 = vdwg.mxu0
    %v1627 = vadd.f32 %v883, %v1624
    %v1628 = vmul.f32 %v1627, 0.5
    %v1629 = vtanh.pop %v1628
    %v1630 = vadd.f32 %v1629, 1.0
    %v1631 = vmul.f32 %v1630, 0.5
    %v1632 = vadd.f32 %v1624, %v1030
    %1634 = vrot.lane.b32.xlu0 %v1632, 64
    %v1635 = vpop.permute.xlu0 %1634
    %v1637 = vmul.f32 %v1631, %v1635
    %1639 = vrot.lane.b32.xlu0 %v1637, 64
    %v1640 = vpop.permute.xlu0 %1639
    %v1642 = vadd.f32 %v883, %v1640
    %v1643 = vtanh.pop %v1642
    %v1644 = vsub.f32 1.0, %v1631
    %1646 = vrot.lane.b32.xlu0 %v1643, 96
    %v1647 = vpop.permute.xlu0 %1646
    %v1649 = vmul.f32 %v1644, %v1647
    %v1650 = vmul.f32 %v1631, %v1551
    %v1651 = vadd.f32 %v1649, %v1650
    %1653 = vrot.lane.b32.xlu0 %v1651, 96
    %v1654 = vpop.permute.xlu0 %1653
    %v1655 = vsel %vm950, %v1654, 0
    %1657 = vmatprep.subr.mxu0 0.0
    %1658 = vmatpush1.msra.mxu0 %v724
    %1659 = vmatprep.subr.mxu0 0.0
    %1660 = vmatpush1.msra.mxu0 %v725
    %1661 = vmatprep.subr.mxu0 0.0
    %1662 = vmatpush1.msra.mxu0 %v726
    %1663 = vmatprep.subr.mxu0 0.0
    %1664 = vmatpush1.msra.mxu0 %v727
    %1665 = vmatprep.subr.mxu0 0.0
    %1666 = vmatpush1.msra.mxu0 0.0
    %1667 = vmatprep.subr.mxu0 0.0
    %1668 = vmatpush1.msra.mxu0 0.0
    %1669 = vmatprep.subr.mxu0 0.0
    %1670 = vmatpush1.msra.mxu0 0.0
    %1671 = vmatprep.subr.mxu0 0.0
    %1672 = vmatpush1.msra.mxu0 0.0
    %1673 = vmatprep.subr.mxu0 0.0
    %1674 = vmatpush1.msra.mxu0 0.0
    %1675 = vmatprep.subr.mxu0 0.0
    %1676 = vmatpush1.msra.mxu0 0.0
    %1677 = vmatprep.subr.mxu0 0.0
    %1678 = vmatpush1.msra.mxu0 0.0
    %1679 = vmatprep.subr.mxu0 0.0
    %1680 = vmatpush1.msra.mxu0 0.0
    %1681 = vmatprep.subr.mxu0 0.0
    %1682 = vmatpush1.msra.mxu0 0.0
    %1683 = vmatprep.subr.mxu0 0.0
    %1684 = vmatpush1.msra.mxu0 0.0
    %1685 = vmatprep.subr.mxu0 0.0
    %1686 = vmatpush1.msra.mxu0 0.0
    %1687 = vmatprep.subr.mxu0 0.0
    %1688 = vmatpush1.msra.mxu0 0.0
    %1689 = vmatprep.subr.mxu0 0.0
    %1690 = vmatpush1.msra.mxu0 0.0
    %1691 = vmatprep.subr.mxu0 0.0
    %1692 = vmatpush1.msra.mxu0 0.0
    %1693 = vmatprep.subr.mxu0 0.0
    %1694 = vmatpush1.msra.mxu0 0.0
    %1695 = vmatprep.subr.mxu0 0.0
    %1696 = vmatpush1.msra.mxu0 0.0
    %1697 = vmatprep.subr.mxu0 0.0
    %1698 = vmatpush1.msra.mxu0 0.0
    %1699 = vmatprep.subr.mxu0 0.0
    %1700 = vmatpush1.msra.mxu0 0.0
    %1701 = vmatprep.subr.mxu0 0.0
    %1702 = vmatpush1.msra.mxu0 0.0
    %1703 = vmatprep.subr.mxu0 0.0
    %1704 = vmatpush1.msra.mxu0 0.0
    %1705 = vmatprep.subr.mxu0 0.0
    %1706 = vmatpush1.msra.mxu0 0.0
    %1707 = vmatprep.subr.mxu0 0.0
    %1708 = vmatpush1.msra.mxu0 0.0
    %1709 = vmatprep.subr.mxu0 0.0
    %1710 = vmatpush1.msra.mxu0 0.0
    %1711 = vmatprep.subr.mxu0 0.0
    %1712 = vmatpush1.msra.mxu0 0.0
    %1713 = vmatprep.subr.mxu0 0.0
    %1714 = vmatpush1.msra.mxu0 0.0
    %1715 = vmatprep.subr.mxu0 0.0
    %1716 = vmatpush1.msra.mxu0 0.0
    %1717 = vmatprep.subr.mxu0 0.0
    %1718 = vmatpush1.msra.mxu0 0.0
    %1719 = vmatprep.subr.mxu0 0.0
    %1720 = vmatpush1.msra.mxu0 0.0
    %1721 = vmatprep.mubr.f32.mxu0 0.0
    %1722 = vmatmul.mubr.f32.gmra.mrb[0].mxu0 %v1655
    %v1723 = vpop.f32.mrb[0].mxu0
    %v1724 = vadd.f32 0.0, %v1723
    %v1725 = vpop.f32.mrb[0].mxu0
    %1726 = vdwg.mxu0
    %v1727 = vadd.f32 %v888, %v1724
    %v1728 = vmul.f32 %v1727, 0.5
    %v1729 = vtanh.pop %v1728
    %v1730 = vadd.f32 %v1729, 1.0
    %v1731 = vmul.f32 %v1730, 0.5
    %v1732 = vadd.f32 %v1724, %v1030
    %1734 = vrot.lane.b32.xlu0 %v1732, 64
    %v1735 = vpop.permute.xlu0 %1734
    %v1737 = vmul.f32 %v1731, %v1735
    %1739 = vrot.lane.b32.xlu0 %v1737, 64
    %v1740 = vpop.permute.xlu0 %1739
    %v1742 = vadd.f32 %v888, %v1740
    %v1743 = vtanh.pop %v1742
    %v1744 = vsub.f32 1.0, %v1731
    %1746 = vrot.lane.b32.xlu0 %v1743, 96
    %v1747 = vpop.permute.xlu0 %1746
    %v1749 = vmul.f32 %v1744, %v1747
    %v1750 = vmul.f32 %v1731, %v1651
    %v1751 = vadd.f32 %v1749, %v1750
    %1753 = vrot.lane.b32.xlu0 %v1751, 96
    %v1754 = vpop.permute.xlu0 %1753
    %v1755 = vsel %vm950, %v1754, 0
    %1757 = vmatprep.subr.mxu0 0.0
    %1758 = vmatpush1.msra.mxu0 %v724
    %1759 = vmatprep.subr.mxu0 0.0
    %1760 = vmatpush1.msra.mxu0 %v725
    %1761 = vmatprep.subr.mxu0 0.0
    %1762 = vmatpush1.msra.mxu0 %v726
    %1763 = vmatprep.subr.mxu0 0.0
    %1764 = vmatpush1.msra.mxu0 %v727
    %1765 = vmatprep.subr.mxu0 0.0
    %1766 = vmatpush1.msra.mxu0 0.0
    %1767 = vmatprep.subr.mxu0 0.0
    %1768 = vmatpush1.msra.mxu0 0.0
    %1769 = vmatprep.subr.mxu0 0.0
    %1770 = vmatpush1.msra.mxu0 0.0
    %1771 = vmatprep.subr.mxu0 0.0
    %1772 = vmatpush1.msra.mxu0 0.0
    %1773 = vmatprep.subr.mxu0 0.0
    %1774 = vmatpush1.msra.mxu0 0.0
    %1775 = vmatprep.subr.mxu0 0.0
    %1776 = vmatpush1.msra.mxu0 0.0
    %1777 = vmatprep.subr.mxu0 0.0
    %1778 = vmatpush1.msra.mxu0 0.0
    %1779 = vmatprep.subr.mxu0 0.0
    %1780 = vmatpush1.msra.mxu0 0.0
    %1781 = vmatprep.subr.mxu0 0.0
    %1782 = vmatpush1.msra.mxu0 0.0
    %1783 = vmatprep.subr.mxu0 0.0
    %1784 = vmatpush1.msra.mxu0 0.0
    %1785 = vmatprep.subr.mxu0 0.0
    %1786 = vmatpush1.msra.mxu0 0.0
    %1787 = vmatprep.subr.mxu0 0.0
    %1788 = vmatpush1.msra.mxu0 0.0
    %1789 = vmatprep.subr.mxu0 0.0
    %1790 = vmatpush1.msra.mxu0 0.0
    %1791 = vmatprep.subr.mxu0 0.0
    %1792 = vmatpush1.msra.mxu0 0.0
    %1793 = vmatprep.subr.mxu0 0.0
    %1794 = vmatpush1.msra.mxu0 0.0
    %1795 = vmatprep.subr.mxu0 0.0
    %1796 = vmatpush1.msra.mxu0 0.0
    %1797 = vmatprep.subr.mxu0 0.0
    %1798 = vmatpush1.msra.mxu0 0.0
    %1799 = vmatprep.subr.mxu0 0.0
    %1800 = vmatpush1.msra.mxu0 0.0
    %1801 = vmatprep.subr.mxu0 0.0
    %1802 = vmatpush1.msra.mxu0 0.0
    %1803 = vmatprep.subr.mxu0 0.0
    %1804 = vmatpush1.msra.mxu0 0.0
    %1805 = vmatprep.subr.mxu0 0.0
    %1806 = vmatpush1.msra.mxu0 0.0
    %1807 = vmatprep.subr.mxu0 0.0
    %1808 = vmatpush1.msra.mxu0 0.0
    %1809 = vmatprep.subr.mxu0 0.0
    %1810 = vmatpush1.msra.mxu0 0.0
    %1811 = vmatprep.subr.mxu0 0.0
    %1812 = vmatpush1.msra.mxu0 0.0
    %1813 = vmatprep.subr.mxu0 0.0
    %1814 = vmatpush1.msra.mxu0 0.0
    %1815 = vmatprep.subr.mxu0 0.0
    %1816 = vmatpush1.msra.mxu0 0.0
    %1817 = vmatprep.subr.mxu0 0.0
    %1818 = vmatpush1.msra.mxu0 0.0
    %1819 = vmatprep.subr.mxu0 0.0
    %1820 = vmatpush1.msra.mxu0 0.0
    %1821 = vmatprep.mubr.f32.mxu0 0.0
    %1822 = vmatmul.mubr.f32.gmra.mrb[0].mxu0 %v1755
    %v1823 = vpop.f32.mrb[0].mxu0
    %v1824 = vadd.f32 0.0, %v1823
    %v1825 = vpop.f32.mrb[0].mxu0
    %1826 = vdwg.mxu0
    %v1827 = vadd.f32 %v893, %v1824
    %v1828 = vmul.f32 %v1827, 0.5
    %v1829 = vtanh.pop %v1828
    %v1830 = vadd.f32 %v1829, 1.0
    %v1831 = vmul.f32 %v1830, 0.5
    %v1832 = vadd.f32 %v1824, %v1030
    %1834 = vrot.lane.b32.xlu0 %v1832, 64
    %v1835 = vpop.permute.xlu0 %1834
    %v1837 = vmul.f32 %v1831, %v1835
    %1839 = vrot.lane.b32.xlu0 %v1837, 64
    %v1840 = vpop.permute.xlu0 %1839
    %v1842 = vadd.f32 %v893, %v1840
    %v1843 = vtanh.pop %v1842
    %v1844 = vsub.f32 1.0, %v1831
    %1846 = vrot.lane.b32.xlu0 %v1843, 96
    %v1847 = vpop.permute.xlu0 %1846
    %v1849 = vmul.f32 %v1844, %v1847
    %v1850 = vmul.f32 %v1831, %v1751
    %v1851 = vadd.f32 %v1849, %v1850
    %1853 = vrot.lane.b32.xlu0 %v1851, 96
    %v1854 = vpop.permute.xlu0 %1853
    %v1855 = vsel %vm950, %v1854, 0
    %1857 = vmatprep.subr.mxu0 0.0
    %1858 = vmatpush1.msra.mxu0 %v724
    %1859 = vmatprep.subr.mxu0 0.0
    %1860 = vmatpush1.msra.mxu0 %v725
    %1861 = vmatprep.subr.mxu0 0.0
    %1862 = vmatpush1.msra.mxu0 %v726
    %1863 = vmatprep.subr.mxu0 0.0
    %1864 = vmatpush1.msra.mxu0 %v727
    %1865 = vmatprep.subr.mxu0 0.0
    %1866 = vmatpush1.msra.mxu0 0.0
    %1867 = vmatprep.subr.mxu0 0.0
    %1868 = vmatpush1.msra.mxu0 0.0
    %1869 = vmatprep.subr.mxu0 0.0
    %1870 = vmatpush1.msra.mxu0 0.0
    %1871 = vmatprep.subr.mxu0 0.0
    %1872 = vmatpush1.msra.mxu0 0.0
    %1873 = vmatprep.subr.mxu0 0.0
    %1874 = vmatpush1.msra.mxu0 0.0
    %1875 = vmatprep.subr.mxu0 0.0
    %1876 = vmatpush1.msra.mxu0 0.0
    %1877 = vmatprep.subr.mxu0 0.0
    %1878 = vmatpush1.msra.mxu0 0.0
    %1879 = vmatprep.subr.mxu0 0.0
    %1880 = vmatpush1.msra.mxu0 0.0
    %1881 = vmatprep.subr.mxu0 0.0
    %1882 = vmatpush1.msra.mxu0 0.0
    %1883 = vmatprep.subr.mxu0 0.0
    %1884 = vmatpush1.msra.mxu0 0.0
    %1885 = vmatprep.subr.mxu0 0.0
    %1886 = vmatpush1.msra.mxu0 0.0
    %1887 = vmatprep.subr.mxu0 0.0
    %1888 = vmatpush1.msra.mxu0 0.0
    %1889 = vmatprep.subr.mxu0 0.0
    %1890 = vmatpush1.msra.mxu0 0.0
    %1891 = vmatprep.subr.mxu0 0.0
    %1892 = vmatpush1.msra.mxu0 0.0
    %1893 = vmatprep.subr.mxu0 0.0
    %1894 = vmatpush1.msra.mxu0 0.0
    %1895 = vmatprep.subr.mxu0 0.0
    %1896 = vmatpush1.msra.mxu0 0.0
    %1897 = vmatprep.subr.mxu0 0.0
    %1898 = vmatpush1.msra.mxu0 0.0
    %1899 = vmatprep.subr.mxu0 0.0
    %1900 = vmatpush1.msra.mxu0 0.0
    %1901 = vmatprep.subr.mxu0 0.0
    %1902 = vmatpush1.msra.mxu0 0.0
    %1903 = vmatprep.subr.mxu0 0.0
    %1904 = vmatpush1.msra.mxu0 0.0
    %1905 = vmatprep.subr.mxu0 0.0
    %1906 = vmatpush1.msra.mxu0 0.0
    %1907 = vmatprep.subr.mxu0 0.0
    %1908 = vmatpush1.msra.mxu0 0.0
    %1909 = vmatprep.subr.mxu0 0.0
    %1910 = vmatpush1.msra.mxu0 0.0
    %1911 = vmatprep.subr.mxu0 0.0
    %1912 = vmatpush1.msra.mxu0 0.0
    %1913 = vmatprep.subr.mxu0 0.0
    %1914 = vmatpush1.msra.mxu0 0.0
    %1915 = vmatprep.subr.mxu0 0.0
    %1916 = vmatpush1.msra.mxu0 0.0
    %1917 = vmatprep.subr.mxu0 0.0
    %1918 = vmatpush1.msra.mxu0 0.0
    %1919 = vmatprep.subr.mxu0 0.0
    %1920 = vmatpush1.msra.mxu0 0.0
    %1921 = vmatprep.mubr.f32.mxu0 0.0
    %1922 = vmatmul.mubr.f32.gmra.mrb[0].mxu0 %v1855
    %v1923 = vpop.f32.mrb[0].mxu0
    %v1924 = vadd.f32 0.0, %v1923
    %v1925 = vpop.f32.mrb[0].mxu0
    %1926 = vdwg.mxu0
    %v1927 = vadd.f32 %v898, %v1924
    %v1928 = vmul.f32 %v1927, 0.5
    %v1929 = vtanh.pop %v1928
    %v1930 = vadd.f32 %v1929, 1.0
    %v1931 = vmul.f32 %v1930, 0.5
    %v1932 = vadd.f32 %v1924, %v1030
    %1934 = vrot.lane.b32.xlu0 %v1932, 64
    %v1935 = vpop.permute.xlu0 %1934
    %v1937 = vmul.f32 %v1931, %v1935
    %1939 = vrot.lane.b32.xlu0 %v1937, 64
    %v1940 = vpop.permute.xlu0 %1939
    %v1942 = vadd.f32 %v898, %v1940
    %v1943 = vtanh.pop %v1942
    %v1944 = vsub.f32 1.0, %v1931
    %1946 = vrot.lane.b32.xlu0 %v1943, 96
    %v1947 = vpop.permute.xlu0 %1946
    %v1949 = vmul.f32 %v1944, %v1947
    %v1950 = vmul.f32 %v1931, %v1851
    %v1951 = vadd.f32 %v1949, %v1950
    %1953 = vrot.lane.b32.xlu0 %v1951, 96
    %v1954 = vpop.permute.xlu0 %1953
    %v1955 = vsel %vm950, %v1954, 0
    %1957 = vmatprep.subr.mxu0 0.0
    %1958 = vmatpush1.msra.mxu0 %v724
    %1959 = vmatprep.subr.mxu0 0.0
    %1960 = vmatpush1.msra.mxu0 %v725
    %1961 = vmatprep.subr.mxu0 0.0
    %1962 = vmatpush1.msra.mxu0 %v726
    %1963 = vmatprep.subr.mxu0 0.0
    %1964 = vmatpush1.msra.mxu0 %v727
    %1965 = vmatprep.subr.mxu0 0.0
    %1966 = vmatpush1.msra.mxu0 0.0
    %1967 = vmatprep.subr.mxu0 0.0
    %1968 = vmatpush1.msra.mxu0 0.0
    %1969 = vmatprep.subr.mxu0 0.0
    %1970 = vmatpush1.msra.mxu0 0.0
    %1971 = vmatprep.subr.mxu0 0.0
    %1972 = vmatpush1.msra.mxu0 0.0
    %1973 = vmatprep.subr.mxu0 0.0
    %1974 = vmatpush1.msra.mxu0 0.0
    %1975 = vmatprep.subr.mxu0 0.0
    %1976 = vmatpush1.msra.mxu0 0.0
    %1977 = vmatprep.subr.mxu0 0.0
    %1978 = vmatpush1.msra.mxu0 0.0
    %1979 = vmatprep.subr.mxu0 0.0
    %1980 = vmatpush1.msra.mxu0 0.0
    %1981 = vmatprep.subr.mxu0 0.0
    %1982 = vmatpush1.msra.mxu0 0.0
    %1983 = vmatprep.subr.mxu0 0.0
    %1984 = vmatpush1.msra.mxu0 0.0
    %1985 = vmatprep.subr.mxu0 0.0
    %1986 = vmatpush1.msra.mxu0 0.0
    %1987 = vmatprep.subr.mxu0 0.0
    %1988 = vmatpush1.msra.mxu0 0.0
    %1989 = vmatprep.subr.mxu0 0.0
    %1990 = vmatpush1.msra.mxu0 0.0
    %1991 = vmatprep.subr.mxu0 0.0
    %1992 = vmatpush1.msra.mxu0 0.0
    %1993 = vmatprep.subr.mxu0 0.0
    %1994 = vmatpush1.msra.mxu0 0.0
    %1995 = vmatprep.subr.mxu0 0.0
    %1996 = vmatpush1.msra.mxu0 0.0
    %1997 = vmatprep.subr.mxu0 0.0
    %1998 = vmatpush1.msra.mxu0 0.0
    %1999 = vmatprep.subr.mxu0 0.0
    %2000 = vmatpush1.msra.mxu0 0.0
    %2001 = vmatprep.subr.mxu0 0.0
    %2002 = vmatpush1.msra.mxu0 0.0
    %2003 = vmatprep.subr.mxu0 0.0
    %2004 = vmatpush1.msra.mxu0 0.0
    %2005 = vmatprep.subr.mxu0 0.0
    %2006 = vmatpush1.msra.mxu0 0.0
    %2007 = vmatprep.subr.mxu0 0.0
    %2008 = vmatpush1.msra.mxu0 0.0
    %2009 = vmatprep.subr.mxu0 0.0
    %2010 = vmatpush1.msra.mxu0 0.0
    %2011 = vmatprep.subr.mxu0 0.0
    %2012 = vmatpush1.msra.mxu0 0.0
    %2013 = vmatprep.subr.mxu0 0.0
    %2014 = vmatpush1.msra.mxu0 0.0
    %2015 = vmatprep.subr.mxu0 0.0
    %2016 = vmatpush1.msra.mxu0 0.0
    %2017 = vmatprep.subr.mxu0 0.0
    %2018 = vmatpush1.msra.mxu0 0.0
    %2019 = vmatprep.subr.mxu0 0.0
    %2020 = vmatpush1.msra.mxu0 0.0
    %2021 = vmatprep.mubr.f32.mxu0 0.0
    %2022 = vmatmul.mubr.f32.gmra.mrb[0].mxu0 %v1955
    %v2023 = vpop.f32.mrb[0].mxu0
    %v2024 = vadd.f32 0.0, %v2023
    %v2025 = vpop.f32.mrb[0].mxu0
    %2026 = vdwg.mxu0
    %v2027 = vadd.f32 %v903, %v2024
    %v2028 = vmul.f32 %v2027, 0.5
    %v2029 = vtanh.pop %v2028
    %v2030 = vadd.f32 %v2029, 1.0
    %v2031 = vmul.f32 %v2030, 0.5
    %v2032 = vadd.f32 %v2024, %v1030
    %2034 = vrot.lane.b32.xlu0 %v2032, 64
    %v2035 = vpop.permute.xlu0 %2034
    %v2037 = vmul.f32 %v2031, %v2035
    %2039 = vrot.lane.b32.xlu0 %v2037, 64
    %v2040 = vpop.permute.xlu0 %2039
    %v2042 = vadd.f32 %v903, %v2040
    %v2043 = vtanh.pop %v2042
    %v2044 = vsub.f32 1.0, %v2031
    %2046 = vrot.lane.b32.xlu0 %v2043, 96
    %v2047 = vpop.permute.xlu0 %2046
    %v2049 = vmul.f32 %v2044, %v2047
    %v2050 = vmul.f32 %v2031, %v1951
    %v2051 = vadd.f32 %v2049, %v2050
    %2053 = vrot.lane.b32.xlu0 %v2051, 96
    %v2054 = vpop.permute.xlu0 %2053
    %v2055 = vsel %vm950, %v2054, 0
    %2057 = vmatprep.subr.mxu0 0.0
    %2058 = vmatpush1.msra.mxu0 %v724
    %2059 = vmatprep.subr.mxu0 0.0
    %2060 = vmatpush1.msra.mxu0 %v725
    %2061 = vmatprep.subr.mxu0 0.0
    %2062 = vmatpush1.msra.mxu0 %v726
    %2063 = vmatprep.subr.mxu0 0.0
    %2064 = vmatpush1.msra.mxu0 %v727
    %2065 = vmatprep.subr.mxu0 0.0
    %2066 = vmatpush1.msra.mxu0 0.0
    %2067 = vmatprep.subr.mxu0 0.0
    %2068 = vmatpush1.msra.mxu0 0.0
    %2069 = vmatprep.subr.mxu0 0.0
    %2070 = vmatpush1.msra.mxu0 0.0
    %2071 = vmatprep.subr.mxu0 0.0
    %2072 = vmatpush1.msra.mxu0 0.0
    %2073 = vmatprep.subr.mxu0 0.0
    %2074 = vmatpush1.msra.mxu0 0.0
    %2075 = vmatprep.subr.mxu0 0.0
    %2076 = vmatpush1.msra.mxu0 0.0
    %2077 = vmatprep.subr.mxu0 0.0
    %2078 = vmatpush1.msra.mxu0 0.0
    %2079 = vmatprep.subr.mxu0 0.0
    %2080 = vmatpush1.msra.mxu0 0.0
    %2081 = vmatprep.subr.mxu0 0.0
    %2082 = vmatpush1.msra.mxu0 0.0
    %2083 = vmatprep.subr.mxu0 0.0
    %2084 = vmatpush1.msra.mxu0 0.0
    %2085 = vmatprep.subr.mxu0 0.0
    %2086 = vmatpush1.msra.mxu0 0.0
    %2087 = vmatprep.subr.mxu0 0.0
    %2088 = vmatpush1.msra.mxu0 0.0
    %2089 = vmatprep.subr.mxu0 0.0
    %2090 = vmatpush1.msra.mxu0 0.0
    %2091 = vmatprep.subr.mxu0 0.0
    %2092 = vmatpush1.msra.mxu0 0.0
    %2093 = vmatprep.subr.mxu0 0.0
    %2094 = vmatpush1.msra.mxu0 0.0
    %2095 = vmatprep.subr.mxu0 0.0
    %2096 = vmatpush1.msra.mxu0 0.0
    %2097 = vmatprep.subr.mxu0 0.0
    %2098 = vmatpush1.msra.mxu0 0.0
    %2099 = vmatprep.subr.mxu0 0.0
    %2100 = vmatpush1.msra.mxu0 0.0
    %2101 = vmatprep.subr.mxu0 0.0
    %2102 = vmatpush1.msra.mxu0 0.0
    %2103 = vmatprep.subr.mxu0 0.0
    %2104 = vmatpush1.msra.mxu0 0.0
    %2105 = vmatprep.subr.mxu0 0.0
    %2106 = vmatpush1.msra.mxu0 0.0
    %2107 = vmatprep.subr.mxu0 0.0
    %2108 = vmatpush1.msra.mxu0 0.0
    %2109 = vmatprep.subr.mxu0 0.0
    %2110 = vmatpush1.msra.mxu0 0.0
    %2111 = vmatprep.subr.mxu0 0.0
    %2112 = vmatpush1.msra.mxu0 0.0
    %2113 = vmatprep.subr.mxu0 0.0
    %2114 = vmatpush1.msra.mxu0 0.0
    %2115 = vmatprep.subr.mxu0 0.0
    %2116 = vmatpush1.msra.mxu0 0.0
    %2117 = vmatprep.subr.mxu0 0.0
    %2118 = vmatpush1.msra.mxu0 0.0
    %2119 = vmatprep.subr.mxu0 0.0
    %2120 = vmatpush1.msra.mxu0 0.0
    %2121 = vmatprep.mubr.f32.mxu0 0.0
    %2122 = vmatmul.mubr.f32.gmra.mrb[0].mxu0 %v2055
    %v2123 = vpop.f32.mrb[0].mxu0
    %v2124 = vadd.f32 0.0, %v2123
    %v2125 = vpop.f32.mrb[0].mxu0
    %2126 = vdwg.mxu0
    %v2127 = vadd.f32 %v908, %v2124
    %v2128 = vmul.f32 %v2127, 0.5
    %v2129 = vtanh.pop %v2128
    %v2130 = vadd.f32 %v2129, 1.0
    %v2131 = vmul.f32 %v2130, 0.5
    %v2132 = vadd.f32 %v2124, %v1030
    %2134 = vrot.lane.b32.xlu0 %v2132, 64
    %v2135 = vpop.permute.xlu0 %2134
    %v2137 = vmul.f32 %v2131, %v2135
    %2139 = vrot.lane.b32.xlu0 %v2137, 64
    %v2140 = vpop.permute.xlu0 %2139
    %v2142 = vadd.f32 %v908, %v2140
    %v2143 = vtanh.pop %v2142
    %v2144 = vsub.f32 1.0, %v2131
    %2146 = vrot.lane.b32.xlu0 %v2143, 96
    %v2147 = vpop.permute.xlu0 %2146
    %v2149 = vmul.f32 %v2144, %v2147
    %v2150 = vmul.f32 %v2131, %v2051
    %v2151 = vadd.f32 %v2149, %v2150
    %2153 = vrot.lane.b32.xlu0 %v2151, 96
    %v2154 = vpop.permute.xlu0 %2153
    %v2155 = vsel %vm950, %v2154, 0
    %2157 = vmatprep.subr.mxu0 0.0
    %2158 = vmatpush1.msra.mxu0 %v724
    %2159 = vmatprep.subr.mxu0 0.0
    %2160 = vmatpush1.msra.mxu0 %v725
    %2161 = vmatprep.subr.mxu0 0.0
    %2162 = vmatpush1.msra.mxu0 %v726
    %2163 = vmatprep.subr.mxu0 0.0
    %2164 = vmatpush1.msra.mxu0 %v727
    %2165 = vmatprep.subr.mxu0 0.0
    %2166 = vmatpush1.msra.mxu0 0.0
    %2167 = vmatprep.subr.mxu0 0.0
    %2168 = vmatpush1.msra.mxu0 0.0
    %2169 = vmatprep.subr.mxu0 0.0
    %2170 = vmatpush1.msra.mxu0 0.0
    %2171 = vmatprep.subr.mxu0 0.0
    %2172 = vmatpush1.msra.mxu0 0.0
    %2173 = vmatprep.subr.mxu0 0.0
    %2174 = vmatpush1.msra.mxu0 0.0
    %2175 = vmatprep.subr.mxu0 0.0
    %2176 = vmatpush1.msra.mxu0 0.0
    %2177 = vmatprep.subr.mxu0 0.0
    %2178 = vmatpush1.msra.mxu0 0.0
    %2179 = vmatprep.subr.mxu0 0.0
    %2180 = vmatpush1.msra.mxu0 0.0
    %2181 = vmatprep.subr.mxu0 0.0
    %2182 = vmatpush1.msra.mxu0 0.0
    %2183 = vmatprep.subr.mxu0 0.0
    %2184 = vmatpush1.msra.mxu0 0.0
    %2185 = vmatprep.subr.mxu0 0.0
    %2186 = vmatpush1.msra.mxu0 0.0
    %2187 = vmatprep.subr.mxu0 0.0
    %2188 = vmatpush1.msra.mxu0 0.0
    %2189 = vmatprep.subr.mxu0 0.0
    %2190 = vmatpush1.msra.mxu0 0.0
    %2191 = vmatprep.subr.mxu0 0.0
    %2192 = vmatpush1.msra.mxu0 0.0
    %2193 = vmatprep.subr.mxu0 0.0
    %2194 = vmatpush1.msra.mxu0 0.0
    %2195 = vmatprep.subr.mxu0 0.0
    %2196 = vmatpush1.msra.mxu0 0.0
    %2197 = vmatprep.subr.mxu0 0.0
    %2198 = vmatpush1.msra.mxu0 0.0
    %2199 = vmatprep.subr.mxu0 0.0
    %2200 = vmatpush1.msra.mxu0 0.0
    %2201 = vmatprep.subr.mxu0 0.0
    %2202 = vmatpush1.msra.mxu0 0.0
    %2203 = vmatprep.subr.mxu0 0.0
    %2204 = vmatpush1.msra.mxu0 0.0
    %2205 = vmatprep.subr.mxu0 0.0
    %2206 = vmatpush1.msra.mxu0 0.0
    %2207 = vmatprep.subr.mxu0 0.0
    %2208 = vmatpush1.msra.mxu0 0.0
    %2209 = vmatprep.subr.mxu0 0.0
    %2210 = vmatpush1.msra.mxu0 0.0
    %2211 = vmatprep.subr.mxu0 0.0
    %2212 = vmatpush1.msra.mxu0 0.0
    %2213 = vmatprep.subr.mxu0 0.0
    %2214 = vmatpush1.msra.mxu0 0.0
    %2215 = vmatprep.subr.mxu0 0.0
    %2216 = vmatpush1.msra.mxu0 0.0
    %2217 = vmatprep.subr.mxu0 0.0
    %2218 = vmatpush1.msra.mxu0 0.0
    %2219 = vmatprep.subr.mxu0 0.0
    %2220 = vmatpush1.msra.mxu0 0.0
    %2221 = vmatprep.mubr.f32.mxu0 0.0
    %2222 = vmatmul.mubr.f32.gmra.mrb[0].mxu0 %v2155
    %v2223 = vpop.f32.mrb[0].mxu0
    %v2224 = vadd.f32 0.0, %v2223
    %v2225 = vpop.f32.mrb[0].mxu0
    %2226 = vdwg.mxu0
    %v2227 = vadd.f32 %v913, %v2224
    %v2228 = vmul.f32 %v2227, 0.5
    %v2229 = vtanh.pop %v2228
    %v2230 = vadd.f32 %v2229, 1.0
    %v2231 = vmul.f32 %v2230, 0.5
    %v2232 = vadd.f32 %v2224, %v1030
    %2234 = vrot.lane.b32.xlu0 %v2232, 64
    %v2235 = vpop.permute.xlu0 %2234
    %v2237 = vmul.f32 %v2231, %v2235
    %2239 = vrot.lane.b32.xlu0 %v2237, 64
    %v2240 = vpop.permute.xlu0 %2239
    %v2242 = vadd.f32 %v913, %v2240
    %v2243 = vtanh.pop %v2242
    %v2244 = vsub.f32 1.0, %v2231
    %2246 = vrot.lane.b32.xlu0 %v2243, 96
    %v2247 = vpop.permute.xlu0 %2246
    %v2249 = vmul.f32 %v2244, %v2247
    %v2250 = vmul.f32 %v2231, %v2151
    %v2251 = vadd.f32 %v2249, %v2250
    %2253 = vrot.lane.b32.xlu0 %v2251, 96
    %v2254 = vpop.permute.xlu0 %2253
    %v2255 = vsel %vm950, %v2254, 0
    %2257 = vmatprep.subr.mxu0 0.0
    %2258 = vmatpush1.msra.mxu0 %v724
    %2259 = vmatprep.subr.mxu0 0.0
    %2260 = vmatpush1.msra.mxu0 %v725
    %2261 = vmatprep.subr.mxu0 0.0
    %2262 = vmatpush1.msra.mxu0 %v726
    %2263 = vmatprep.subr.mxu0 0.0
    %2264 = vmatpush1.msra.mxu0 %v727
    %2265 = vmatprep.subr.mxu0 0.0
    %2266 = vmatpush1.msra.mxu0 0.0
    %2267 = vmatprep.subr.mxu0 0.0
    %2268 = vmatpush1.msra.mxu0 0.0
    %2269 = vmatprep.subr.mxu0 0.0
    %2270 = vmatpush1.msra.mxu0 0.0
    %2271 = vmatprep.subr.mxu0 0.0
    %2272 = vmatpush1.msra.mxu0 0.0
    %2273 = vmatprep.subr.mxu0 0.0
    %2274 = vmatpush1.msra.mxu0 0.0
    %2275 = vmatprep.subr.mxu0 0.0
    %2276 = vmatpush1.msra.mxu0 0.0
    %2277 = vmatprep.subr.mxu0 0.0
    %2278 = vmatpush1.msra.mxu0 0.0
    %2279 = vmatprep.subr.mxu0 0.0
    %2280 = vmatpush1.msra.mxu0 0.0
    %2281 = vmatprep.subr.mxu0 0.0
    %2282 = vmatpush1.msra.mxu0 0.0
    %2283 = vmatprep.subr.mxu0 0.0
    %2284 = vmatpush1.msra.mxu0 0.0
    %2285 = vmatprep.subr.mxu0 0.0
    %2286 = vmatpush1.msra.mxu0 0.0
    %2287 = vmatprep.subr.mxu0 0.0
    %2288 = vmatpush1.msra.mxu0 0.0
    %2289 = vmatprep.subr.mxu0 0.0
    %2290 = vmatpush1.msra.mxu0 0.0
    %2291 = vmatprep.subr.mxu0 0.0
    %2292 = vmatpush1.msra.mxu0 0.0
    %2293 = vmatprep.subr.mxu0 0.0
    %2294 = vmatpush1.msra.mxu0 0.0
    %2295 = vmatprep.subr.mxu0 0.0
    %2296 = vmatpush1.msra.mxu0 0.0
    %2297 = vmatprep.subr.mxu0 0.0
    %2298 = vmatpush1.msra.mxu0 0.0
    %2299 = vmatprep.subr.mxu0 0.0
    %2300 = vmatpush1.msra.mxu0 0.0
    %2301 = vmatprep.subr.mxu0 0.0
    %2302 = vmatpush1.msra.mxu0 0.0
    %2303 = vmatprep.subr.mxu0 0.0
    %2304 = vmatpush1.msra.mxu0 0.0
    %2305 = vmatprep.subr.mxu0 0.0
    %2306 = vmatpush1.msra.mxu0 0.0
    %2307 = vmatprep.subr.mxu0 0.0
    %2308 = vmatpush1.msra.mxu0 0.0
    %2309 = vmatprep.subr.mxu0 0.0
    %2310 = vmatpush1.msra.mxu0 0.0
    %2311 = vmatprep.subr.mxu0 0.0
    %2312 = vmatpush1.msra.mxu0 0.0
    %2313 = vmatprep.subr.mxu0 0.0
    %2314 = vmatpush1.msra.mxu0 0.0
    %2315 = vmatprep.subr.mxu0 0.0
    %2316 = vmatpush1.msra.mxu0 0.0
    %2317 = vmatprep.subr.mxu0 0.0
    %2318 = vmatpush1.msra.mxu0 0.0
    %2319 = vmatprep.subr.mxu0 0.0
    %2320 = vmatpush1.msra.mxu0 0.0
    %2321 = vmatprep.mubr.f32.mxu0 0.0
    %2322 = vmatmul.mubr.f32.gmra.mrb[0].mxu0 %v2255
    %v2323 = vpop.f32.mrb[0].mxu0
    %v2324 = vadd.f32 0.0, %v2323
    %v2325 = vpop.f32.mrb[0].mxu0
    %2326 = vdwg.mxu0
    %v2327 = vadd.f32 %v918, %v2324
    %v2328 = vmul.f32 %v2327, 0.5
    %v2329 = vtanh.pop %v2328
    %v2330 = vadd.f32 %v2329, 1.0
    %v2331 = vmul.f32 %v2330, 0.5
    %v2332 = vadd.f32 %v2324, %v1030
    %2334 = vrot.lane.b32.xlu0 %v2332, 64
    %v2335 = vpop.permute.xlu0 %2334
    %v2337 = vmul.f32 %v2331, %v2335
    %2339 = vrot.lane.b32.xlu0 %v2337, 64
    %v2340 = vpop.permute.xlu0 %2339
    %v2342 = vadd.f32 %v918, %v2340
    %v2343 = vtanh.pop %v2342
    %v2344 = vsub.f32 1.0, %v2331
    %2346 = vrot.lane.b32.xlu0 %v2343, 96
    %v2347 = vpop.permute.xlu0 %2346
    %v2349 = vmul.f32 %v2344, %v2347
    %v2350 = vmul.f32 %v2331, %v2251
    %v2351 = vadd.f32 %v2349, %v2350
    %2353 = vrot.lane.b32.xlu0 %v2351, 96
    %v2354 = vpop.permute.xlu0 %2353
    %v2355 = vsel %vm950, %v2354, 0
    %2357 = vmatprep.subr.mxu0 0.0
    %2358 = vmatpush1.msra.mxu0 %v724
    %2359 = vmatprep.subr.mxu0 0.0
    %2360 = vmatpush1.msra.mxu0 %v725
    %2361 = vmatprep.subr.mxu0 0.0
    %2362 = vmatpush1.msra.mxu0 %v726
    %2363 = vmatprep.subr.mxu0 0.0
    %2364 = vmatpush1.msra.mxu0 %v727
    %2365 = vmatprep.subr.mxu0 0.0
    %2366 = vmatpush1.msra.mxu0 0.0
    %2367 = vmatprep.subr.mxu0 0.0
    %2368 = vmatpush1.msra.mxu0 0.0
    %2369 = vmatprep.subr.mxu0 0.0
    %2370 = vmatpush1.msra.mxu0 0.0
    %2371 = vmatprep.subr.mxu0 0.0
    %2372 = vmatpush1.msra.mxu0 0.0
    %2373 = vmatprep.subr.mxu0 0.0
    %2374 = vmatpush1.msra.mxu0 0.0
    %2375 = vmatprep.subr.mxu0 0.0
    %2376 = vmatpush1.msra.mxu0 0.0
    %2377 = vmatprep.subr.mxu0 0.0
    %2378 = vmatpush1.msra.mxu0 0.0
    %2379 = vmatprep.subr.mxu0 0.0
    %2380 = vmatpush1.msra.mxu0 0.0
    %2381 = vmatprep.subr.mxu0 0.0
    %2382 = vmatpush1.msra.mxu0 0.0
    %2383 = vmatprep.subr.mxu0 0.0
    %2384 = vmatpush1.msra.mxu0 0.0
    %2385 = vmatprep.subr.mxu0 0.0
    %2386 = vmatpush1.msra.mxu0 0.0
    %2387 = vmatprep.subr.mxu0 0.0
    %2388 = vmatpush1.msra.mxu0 0.0
    %2389 = vmatprep.subr.mxu0 0.0
    %2390 = vmatpush1.msra.mxu0 0.0
    %2391 = vmatprep.subr.mxu0 0.0
    %2392 = vmatpush1.msra.mxu0 0.0
    %2393 = vmatprep.subr.mxu0 0.0
    %2394 = vmatpush1.msra.mxu0 0.0
    %2395 = vmatprep.subr.mxu0 0.0
    %2396 = vmatpush1.msra.mxu0 0.0
    %2397 = vmatprep.subr.mxu0 0.0
    %2398 = vmatpush1.msra.mxu0 0.0
    %2399 = vmatprep.subr.mxu0 0.0
    %2400 = vmatpush1.msra.mxu0 0.0
    %2401 = vmatprep.subr.mxu0 0.0
    %2402 = vmatpush1.msra.mxu0 0.0
    %2403 = vmatprep.subr.mxu0 0.0
    %2404 = vmatpush1.msra.mxu0 0.0
    %2405 = vmatprep.subr.mxu0 0.0
    %2406 = vmatpush1.msra.mxu0 0.0
    %2407 = vmatprep.subr.mxu0 0.0
    %2408 = vmatpush1.msra.mxu0 0.0
    %2409 = vmatprep.subr.mxu0 0.0
    %2410 = vmatpush1.msra.mxu0 0.0
    %2411 = vmatprep.subr.mxu0 0.0
    %2412 = vmatpush1.msra.mxu0 0.0
    %2413 = vmatprep.subr.mxu0 0.0
    %2414 = vmatpush1.msra.mxu0 0.0
    %2415 = vmatprep.subr.mxu0 0.0
    %2416 = vmatpush1.msra.mxu0 0.0
    %2417 = vmatprep.subr.mxu0 0.0
    %2418 = vmatpush1.msra.mxu0 0.0
    %2419 = vmatprep.subr.mxu0 0.0
    %2420 = vmatpush1.msra.mxu0 0.0
    %2421 = vmatprep.mubr.f32.mxu0 0.0
    %2422 = vmatmul.mubr.f32.gmra.mrb[0].mxu0 %v2355
    %v2423 = vpop.f32.mrb[0].mxu0
    %v2424 = vadd.f32 0.0, %v2423
    %v2425 = vpop.f32.mrb[0].mxu0
    %2426 = vdwg.mxu0
    %v2427 = vadd.f32 %v923, %v2424
    %v2428 = vmul.f32 %v2427, 0.5
    %v2429 = vtanh.pop %v2428
    %v2430 = vadd.f32 %v2429, 1.0
    %v2431 = vmul.f32 %v2430, 0.5
    %v2432 = vadd.f32 %v2424, %v1030
    %2434 = vrot.lane.b32.xlu0 %v2432, 64
    %v2435 = vpop.permute.xlu0 %2434
    %v2437 = vmul.f32 %v2431, %v2435
    %2439 = vrot.lane.b32.xlu0 %v2437, 64
    %v2440 = vpop.permute.xlu0 %2439
    %v2442 = vadd.f32 %v923, %v2440
    %v2443 = vtanh.pop %v2442
    %v2444 = vsub.f32 1.0, %v2431
    %2446 = vrot.lane.b32.xlu0 %v2443, 96
    %v2447 = vpop.permute.xlu0 %2446
    %v2449 = vmul.f32 %v2444, %v2447
    %v2450 = vmul.f32 %v2431, %v2351
    %v2451 = vadd.f32 %v2449, %v2450
    %v2452 = vld [vmem:[%s3] sm:$0xff]
    %v2453 = vld [vmem:[%s3 + $0x8] sm:$0xff]
    %v2454 = vld [vmem:[%s3 + $0x10] sm:$0xff]
    %v2455 = vld [vmem:[%s3 + $0x18] sm:$0xff]
    %v2456 = vlaneseq
    %v2457 = vshrl.u32 %v2456, 7
    %v2458 = vsub.s32 0, %v2457
    %v2459 = vrot.slane %v24, %v2458
    %2461 = vrot.lane.b32.xlu0 %v2451, 96
    %v2462 = vpop.permute.xlu0 %2461
    %v2463 = vsel %vm950, %v2462, 0
    %2465 = vmatprep.subr.mxu0 0.0
    %2466 = vmatpush1.msra.mxu0 %v2452
    %2467 = vmatprep.subr.mxu0 0.0
    %2468 = vmatpush1.msra.mxu0 %v2453
    %2469 = vmatprep.subr.mxu0 0.0
    %2470 = vmatpush1.msra.mxu0 %v2454
    %2471 = vmatprep.subr.mxu0 0.0
    %2472 = vmatpush1.msra.mxu0 %v2455
    %2473 = vmatprep.subr.mxu0 0.0
    %2474 = vmatpush1.msra.mxu0 0.0
    %2475 = vmatprep.subr.mxu0 0.0
    %2476 = vmatpush1.msra.mxu0 0.0
    %2477 = vmatprep.subr.mxu0 0.0
    %2478 = vmatpush1.msra.mxu0 0.0
    %2479 = vmatprep.subr.mxu0 0.0
    %2480 = vmatpush1.msra.mxu0 0.0
    %2481 = vmatprep.subr.mxu0 0.0
    %2482 = vmatpush1.msra.mxu0 0.0
    %2483 = vmatprep.subr.mxu0 0.0
    %2484 = vmatpush1.msra.mxu0 0.0
    %2485 = vmatprep.subr.mxu0 0.0
    %2486 = vmatpush1.msra.mxu0 0.0
    %2487 = vmatprep.subr.mxu0 0.0
    %2488 = vmatpush1.msra.mxu0 0.0
    %2489 = vmatprep.subr.mxu0 0.0
    %2490 = vmatpush1.msra.mxu0 0.0
    %2491 = vmatprep.subr.mxu0 0.0
    %2492 = vmatpush1.msra.mxu0 0.0
    %2493 = vmatprep.subr.mxu0 0.0
    %2494 = vmatpush1.msra.mxu0 0.0
    %2495 = vmatprep.subr.mxu0 0.0
    %2496 = vmatpush1.msra.mxu0 0.0
    %2497 = vmatprep.subr.mxu0 0.0
    %2498 = vmatpush1.msra.mxu0 0.0
    %2499 = vmatprep.subr.mxu0 0.0
    %2500 = vmatpush1.msra.mxu0 0.0
    %2501 = vmatprep.subr.mxu0 0.0
    %2502 = vmatpush1.msra.mxu0 0.0
    %2503 = vmatprep.subr.mxu0 0.0
    %2504 = vmatpush1.msra.mxu0 0.0
    %2505 = vmatprep.subr.mxu0 0.0
    %2506 = vmatpush1.msra.mxu0 0.0
    %2507 = vmatprep.subr.mxu0 0.0
    %2508 = vmatpush1.msra.mxu0 0.0
    %2509 = vmatprep.subr.mxu0 0.0
    %2510 = vmatpush1.msra.mxu0 0.0
    %2511 = vmatprep.subr.mxu0 0.0
    %2512 = vmatpush1.msra.mxu0 0.0
    %2513 = vmatprep.subr.mxu0 0.0
    %2514 = vmatpush1.msra.mxu0 0.0
    %2515 = vmatprep.subr.mxu0 0.0
    %2516 = vmatpush1.msra.mxu0 0.0
    %2517 = vmatprep.subr.mxu0 0.0
    %2518 = vmatpush1.msra.mxu0 0.0
    %2519 = vmatprep.subr.mxu0 0.0
    %2520 = vmatpush1.msra.mxu0 0.0
    %2521 = vmatprep.subr.mxu0 0.0
    %2522 = vmatpush1.msra.mxu0 0.0
    %2523 = vmatprep.subr.mxu0 0.0
    %2524 = vmatpush1.msra.mxu0 0.0
    %2525 = vmatprep.subr.mxu0 0.0
    %2526 = vmatpush1.msra.mxu0 0.0
    %2527 = vmatprep.subr.mxu0 0.0
    %2528 = vmatpush1.msra.mxu0 0.0
    %2529 = vmatprep.mubr.f32.mxu0 0.0
    %2530 = vmatmul.mubr.f32.gmra.mrb[0].mxu0 %v2463
    %v2531 = vpop.f32.mrb[0].mxu0
    %v2532 = vadd.f32 %v2459, %v2531
    %v2533 = vpop.f32.mrb[0].mxu0
    %2534 = vdwg.mxu0
    %2535 = vst [vmem:[#allocation2] sm:$0xff] %v2532
    // Predicated region
    $region22: #{tpu_custom_call.1} parent=1 // pred_check
      _
    $region23: #{tpu_custom_call.1} parent=1 // pred_check_branch
      %2537 = sbr.rel (0) target = $region25
    $region24: #{tpu_custom_call.1} parent=1 // pred_region
      %s2539 = ssub.s32 128, 128
      %2540 = vsyncadd [#allocation3], %s2539
      %s2542 = sshll.u32 [#allocation2], 4
      %s2543 = int_to_ptr.vmem [resolvable:$true] %s2542
      %2545 = dma.vmem_to_hbm [thread:$0]  %s2543, 128, %s5, [#allocation3]
    $region25: #{tpu_custom_call.1} parent=1 // pred_fallthru
      _
    // Predicated region
    $region26: #{tpu_custom_call.1} parent=1 // pred_check
      _
    $region27: #{tpu_custom_call.1} parent=1 // pred_check_branch
      %2547 = sbr.rel (0) target = $region29
    $region28: #{tpu_custom_call.1} parent=1 // pred_region
      %2548 = dma.done [#allocation3], 128
    $region29: #{tpu_custom_call.1} parent=1 // pred_fallthru
      _
    %2549 = vsyncpa [#allocation3], 1

</llo_original>
